<compile_context>
chip_gen: v7x
topology: tpu7x:2x2x1
jax: 0.10.0
libtpu: 0.0.40
codegen_flags: <defaults>
</compile_context>

<pallas_src>
import numpy as np
import jax
import jax.numpy as jnp
from jax import lax
from jax.experimental import pallas as pl
from jax.experimental.pallas import tpu as pltpu

EPS = 1e-5


# ------------------------------ fused kernel ---------------------------------
def _net_kernel(x_ref, b1_ref, s1_ref, b2_ref, s2_ref, b3_ref, s3_ref,
                wf1_ref, c1_ref, wf2_ref, c2_ref, o_ref):
    f32 = jnp.float32
    bf16 = jnp.bfloat16

    x = x_ref[0]                                            # (16, 16) f32

    # conv1 + bn1 + relu : (16,16,1) -> (14,14,32), stored as (14, 14*32)
    acc1 = jnp.zeros((14, 448), f32)
    for kh in range(3):
        acc1 += jnp.dot(x[kh:kh + 14, :].astype(bf16), b1_ref[kh],
                        preferred_element_type=f32)
    h1 = jnp.maximum(acc1 + s1_ref[...], 0.0)               # (14, 448)

    # conv2 + bn2 + relu : -> (12,12,32) as (12, 384)
    acc2 = jnp.zeros((12, 384), f32)
    for kh in range(3):
        acc2 += jnp.dot(h1[kh:kh + 12, :].astype(bf16), b2_ref[kh],
                        preferred_element_type=f32)
    h2 = jnp.maximum(acc2 + s2_ref[...], 0.0)               # (12, 384)

    # 2x2 max pool on the VPU.  Valid pooled values sit at even rows and at
    # lane positions 64*g + c of `cmax`; that sparse layout is consumed
    # directly by the conv3 band matrix (zero weights elsewhere).
    rmax = jnp.maximum(h2[0:11, :], h2[1:12, :])            # (11, 384)
    cmax = jnp.maximum(rmax[:, 0:352], rmax[:, 32:384])     # (11, 352)
    # dropout1 (eval mode) == identity

    # conv3 + bn3 + relu : pooled (6,6,32) -> (4,4,32); valid output rows are
    # the even rows of this (7, 128) slab.
    acc3 = jnp.zeros((7, 128), f32)
    for kh in range(3):
        acc3 += jnp.dot(cmax[2 * kh:2 * kh + 7, :].astype(bf16), b3_ref[kh],
                        preferred_element_type=f32)
    h3 = jnp.maximum(acc3 + s3_ref[...], 0.0)               # (7, 128)

    # fc1 + bn4 + relu  (torch.flatten permutation folded into wf1 at init)
    y1 = c1_ref[...]                                        # (1, 16) shift
    for h in range(4):
        y1 = y1 + jnp.dot(h3[2 * h:2 * h + 1, :], wf1_ref[h],
                          preferred_element_type=f32)
    y1 = jnp.maximum(y1, 0.0)
    # dropout2 (eval mode) == identity

    # fc2 + bn5 + log_softmax
    y2 = jnp.dot(y1, wf2_ref[...], preferred_element_type=f32) + c2_ref[...]
    m = jnp.max(y2, axis=-1, keepdims=True)
    lse = m + jnp.log(jnp.sum(jnp.exp(y2 - m), axis=-1, keepdims=True))
    o_ref[0, :, :] = y2 - lse


def net_forward(kp, x_nchw):
    n = x_nchw.shape[0]
    x = x_nchw[:, 0, :, :].astype(jnp.float32)              # Cin == 1
    out = pl.pallas_call(
        _net_kernel,
        out_shape=jax.ShapeDtypeStruct((n, 1, 2), jnp.float32),
        grid=(n,),
        in_specs=[
            pl.BlockSpec((1, 16, 16), lambda i: (i, 0, 0)),     # x
            pl.BlockSpec((3, 16, 448), lambda i: (0, 0, 0)),    # B1 (bf16)
            pl.BlockSpec((1, 448), lambda i: (0, 0)),           # shift1
            pl.BlockSpec((3, 448, 384), lambda i: (0, 0, 0)),   # B2 (bf16)
            pl.BlockSpec((1, 384), lambda i: (0, 0)),           # shift2
            pl.BlockSpec((3, 352, 128), lambda i: (0, 0, 0)),   # B3 (bf16)
            pl.BlockSpec((1, 128), lambda i: (0, 0)),           # shift3
            pl.BlockSpec((4, 128, 16), lambda i: (0, 0, 0)),    # wf1 (permuted)
            pl.BlockSpec((1, 16), lambda i: (0, 0)),            # shift4
            pl.BlockSpec((16, 2), lambda i: (0, 0)),            # wf2
            pl.BlockSpec((1, 2), lambda i: (0, 0)),             # shift5
        ],
        out_specs=pl.BlockSpec((1, 1, 2), lambda i: (i, 0, 0)),
        compiler_params=pltpu.CompilerParams(
            dimension_semantics=("parallel",)),
    )(x, kp["B1"], kp["s1"], kp["B2"], kp["s2"], kp["B3"], kp["s3"],
      kp["wf1"], kp["c1"], kp["wf2"], kp["c2"])
    return out[:, 0, :]


# --------------------------- parameters & folding -----------------------------
def init_natural_params(key):
    ks = iter(jax.random.split(key, 32))

    def nrm(shape, s):
        return s * jax.random.normal(next(ks), shape, jnp.float32)

    def bn(c):
        return (1.0 + 0.1 * jax.random.normal(next(ks), (c,), jnp.float32),
                0.1 * jax.random.normal(next(ks), (c,), jnp.float32),
                0.1 * jax.random.normal(next(ks), (c,), jnp.float32),
                1.0 + 0.1 * jax.random.uniform(next(ks), (c,), jnp.float32))

    p = {}
    for i, (cin, cout) in enumerate([(1, 32), (32, 32), (32, 32)], start=1):
        p[f"w{i}"] = nrm((3, 3, cin, cout), 0.1)     # HWIO
        p[f"b{i}"] = nrm((cout,), 0.1)
        p[f"bn{i}"] = bn(cout)
    for i, (fin, fout) in enumerate([(512, 16), (16, 2)], start=1):
        p[f"wf{i}"] = nrm((fin, fout), 0.05)         # rows in torch-flatten order
        p[f"cb{i}"] = nrm((fout,), 0.1)
        p[f"bn{i + 3}"] = bn(fout)
    return p


def _fold_bn(gamma, beta, mean, var, bias):
    scale = gamma / np.sqrt(var + EPS)
    shift = beta + scale * (bias - mean)
    return scale, shift


def _build_band(w, scale, w_in, in_stride, in_lanes):
    # band[kh, in_stride*(j+kw) + ci, Cout*j + co] = w[kh,kw,ci,co] * scale[co]
    kh_n, kw_n, cin, cout = w.shape
    wo = w_in - kw_n + 1
    ws = w * scale[None, None, None, :]
    band = np.zeros((kh_n, in_lanes, wo * cout), np.float32)
    for kh in range(kh_n):
        for kw in range(kw_n):
            for j in range(wo):
                r0 = (j + kw) * in_stride
                band[kh, r0:r0 + cin, j * cout:(j + 1) * cout] = ws[kh, kw]
    return band


def fold_params(nat):
    g = lambda a: np.asarray(jax.device_get(a), np.float32)
    kp = {}
    # (name, input W, input lane stride per column, input lanes, output W)
    conv_specs = [("1", 16, 1, 16, 14), ("2", 14, 32, 448, 12),
                  ("3", 6, 64, 352, 4)]
    for name, w_in, stride, lanes, wo in conv_specs:
        w, b = g(nat[f"w{name}"]), g(nat[f"b{name}"])
        gam, bet, mu, var = (g(t) for t in nat[f"bn{name}"])
        scale, shift = _fold_bn(gam, bet, mu, var, b)
        kp[f"B{name}"] = jnp.asarray(
            _build_band(w, scale, w_in, stride, lanes), jnp.bfloat16)
        kp[f"s{name}"] = jnp.asarray(np.tile(shift, wo)[None, :], jnp.float32)

    # fc1: fold torch-flatten (c*16 + 4h + w) -> (slab row 2h, lane 32w + c)
    wf1, cb1 = g(nat["wf1"]), g(nat["cb1"])
    gam, bet, mu, var = (g(t) for t in nat["bn4"])
    scale4, shift4 = _fold_bn(gam, bet, mu, var, cb1)
    perm = np.zeros((512,), np.int64)
    for h in range(4):
        for w_ in range(4):
            for c in range(32):
                perm[h * 128 + 32 * w_ + c] = c * 16 + h * 4 + w_
    kp["wf1"] = jnp.asarray(
        (wf1 * scale4[None, :])[perm].reshape(4, 128, 16), jnp.float32)
    kp["c1"] = jnp.asarray(shift4[None, :], jnp.float32)

    # fc2
    wf2, cb2 = g(nat["wf2"]), g(nat["cb2"])
    gam, bet, mu, var = (g(t) for t in nat["bn5"])
    scale5, shift5 = _fold_bn(gam, bet, mu, var, cb2)
    kp["wf2"] = jnp.asarray(wf2 * scale5[None, :], jnp.float32)
    kp["c2"] = jnp.asarray(shift5[None, :], jnp.float32)
    return kp


# ----------------------------- pure-JAX reference -----------------------------
def reference_forward(nat, x_nchw):
    def bn_apply(y, bn, axis_c):
        gam, bet, mu, var = bn
        shp = [1] * y.ndim
        shp[axis_c] = -1
        return (gam.reshape(shp) * (y - mu.reshape(shp))
                / jnp.sqrt(var.reshape(shp) + EPS) + bet.reshape(shp))

    def conv_bn_relu(y, w, b, bn):
        y = lax.conv_general_dilated(
            y, w, window_strides=(1, 1), padding="VALID",
            dimension_numbers=("NCHW", "HWIO", "NCHW"))
        y = y + b[None, :, None, None]
        return jnp.maximum(bn_apply(y, bn, 1), 0.0)

    x = x_nchw.astype(jnp.float32)
    x = conv_bn_relu(x, nat["w1"], nat["b1"], nat["bn1"])
    x = conv_bn_relu(x, nat["w2"], nat["b2"], nat["bn2"])
    x = lax.reduce_window(x, -jnp.inf, lax.max,
                          (1, 1, 2, 2), (1, 1, 2, 2), "VALID")
    x = conv_bn_relu(x, nat["w3"], nat["b3"], nat["bn3"])
    x = x.reshape(x.shape[0], -1)                    # == torch.flatten(x, 1)
    x = jnp.maximum(bn_apply(x @ nat["wf1"] + nat["cb1"], nat["bn4"], 1), 0.0)
    x = bn_apply(x @ nat["wf2"] + nat["cb2"], nat["bn5"], 1)
    return jax.nn.log_softmax(x, axis=1)


# ------------------------------------ main -------------------------------------
if __name__ == "__main__":
    key = jax.random.PRNGKey(0)
    kx, kparams_key = jax.random.split(key)
    # N=2, C=1, 16x16 input: 16 -conv-> 14 -conv-> 12 -pool-> 6 -conv-> 4
    x = jax.random.normal(kx, (2, 1, 16, 16), jnp.float32)

    nat = init_natural_params(kparams_key)
    kparams = fold_params(nat)

    fwd = jax.jit(net_forward)
    out = jax.block_until_ready(fwd(kparams, x))

    assert out.shape == (2, 2), out.shape
    assert bool(jnp.all(jnp.isfinite(out)))
    # rows of a log_softmax must exp-sum to 1
    assert bool(jnp.allclose(jnp.sum(jnp.exp(out), axis=1), 1.0, atol=1e-4))

    # pure-JAX f32 reference (kernel uses bf16 MXU operands -> loose tolerance)
    ref = reference_forward(nat, x)
    assert bool(jnp.allclose(out, ref, atol=5e-2, rtol=5e-2)), (out, ref)

    print("KERNEL_OK")
</pallas_src>

<mosaic_0001>
module attributes {stable_mosaic.version = 11 : i64} {
  func.func @_net_kernel(%arg0: i32, %arg1: memref<1x16x16xf32, #tpu.memory_space<vmem>>, %arg2: memref<3x16x448xbf16, #tpu.memory_space<vmem>>, %arg3: memref<1x448xf32, #tpu.memory_space<vmem>>, %arg4: memref<3x448x384xbf16, #tpu.memory_space<vmem>>, %arg5: memref<1x384xf32, #tpu.memory_space<vmem>>, %arg6: memref<3x352x128xbf16, #tpu.memory_space<vmem>>, %arg7: memref<1x128xf32, #tpu.memory_space<vmem>>, %arg8: memref<4x128x16xf32, #tpu.memory_space<vmem>>, %arg9: memref<1x16xf32, #tpu.memory_space<vmem>>, %arg10: memref<16x2xf32, #tpu.memory_space<vmem>>, %arg11: memref<1x2xf32, #tpu.memory_space<vmem>>, %arg12: memref<1x1x2xf32, #tpu.memory_space<vmem>>) attributes {dimension_semantics = [#tpu.dimension_semantics<parallel>], iteration_bounds = array<i64: 2>, scalar_prefetch = 0 : i64, scratch_operands = 0 : i64, tpu.core_type = #tpu.core_type<tc>, window_params = [{transform_indices = @transform_0, window_bounds = array<i64: 1, 16, 16>}, {pipeline_mode = #tpu.pipeline_mode<synchronous>, transform_indices = @transform_1, window_bounds = array<i64: 3, 16, 448>}, {pipeline_mode = #tpu.pipeline_mode<synchronous>, transform_indices = @transform_2, window_bounds = array<i64: 1, 448>}, {pipeline_mode = #tpu.pipeline_mode<synchronous>, transform_indices = @transform_3, window_bounds = array<i64: 3, 448, 384>}, {pipeline_mode = #tpu.pipeline_mode<synchronous>, transform_indices = @transform_4, window_bounds = array<i64: 1, 384>}, {pipeline_mode = #tpu.pipeline_mode<synchronous>, transform_indices = @transform_5, window_bounds = array<i64: 3, 352, 128>}, {pipeline_mode = #tpu.pipeline_mode<synchronous>, transform_indices = @transform_6, window_bounds = array<i64: 1, 128>}, {pipeline_mode = #tpu.pipeline_mode<synchronous>, transform_indices = @transform_7, window_bounds = array<i64: 4, 128, 16>}, {pipeline_mode = #tpu.pipeline_mode<synchronous>, transform_indices = @transform_8, window_bounds = array<i64: 1, 16>}, {pipeline_mode = #tpu.pipeline_mode<synchronous>, transform_indices = @transform_9, window_bounds = array<i64: 16, 2>}, {pipeline_mode = #tpu.pipeline_mode<synchronous>, transform_indices = @transform_10, window_bounds = array<i64: 1, 2>}, {transform_indices = @transform_11, window_bounds = array<i64: 1, 1, 2>}]} {
    %c0 = arith.constant 0 : index
    %c0_0 = arith.constant 0 : index
    %c0_1 = arith.constant 0 : index
    %0 = vector.load %arg1[%c0, %c0_0, %c0_1] : memref<1x16x16xf32, #tpu.memory_space<vmem>>, vector<1x16x16xf32>
    %1 = vector.shape_cast %0 : vector<1x16x16xf32> to vector<16x16xf32>
    %cst = arith.constant 0.000000e+00 : f32
    %2 = vector.broadcast %cst : f32 to vector<14x448xf32>
    %3 = vector.extract_strided_slice %1 {offsets = [0, 0], sizes = [14, 16], strides = [1, 1]} : vector<16x16xf32> to vector<14x16xf32>
    %4 = arith.truncf %3 : vector<14x16xf32> to vector<14x16xbf16>
    %c0_2 = arith.constant 0 : index
    %c0_3 = arith.constant 0 : index
    %c0_4 = arith.constant 0 : index
    %5 = vector.load %arg2[%c0_2, %c0_3, %c0_4] : memref<3x16x448xbf16, #tpu.memory_space<vmem>>, vector<1x16x448xbf16>
    %6 = vector.shape_cast %5 : vector<1x16x448xbf16> to vector<16x448xbf16>
    %cst_5 = arith.constant dense<0.000000e+00> : vector<14x448xf32>
    %7 = tpu.matmul %4, %6, %cst_5 {dimension_numbers = #tpu.dot_dimension_numbers<[1], [0], [0], [1], [0, 0, 1, 1], [], []>} : vector<14x16xbf16>, vector<16x448xbf16>, vector<14x448xf32> -> vector<14x448xf32>
    %8 = arith.addf %2, %7 : vector<14x448xf32>
    %9 = vector.extract_strided_slice %1 {offsets = [1, 0], sizes = [14, 16], strides = [1, 1]} : vector<16x16xf32> to vector<14x16xf32>
    %10 = arith.truncf %9 : vector<14x16xf32> to vector<14x16xbf16>
    %c1 = arith.constant 1 : index
    %c0_6 = arith.constant 0 : index
    %c0_7 = arith.constant 0 : index
    %11 = vector.load %arg2[%c1, %c0_6, %c0_7] : memref<3x16x448xbf16, #tpu.memory_space<vmem>>, vector<1x16x448xbf16>
    %12 = vector.shape_cast %11 : vector<1x16x448xbf16> to vector<16x448xbf16>
    %cst_8 = arith.constant dense<0.000000e+00> : vector<14x448xf32>
    %13 = tpu.matmul %10, %12, %cst_8 {dimension_numbers = #tpu.dot_dimension_numbers<[1], [0], [0], [1], [0, 0, 1, 1], [], []>} : vector<14x16xbf16>, vector<16x448xbf16>, vector<14x448xf32> -> vector<14x448xf32>
    %14 = arith.addf %8, %13 : vector<14x448xf32>
    %15 = vector.extract_strided_slice %1 {offsets = [2, 0], sizes = [14, 16], strides = [1, 1]} : vector<16x16xf32> to vector<14x16xf32>
    %16 = arith.truncf %15 : vector<14x16xf32> to vector<14x16xbf16>
    %c2 = arith.constant 2 : index
    %c0_9 = arith.constant 0 : index
    %c0_10 = arith.constant 0 : index
    %17 = vector.load %arg2[%c2, %c0_9, %c0_10] : memref<3x16x448xbf16, #tpu.memory_space<vmem>>, vector<1x16x448xbf16>
    %18 = vector.shape_cast %17 : vector<1x16x448xbf16> to vector<16x448xbf16>
    %cst_11 = arith.constant dense<0.000000e+00> : vector<14x448xf32>
    %19 = tpu.matmul %16, %18, %cst_11 {dimension_numbers = #tpu.dot_dimension_numbers<[1], [0], [0], [1], [0, 0, 1, 1], [], []>} : vector<14x16xbf16>, vector<16x448xbf16>, vector<14x448xf32> -> vector<14x448xf32>
    %20 = arith.addf %14, %19 : vector<14x448xf32>
    %c0_12 = arith.constant 0 : index
    %c0_13 = arith.constant 0 : index
    %21 = vector.load %arg3[%c0_12, %c0_13] : memref<1x448xf32, #tpu.memory_space<vmem>>, vector<1x448xf32>
    %22 = vector.broadcast %21 : vector<1x448xf32> to vector<14x448xf32>
    %23 = arith.addf %20, %22 : vector<14x448xf32>
    %cst_14 = arith.constant 0.000000e+00 : f32
    %24 = vector.broadcast %cst_14 : f32 to vector<14x448xf32>
    %25 = arith.maximumf %23, %24 : vector<14x448xf32>
    %cst_15 = arith.constant 0.000000e+00 : f32
    %26 = vector.broadcast %cst_15 : f32 to vector<12x384xf32>
    %27 = vector.extract_strided_slice %25 {offsets = [0, 0], sizes = [12, 448], strides = [1, 1]} : vector<14x448xf32> to vector<12x448xf32>
    %28 = arith.truncf %27 : vector<12x448xf32> to vector<12x448xbf16>
    %c0_16 = arith.constant 0 : index
    %c0_17 = arith.constant 0 : index
    %c0_18 = arith.constant 0 : index
    %29 = vector.load %arg4[%c0_16, %c0_17, %c0_18] : memref<3x448x384xbf16, #tpu.memory_space<vmem>>, vector<1x448x384xbf16>
    %30 = vector.shape_cast %29 : vector<1x448x384xbf16> to vector<448x384xbf16>
    %cst_19 = arith.constant dense<0.000000e+00> : vector<12x384xf32>
    %31 = tpu.matmul %28, %30, %cst_19 {dimension_numbers = #tpu.dot_dimension_numbers<[1], [0], [0], [1], [0, 0, 1, 1], [], []>} : vector<12x448xbf16>, vector<448x384xbf16>, vector<12x384xf32> -> vector<12x384xf32>
    %32 = arith.addf %26, %31 : vector<12x384xf32>
    %33 = vector.extract_strided_slice %25 {offsets = [1, 0], sizes = [12, 448], strides = [1, 1]} : vector<14x448xf32> to vector<12x448xf32>
    %34 = arith.truncf %33 : vector<12x448xf32> to vector<12x448xbf16>
    %c1_20 = arith.constant 1 : index
    %c0_21 = arith.constant 0 : index
    %c0_22 = arith.constant 0 : index
    %35 = vector.load %arg4[%c1_20, %c0_21, %c0_22] : memref<3x448x384xbf16, #tpu.memory_space<vmem>>, vector<1x448x384xbf16>
    %36 = vector.shape_cast %35 : vector<1x448x384xbf16> to vector<448x384xbf16>
    %cst_23 = arith.constant dense<0.000000e+00> : vector<12x384xf32>
    %37 = tpu.matmul %34, %36, %cst_23 {dimension_numbers = #tpu.dot_dimension_numbers<[1], [0], [0], [1], [0, 0, 1, 1], [], []>} : vector<12x448xbf16>, vector<448x384xbf16>, vector<12x384xf32> -> vector<12x384xf32>
    %38 = arith.addf %32, %37 : vector<12x384xf32>
    %39 = vector.extract_strided_slice %25 {offsets = [2, 0], sizes = [12, 448], strides = [1, 1]} : vector<14x448xf32> to vector<12x448xf32>
    %40 = arith.truncf %39 : vector<12x448xf32> to vector<12x448xbf16>
    %c2_24 = arith.constant 2 : index
    %c0_25 = arith.constant 0 : index
    %c0_26 = arith.constant 0 : index
    %41 = vector.load %arg4[%c2_24, %c0_25, %c0_26] : memref<3x448x384xbf16, #tpu.memory_space<vmem>>, vector<1x448x384xbf16>
    %42 = vector.shape_cast %41 : vector<1x448x384xbf16> to vector<448x384xbf16>
    %cst_27 = arith.constant dense<0.000000e+00> : vector<12x384xf32>
    %43 = tpu.matmul %40, %42, %cst_27 {dimension_numbers = #tpu.dot_dimension_numbers<[1], [0], [0], [1], [0, 0, 1, 1], [], []>} : vector<12x448xbf16>, vector<448x384xbf16>, vector<12x384xf32> -> vector<12x384xf32>
    %44 = arith.addf %38, %43 : vector<12x384xf32>
    %c0_28 = arith.constant 0 : index
    %c0_29 = arith.constant 0 : index
    %45 = vector.load %arg5[%c0_28, %c0_29] : memref<1x384xf32, #tpu.memory_space<vmem>>, vector<1x384xf32>
    %46 = vector.broadcast %45 : vector<1x384xf32> to vector<12x384xf32>
    %47 = arith.addf %44, %46 : vector<12x384xf32>
    %cst_30 = arith.constant 0.000000e+00 : f32
    %48 = vector.broadcast %cst_30 : f32 to vector<12x384xf32>
    %49 = arith.maximumf %47, %48 : vector<12x384xf32>
    %50 = vector.extract_strided_slice %49 {offsets = [0, 0], sizes = [11, 384], strides = [1, 1]} : vector<12x384xf32> to vector<11x384xf32>
    %51 = vector.extract_strided_slice %49 {offsets = [1, 0], sizes = [11, 384], strides = [1, 1]} : vector<12x384xf32> to vector<11x384xf32>
    %52 = arith.maximumf %50, %51 : vector<11x384xf32>
    %53 = vector.extract_strided_slice %52 {offsets = [0, 0], sizes = [11, 352], strides = [1, 1]} : vector<11x384xf32> to vector<11x352xf32>
    %54 = vector.extract_strided_slice %52 {offsets = [0, 32], sizes = [11, 352], strides = [1, 1]} : vector<11x384xf32> to vector<11x352xf32>
    %55 = arith.maximumf %53, %54 : vector<11x352xf32>
    %cst_31 = arith.constant 0.000000e+00 : f32
    %56 = vector.broadcast %cst_31 : f32 to vector<7x128xf32>
    %57 = vector.extract_strided_slice %55 {offsets = [0, 0], sizes = [7, 352], strides = [1, 1]} : vector<11x352xf32> to vector<7x352xf32>
    %58 = arith.truncf %57 : vector<7x352xf32> to vector<7x352xbf16>
    %c0_32 = arith.constant 0 : index
    %c0_33 = arith.constant 0 : index
    %c0_34 = arith.constant 0 : index
    %59 = vector.load %arg6[%c0_32, %c0_33, %c0_34] : memref<3x352x128xbf16, #tpu.memory_space<vmem>>, vector<1x352x128xbf16>
    %60 = vector.shape_cast %59 : vector<1x352x128xbf16> to vector<352x128xbf16>
    %cst_35 = arith.constant dense<0.000000e+00> : vector<7x128xf32>
    %61 = tpu.matmul %58, %60, %cst_35 {dimension_numbers = #tpu.dot_dimension_numbers<[1], [0], [0], [1], [0, 0, 1, 1], [], []>} : vector<7x352xbf16>, vector<352x128xbf16>, vector<7x128xf32> -> vector<7x128xf32>
    %62 = arith.addf %56, %61 : vector<7x128xf32>
    %63 = vector.extract_strided_slice %55 {offsets = [2, 0], sizes = [7, 352], strides = [1, 1]} : vector<11x352xf32> to vector<7x352xf32>
    %64 = arith.truncf %63 : vector<7x352xf32> to vector<7x352xbf16>
    %c1_36 = arith.constant 1 : index
    %c0_37 = arith.constant 0 : index
    %c0_38 = arith.constant 0 : index
    %65 = vector.load %arg6[%c1_36, %c0_37, %c0_38] : memref<3x352x128xbf16, #tpu.memory_space<vmem>>, vector<1x352x128xbf16>
    %66 = vector.shape_cast %65 : vector<1x352x128xbf16> to vector<352x128xbf16>
    %cst_39 = arith.constant dense<0.000000e+00> : vector<7x128xf32>
    %67 = tpu.matmul %64, %66, %cst_39 {dimension_numbers = #tpu.dot_dimension_numbers<[1], [0], [0], [1], [0, 0, 1, 1], [], []>} : vector<7x352xbf16>, vector<352x128xbf16>, vector<7x128xf32> -> vector<7x128xf32>
    %68 = arith.addf %62, %67 : vector<7x128xf32>
    %69 = vector.extract_strided_slice %55 {offsets = [4, 0], sizes = [7, 352], strides = [1, 1]} : vector<11x352xf32> to vector<7x352xf32>
    %70 = arith.truncf %69 : vector<7x352xf32> to vector<7x352xbf16>
    %c2_40 = arith.constant 2 : index
    %c0_41 = arith.constant 0 : index
    %c0_42 = arith.constant 0 : index
    %71 = vector.load %arg6[%c2_40, %c0_41, %c0_42] : memref<3x352x128xbf16, #tpu.memory_space<vmem>>, vector<1x352x128xbf16>
    %72 = vector.shape_cast %71 : vector<1x352x128xbf16> to vector<352x128xbf16>
    %cst_43 = arith.constant dense<0.000000e+00> : vector<7x128xf32>
    %73 = tpu.matmul %70, %72, %cst_43 {dimension_numbers = #tpu.dot_dimension_numbers<[1], [0], [0], [1], [0, 0, 1, 1], [], []>} : vector<7x352xbf16>, vector<352x128xbf16>, vector<7x128xf32> -> vector<7x128xf32>
    %74 = arith.addf %68, %73 : vector<7x128xf32>
    %c0_44 = arith.constant 0 : index
    %c0_45 = arith.constant 0 : index
    %75 = vector.load %arg7[%c0_44, %c0_45] : memref<1x128xf32, #tpu.memory_space<vmem>>, vector<1x128xf32>
    %76 = vector.broadcast %75 : vector<1x128xf32> to vector<7x128xf32>
    %77 = arith.addf %74, %76 : vector<7x128xf32>
    %cst_46 = arith.constant 0.000000e+00 : f32
    %78 = vector.broadcast %cst_46 : f32 to vector<7x128xf32>
    %79 = arith.maximumf %77, %78 : vector<7x128xf32>
    %c0_47 = arith.constant 0 : index
    %c0_48 = arith.constant 0 : index
    %80 = vector.load %arg9[%c0_47, %c0_48] : memref<1x16xf32, #tpu.memory_space<vmem>>, vector<1x16xf32>
    %81 = vector.extract_strided_slice %79 {offsets = [0, 0], sizes = [1, 128], strides = [1, 1]} : vector<7x128xf32> to vector<1x128xf32>
    %c0_49 = arith.constant 0 : index
    %c0_50 = arith.constant 0 : index
    %c0_51 = arith.constant 0 : index
    %82 = vector.load %arg8[%c0_49, %c0_50, %c0_51] : memref<4x128x16xf32, #tpu.memory_space<vmem>>, vector<1x128x16xf32>
    %83 = vector.shape_cast %82 : vector<1x128x16xf32> to vector<128x16xf32>
    %cst_52 = arith.constant dense<0.000000e+00> : vector<1x16xf32>
    %84 = tpu.matmul %81, %83, %cst_52 {dimension_numbers = #tpu.dot_dimension_numbers<[1], [0], [0], [1], [0, 0, 1, 1], [], []>} : vector<1x128xf32>, vector<128x16xf32>, vector<1x16xf32> -> vector<1x16xf32>
    %85 = arith.addf %80, %84 : vector<1x16xf32>
    %86 = vector.extract_strided_slice %79 {offsets = [2, 0], sizes = [1, 128], strides = [1, 1]} : vector<7x128xf32> to vector<1x128xf32>
    %c1_53 = arith.constant 1 : index
    %c0_54 = arith.constant 0 : index
    %c0_55 = arith.constant 0 : index
    %87 = vector.load %arg8[%c1_53, %c0_54, %c0_55] : memref<4x128x16xf32, #tpu.memory_space<vmem>>, vector<1x128x16xf32>
    %88 = vector.shape_cast %87 : vector<1x128x16xf32> to vector<128x16xf32>
    %cst_56 = arith.constant dense<0.000000e+00> : vector<1x16xf32>
    %89 = tpu.matmul %86, %88, %cst_56 {dimension_numbers = #tpu.dot_dimension_numbers<[1], [0], [0], [1], [0, 0, 1, 1], [], []>} : vector<1x128xf32>, vector<128x16xf32>, vector<1x16xf32> -> vector<1x16xf32>
    %90 = arith.addf %85, %89 : vector<1x16xf32>
    %91 = vector.extract_strided_slice %79 {offsets = [4, 0], sizes = [1, 128], strides = [1, 1]} : vector<7x128xf32> to vector<1x128xf32>
    %c2_57 = arith.constant 2 : index
    %c0_58 = arith.constant 0 : index
    %c0_59 = arith.constant 0 : index
    %92 = vector.load %arg8[%c2_57, %c0_58, %c0_59] : memref<4x128x16xf32, #tpu.memory_space<vmem>>, vector<1x128x16xf32>
    %93 = vector.shape_cast %92 : vector<1x128x16xf32> to vector<128x16xf32>
    %cst_60 = arith.constant dense<0.000000e+00> : vector<1x16xf32>
    %94 = tpu.matmul %91, %93, %cst_60 {dimension_numbers = #tpu.dot_dimension_numbers<[1], [0], [0], [1], [0, 0, 1, 1], [], []>} : vector<1x128xf32>, vector<128x16xf32>, vector<1x16xf32> -> vector<1x16xf32>
    %95 = arith.addf %90, %94 : vector<1x16xf32>
    %96 = vector.extract_strided_slice %79 {offsets = [6, 0], sizes = [1, 128], strides = [1, 1]} : vector<7x128xf32> to vector<1x128xf32>
    %c3 = arith.constant 3 : index
    %c0_61 = arith.constant 0 : index
    %c0_62 = arith.constant 0 : index
    %97 = vector.load %arg8[%c3, %c0_61, %c0_62] : memref<4x128x16xf32, #tpu.memory_space<vmem>>, vector<1x128x16xf32>
    %98 = vector.shape_cast %97 : vector<1x128x16xf32> to vector<128x16xf32>
    %cst_63 = arith.constant dense<0.000000e+00> : vector<1x16xf32>
    %99 = tpu.matmul %96, %98, %cst_63 {dimension_numbers = #tpu.dot_dimension_numbers<[1], [0], [0], [1], [0, 0, 1, 1], [], []>} : vector<1x128xf32>, vector<128x16xf32>, vector<1x16xf32> -> vector<1x16xf32>
    %100 = arith.addf %95, %99 : vector<1x16xf32>
    %cst_64 = arith.constant 0.000000e+00 : f32
    %101 = vector.broadcast %cst_64 : f32 to vector<1x16xf32>
    %102 = arith.maximumf %100, %101 : vector<1x16xf32>
    %c0_65 = arith.constant 0 : index
    %c0_66 = arith.constant 0 : index
    %103 = vector.load %arg10[%c0_65, %c0_66] : memref<16x2xf32, #tpu.memory_space<vmem>>, vector<16x2xf32>
    %cst_67 = arith.constant dense<0.000000e+00> : vector<1x2xf32>
    %104 = tpu.matmul %102, %103, %cst_67 {dimension_numbers = #tpu.dot_dimension_numbers<[1], [0], [0], [1], [0, 0, 1, 1], [], []>} : vector<1x16xf32>, vector<16x2xf32>, vector<1x2xf32> -> vector<1x2xf32>
    %c0_68 = arith.constant 0 : index
    %c0_69 = arith.constant 0 : index
    %105 = vector.load %arg11[%c0_68, %c0_69] : memref<1x2xf32, #tpu.memory_space<vmem>>, vector<1x2xf32>
    %106 = arith.addf %104, %105 : vector<1x2xf32>
    %cst_70 = arith.constant dense<0xFF800000> : vector<1xf32>
    %107 = vector.multi_reduction <maximumf>, %106, %cst_70 [1] : vector<1x2xf32> to vector<1xf32>
    %108 = vector.shape_cast %107 : vector<1xf32> to vector<1x1xf32>
    %109 = vector.broadcast %108 : vector<1x1xf32> to vector<1x2xf32>
    %110 = arith.subf %106, %109 : vector<1x2xf32>
    %111 = math.exp %110 : vector<1x2xf32>
    %cst_71 = arith.constant dense<0.000000e+00> : vector<1xf32>
    %112 = vector.multi_reduction <add>, %111, %cst_71 [1] : vector<1x2xf32> to vector<1xf32>
    %113 = vector.shape_cast %112 : vector<1xf32> to vector<1x1xf32>
    %114 = math.log %113 : vector<1x1xf32>
    %115 = arith.addf %108, %114 : vector<1x1xf32>
    %116 = vector.broadcast %115 : vector<1x1xf32> to vector<1x2xf32>
    %117 = arith.subf %106, %116 : vector<1x2xf32>
    %c0_72 = arith.constant 0 : index
    %c0_73 = arith.constant 0 : index
    %c0_74 = arith.constant 0 : index
    %118 = vector.load %arg12[%c0_72, %c0_73, %c0_74] : memref<1x1x2xf32, #tpu.memory_space<vmem>>, vector<1x1x2xf32>
    %119 = vector.shape_cast %118 : vector<1x1x2xf32> to vector<1x2xf32>
    %120 = vector.shape_cast %117 : vector<1x2xf32> to vector<1x1x2xf32>
    tpu.vector_store %arg12[%c0_72, %c0_73, %c0_74], %120 {strides = array<i32>} : memref<1x1x2xf32, #tpu.memory_space<vmem>>, vector<1x1x2xf32>,
    return
  }
  func.func @transform_0(%arg0: i32) -> (i32, i32, i32) {
    %c0_i32 = arith.constant 0 : i32
    %c0_i32_0 = arith.constant 0 : i32
    %c0_i32_1 = arith.constant 0 : i32
    return %arg0, %c0_i32, %c0_i32_0 : i32, i32, i32
  }
  func.func @transform_1(%arg0: i32) -> (i32, i32, i32) {
    %c0_i32 = arith.constant 0 : i32
    %c0_i32_0 = arith.constant 0 : i32
    %c0_i32_1 = arith.constant 0 : i32
    %c0_i32_2 = arith.constant 0 : i32
    return %c0_i32, %c0_i32_0, %c0_i32_1 : i32, i32, i32
  }
  func.func @transform_2(%arg0: i32) -> (i32, i32) {
    %c0_i32 = arith.constant 0 : i32
    %c0_i32_0 = arith.constant 0 : i32
    %c0_i32_1 = arith.constant 0 : i32
    return %c0_i32, %c0_i32_0 : i32, i32
  }
  func.func @transform_3(%arg0: i32) -> (i32, i32, i32) {
    %c0_i32 = arith.constant 0 : i32
    %c0_i32_0 = arith.constant 0 : i32
    %c0_i32_1 = arith.constant 0 : i32
    %c0_i32_2 = arith.constant 0 : i32
    return %c0_i32, %c0_i32_0, %c0_i32_1 : i32, i32, i32
  }
  func.func @transform_4(%arg0: i32) -> (i32, i32) {
    %c0_i32 = arith.constant 0 : i32
    %c0_i32_0 = arith.constant 0 : i32
    %c0_i32_1 = arith.constant 0 : i32
    return %c0_i32, %c0_i32_0 : i32, i32
  }
  func.func @transform_5(%arg0: i32) -> (i32, i32, i32) {
    %c0_i32 = arith.constant 0 : i32
    %c0_i32_0 = arith.constant 0 : i32
    %c0_i32_1 = arith.constant 0 : i32
    %c0_i32_2 = arith.constant 0 : i32
    return %c0_i32, %c0_i32_0, %c0_i32_1 : i32, i32, i32
  }
  func.func @transform_6(%arg0: i32) -> (i32, i32) {
    %c0_i32 = arith.constant 0 : i32
    %c0_i32_0 = arith.constant 0 : i32
    %c0_i32_1 = arith.constant 0 : i32
    return %c0_i32, %c0_i32_0 : i32, i32
  }
  func.func @transform_7(%arg0: i32) -> (i32, i32, i32) {
    %c0_i32 = arith.constant 0 : i32
    %c0_i32_0 = arith.constant 0 : i32
    %c0_i32_1 = arith.constant 0 : i32
    %c0_i32_2 = arith.constant 0 : i32
    return %c0_i32, %c0_i32_0, %c0_i32_1 : i32, i32, i32
  }
  func.func @transform_8(%arg0: i32) -> (i32, i32) {
    %c0_i32 = arith.constant 0 : i32
    %c0_i32_0 = arith.constant 0 : i32
    %c0_i32_1 = arith.constant 0 : i32
    return %c0_i32, %c0_i32_0 : i32, i32
  }
  func.func @transform_9(%arg0: i32) -> (i32, i32) {
    %c0_i32 = arith.constant 0 : i32
    %c0_i32_0 = arith.constant 0 : i32
    %c0_i32_1 = arith.constant 0 : i32
    return %c0_i32, %c0_i32_0 : i32, i32
  }
  func.func @transform_10(%arg0: i32) -> (i32, i32) {
    %c0_i32 = arith.constant 0 : i32
    %c0_i32_0 = arith.constant 0 : i32
    %c0_i32_1 = arith.constant 0 : i32
    return %c0_i32, %c0_i32_0 : i32, i32
  }
  func.func @transform_11(%arg0: i32) -> (i32, i32, i32) {
    %c0_i32 = arith.constant 0 : i32
    %c0_i32_0 = arith.constant 0 : i32
    %c0_i32_1 = arith.constant 0 : i32
    return %arg0, %c0_i32, %c0_i32_0 : i32, i32, i32
  }
}

</mosaic_0001>

<llo_original>
// kernel: net_forward.1
$region0: #{net_forward.1}
  #allocation0 [shape = 'u32[]', space=smem, size = 0x4, offset = 0x4, fixed_abs, tag = 'smem constant byte address 0x4 - core index']
  #allocation1 [shape = 'u32[144,128]{1,0:T(1,128)}', space=vmem, size = 0x12000, scoped, tag = 'internal scratch']
  %s0 = inlined_call_operand.vmem [shape: f32[2,16,16], index: 0, kind: input, shape index: {}]
  %s1 = inlined_call_operand.hbm [shape: bf16[3,16,448], index: 1, kind: input, shape index: {}]
  %s2 = inlined_call_operand.vmem [shape: f32[1,448], index: 2, kind: input, shape index: {}]
  %s3 = inlined_call_operand.hbm [shape: bf16[3,448,384], index: 3, kind: input, shape index: {}]
  %s4 = inlined_call_operand.vmem [shape: f32[1,384], index: 4, kind: input, shape index: {}]
  %s5 = inlined_call_operand.vmem [shape: bf16[3,352,128], index: 5, kind: input, shape index: {}]
  %s6 = inlined_call_operand.vmem [shape: f32[1,128], index: 6, kind: input, shape index: {}]
  %s7 = inlined_call_operand.vmem [shape: f32[4,128,16], index: 7, kind: input, shape index: {}]
  %s8 = inlined_call_operand.vmem [shape: f32[1,16], index: 8, kind: input, shape index: {}]
  %s9 = inlined_call_operand.vmem [shape: f32[16,2], index: 9, kind: input, shape index: {}]
  %s10 = inlined_call_operand.vmem [shape: f32[1,2], index: 10, kind: input, shape index: {}]
  %s11 = inlined_call_operand.hbm [shape: f32[2,1,2], index: 11, kind: output, shape index: {}]
  %s12 = sld [smem:[#allocation0]]
  $region85: #{net_forward.1} parent=0
    _
  %s14 = ssub.s32 1, %s12
  %s15 = scalar_select 0, %s14, %s12
  $region1: #{net_forward.1} parent=0
    #allocation2 [shape = 'u8[49152]{0}', space=vmem, size = 0xc000, scoped, tag = 'input window, operand 1, single buffered']
    #allocation3 [shape = 's32[2]{0}', space=sflag, size = 0x8, scoped, tag = 'scoped memory for net_forward.1']
    #allocation4 [shape = 's32[2]{0}', space=sflag, size = 0x8, scoped, tag = 'scoped memory for net_forward.1']
    #allocation5 [shape = 'u8[1032192]{0}', space=vmem, size = 0xfc000, scoped, tag = 'input window, operand 3, single buffered']
    #allocation6 [shape = 's32[1]{0}', space=sflag, size = 0x4, scoped, tag = 'scoped memory for net_forward.1']
    #allocation7 [shape = 'u8[1024]{0}', space=vmem, size = 0x400, scoped, tag = 'output window, operand 0']
    %16 = vsyncpa [#allocation3], 0
    %17 = vsyncpa [#allocation6], 0
    %18 = vsyncpa [#allocation4], 0
    %s19 = scalar_lea.sflag [#allocation4], 1
    %20 = vsyncpa %s19, 0
    loop: start=0, step=1, limit=4
    $region2: #{net_forward.1} parent=1 // loop_pre_header
      _
    $region3: #{net_forward.1} parent=1 // loop_header
      %s22 = sphi 0, %s26
      %p23 = scmp.ge.s32.totalorder %s22, 4
      %s32 = sphi 0, %s34
      %s35 = sphi 0, %s32
      %s36 = sphi 0, %s35
      %s52 = sphi 0, %s36
      %s56 = sphi 0, %s56
      %s58 = sphi 0, %s56
      %s59 = sphi 0, %s58
      %s73 = sphi 0, %s59
      %s77 = sphi 0, %s77
      %s79 = sphi 0, %s77
      %s80 = sphi 0, %s79
      %s94 = sphi 0, %s80
      %s98 = sphi 0, %s98
      %s100 = sphi 0, %s98
      %s101 = sphi 0, %s100
      %s115 = sphi 0, %s101
      %s119 = sphi 0, %s119
      %s121 = sphi 0, %s119
      %s122 = sphi 0, %s121
      %s136 = sphi 0, %s122
      %s140 = sphi 0, %s140
      %s142 = sphi 0, %s140
      %s143 = sphi 0, %s142
      %s157 = sphi 0, %s143
      %s161 = sphi 0, %s161
      %s163 = sphi 0, %s161
      %s164 = sphi 0, %s163
      %s178 = sphi 0, %s164
      %s182 = sphi 0, %s182
      %s184 = sphi 0, %s182
      %s185 = sphi 0, %s184
      %s199 = sphi 0, %s185
      %s203 = sphi 0, %s203
      %s205 = sphi 0, %s203
      %s206 = sphi 0, %s205
      %s220 = sphi 0, %s206
      %s224 = sphi 0, %s224
      %s226 = sphi 0, %s224
      %s227 = sphi 0, %s226
      %s241 = sphi 0, %s227
      %s245 = sphi 0, %s245
      %s247 = sphi 0, %s245
      %s248 = sphi 0, %s247
      %s262 = sphi 0, %s248
      %s268 = sphi 0, %s270
      %s271 = sphi 0, %s268
      %s272 = sphi 0, %s271
      %s288 = sphi 0, %s272
    $region4: #{net_forward.1} parent=1 // loop_header_branch
      %25 = sbr.rel (%p23) target = $region8
    $region5: #{net_forward.1} parent=1 // loop_body
      %s27 = ssub.s32 %s22, 1
      %s28 = ssub.s32 %s22, 2
      %s29 = sadd.s32 %s22, 1
      %s30 = ssub.s32 %s22, %s29
      %p31 = scmp.eq.s32.totalorder %s30, 0
      %s33 = sadd.s32 %s32, 1
      %s34 = scalar_select %p31, %s32, %s33
      %p37 = pneg %p31
      %p38 = scmp.eq.s32.totalorder %s22, 1
      %p39 = por %p37, %p38
      %p40 = scmp.ne.s32.totalorder %s32, %s35
      %p41 = scmp.eq.s32.totalorder %s22, 0
      %p42 = por %p40, %p41
      %p43 = scmp.ne.s32.totalorder %s32, %s35
      %p44 = scmp.eq.s32.totalorder %s27, 1
      %p45 = por %p43, %p44
      %p46 = scmp.ne.s32.totalorder %s35, %s36
      %p47 = scmp.eq.s32.totalorder %s27, 0
      %p48 = por %p46, %p47
      %p49 = scmp.ne.s32.totalorder %s35, %s36
      %p50 = scmp.eq.s32.totalorder %s28, 1
      %p51 = por %p49, %p50
      %p53 = scmp.ne.s32.totalorder %s36, %s52
      %p54 = scmp.eq.s32.totalorder %s28, 0
      %p55 = por %p53, %p54
      %s57 = sadd.s32 %s56, 1
      %p60 = scmp.eq.s32.totalorder %s22, 1
      %p61 = scmp.ne.s32.totalorder %s56, %s58
      %p62 = scmp.eq.s32.totalorder %s22, 0
      %p63 = por %p61, %p62
      %p64 = scmp.ne.s32.totalorder %s56, %s58
      %p65 = scmp.eq.s32.totalorder %s27, 1
      %p66 = por %p64, %p65
      %p67 = scmp.ne.s32.totalorder %s58, %s59
      %p68 = scmp.eq.s32.totalorder %s27, 0
      %p69 = por %p67, %p68
      %p70 = scmp.ne.s32.totalorder %s58, %s59
      %p71 = scmp.eq.s32.totalorder %s28, 1
      %p72 = por %p70, %p71
      %p74 = scmp.ne.s32.totalorder %s59, %s73
      %p75 = scmp.eq.s32.totalorder %s28, 0
      %p76 = por %p74, %p75
      %s78 = sadd.s32 %s77, 1
      %p81 = scmp.eq.s32.totalorder %s22, 1
      %p82 = scmp.ne.s32.totalorder %s77, %s79
      %p83 = scmp.eq.s32.totalorder %s22, 0
      %p84 = por %p82, %p83
      %p85 = scmp.ne.s32.totalorder %s77, %s79
      %p86 = scmp.eq.s32.totalorder %s27, 1
      %p87 = por %p85, %p86
      %p88 = scmp.ne.s32.totalorder %s79, %s80
      %p89 = scmp.eq.s32.totalorder %s27, 0
      %p90 = por %p88, %p89
      %p91 = scmp.ne.s32.totalorder %s79, %s80
      %p92 = scmp.eq.s32.totalorder %s28, 1
      %p93 = por %p91, %p92
      %p95 = scmp.ne.s32.totalorder %s80, %s94
      %p96 = scmp.eq.s32.totalorder %s28, 0
      %p97 = por %p95, %p96
      %s99 = sadd.s32 %s98, 1
      %p102 = scmp.eq.s32.totalorder %s22, 1
      %p103 = scmp.ne.s32.totalorder %s98, %s100
      %p104 = scmp.eq.s32.totalorder %s22, 0
      %p105 = por %p103, %p104
      %p106 = scmp.ne.s32.totalorder %s98, %s100
      %p107 = scmp.eq.s32.totalorder %s27, 1
      %p108 = por %p106, %p107
      %p109 = scmp.ne.s32.totalorder %s100, %s101
      %p110 = scmp.eq.s32.totalorder %s27, 0
      %p111 = por %p109, %p110
      %p112 = scmp.ne.s32.totalorder %s100, %s101
      %p113 = scmp.eq.s32.totalorder %s28, 1
      %p114 = por %p112, %p113
      %p116 = scmp.ne.s32.totalorder %s101, %s115
      %p117 = scmp.eq.s32.totalorder %s28, 0
      %p118 = por %p116, %p117
      %s120 = sadd.s32 %s119, 1
      %p123 = scmp.eq.s32.totalorder %s22, 1
      %p124 = scmp.ne.s32.totalorder %s119, %s121
      %p125 = scmp.eq.s32.totalorder %s22, 0
      %p126 = por %p124, %p125
      %p127 = scmp.ne.s32.totalorder %s119, %s121
      %p128 = scmp.eq.s32.totalorder %s27, 1
      %p129 = por %p127, %p128
      %p130 = scmp.ne.s32.totalorder %s121, %s122
      %p131 = scmp.eq.s32.totalorder %s27, 0
      %p132 = por %p130, %p131
      %p133 = scmp.ne.s32.totalorder %s121, %s122
      %p134 = scmp.eq.s32.totalorder %s28, 1
      %p135 = por %p133, %p134
      %p137 = scmp.ne.s32.totalorder %s122, %s136
      %p138 = scmp.eq.s32.totalorder %s28, 0
      %p139 = por %p137, %p138
      %s141 = sadd.s32 %s140, 1
      %p144 = scmp.eq.s32.totalorder %s22, 1
      %p145 = scmp.ne.s32.totalorder %s140, %s142
      %p146 = scmp.eq.s32.totalorder %s22, 0
      %p147 = por %p145, %p146
      %p148 = scmp.ne.s32.totalorder %s140, %s142
      %p149 = scmp.eq.s32.totalorder %s27, 1
      %p150 = por %p148, %p149
      %p151 = scmp.ne.s32.totalorder %s142, %s143
      %p152 = scmp.eq.s32.totalorder %s27, 0
      %p153 = por %p151, %p152
      %p154 = scmp.ne.s32.totalorder %s142, %s143
      %p155 = scmp.eq.s32.totalorder %s28, 1
      %p156 = por %p154, %p155
      %p158 = scmp.ne.s32.totalorder %s143, %s157
      %p159 = scmp.eq.s32.totalorder %s28, 0
      %p160 = por %p158, %p159
      %s162 = sadd.s32 %s161, 1
      %p165 = scmp.eq.s32.totalorder %s22, 1
      %p166 = scmp.ne.s32.totalorder %s161, %s163
      %p167 = scmp.eq.s32.totalorder %s22, 0
      %p168 = por %p166, %p167
      %p169 = scmp.ne.s32.totalorder %s161, %s163
      %p170 = scmp.eq.s32.totalorder %s27, 1
      %p171 = por %p169, %p170
      %p172 = scmp.ne.s32.totalorder %s163, %s164
      %p173 = scmp.eq.s32.totalorder %s27, 0
      %p174 = por %p172, %p173
      %p175 = scmp.ne.s32.totalorder %s163, %s164
      %p176 = scmp.eq.s32.totalorder %s28, 1
      %p177 = por %p175, %p176
      %p179 = scmp.ne.s32.totalorder %s164, %s178
      %p180 = scmp.eq.s32.totalorder %s28, 0
      %p181 = por %p179, %p180
      %s183 = sadd.s32 %s182, 1
      %p186 = scmp.eq.s32.totalorder %s22, 1
      %p187 = scmp.ne.s32.totalorder %s182, %s184
      %p188 = scmp.eq.s32.totalorder %s22, 0
      %p189 = por %p187, %p188
      %p190 = scmp.ne.s32.totalorder %s182, %s184
      %p191 = scmp.eq.s32.totalorder %s27, 1
      %p192 = por %p190, %p191
      %p193 = scmp.ne.s32.totalorder %s184, %s185
      %p194 = scmp.eq.s32.totalorder %s27, 0
      %p195 = por %p193, %p194
      %p196 = scmp.ne.s32.totalorder %s184, %s185
      %p197 = scmp.eq.s32.totalorder %s28, 1
      %p198 = por %p196, %p197
      %p200 = scmp.ne.s32.totalorder %s185, %s199
      %p201 = scmp.eq.s32.totalorder %s28, 0
      %p202 = por %p200, %p201
      %s204 = sadd.s32 %s203, 1
      %p207 = scmp.eq.s32.totalorder %s22, 1
      %p208 = scmp.ne.s32.totalorder %s203, %s205
      %p209 = scmp.eq.s32.totalorder %s22, 0
      %p210 = por %p208, %p209
      %p211 = scmp.ne.s32.totalorder %s203, %s205
      %p212 = scmp.eq.s32.totalorder %s27, 1
      %p213 = por %p211, %p212
      %p214 = scmp.ne.s32.totalorder %s205, %s206
      %p215 = scmp.eq.s32.totalorder %s27, 0
      %p216 = por %p214, %p215
      %p217 = scmp.ne.s32.totalorder %s205, %s206
      %p218 = scmp.eq.s32.totalorder %s28, 1
      %p219 = por %p217, %p218
      %p221 = scmp.ne.s32.totalorder %s206, %s220
      %p222 = scmp.eq.s32.totalorder %s28, 0
      %p223 = por %p221, %p222
      %s225 = sadd.s32 %s224, 1
      %p228 = scmp.eq.s32.totalorder %s22, 1
      %p229 = scmp.ne.s32.totalorder %s224, %s226
      %p230 = scmp.eq.s32.totalorder %s22, 0
      %p231 = por %p229, %p230
      %p232 = scmp.ne.s32.totalorder %s224, %s226
      %p233 = scmp.eq.s32.totalorder %s27, 1
      %p234 = por %p232, %p233
      %p235 = scmp.ne.s32.totalorder %s226, %s227
      %p236 = scmp.eq.s32.totalorder %s27, 0
      %p237 = por %p235, %p236
      %p238 = scmp.ne.s32.totalorder %s226, %s227
      %p239 = scmp.eq.s32.totalorder %s28, 1
      %p240 = por %p238, %p239
      %p242 = scmp.ne.s32.totalorder %s227, %s241
      %p243 = scmp.eq.s32.totalorder %s28, 0
      %p244 = por %p242, %p243
      %s246 = sadd.s32 %s245, 1
      %p249 = scmp.eq.s32.totalorder %s22, 1
      %p250 = scmp.ne.s32.totalorder %s245, %s247
      %p251 = scmp.eq.s32.totalorder %s22, 0
      %p252 = por %p250, %p251
      %p253 = scmp.ne.s32.totalorder %s245, %s247
      %p254 = scmp.eq.s32.totalorder %s27, 1
      %p255 = por %p253, %p254
      %p256 = scmp.ne.s32.totalorder %s247, %s248
      %p257 = scmp.eq.s32.totalorder %s27, 0
      %p258 = por %p256, %p257
      %p259 = scmp.ne.s32.totalorder %s247, %s248
      %p260 = scmp.eq.s32.totalorder %s28, 1
      %p261 = por %p259, %p260
      %p263 = scmp.ne.s32.totalorder %s248, %s262
      %p264 = scmp.eq.s32.totalorder %s28, 0
      %p265 = por %p263, %p264
      %s266 = ssub.s32 %s22, %s29
      %p267 = scmp.eq.s32.totalorder %s266, 0
      %s269 = sadd.s32 %s268, 1
      %s270 = scalar_select %p267, %s268, %s269
      %p273 = pneg %p267
      %p274 = scmp.eq.s32.totalorder %s22, 1
      %p275 = por %p273, %p274
      %p276 = scmp.ne.s32.totalorder %s268, %s271
      %p277 = scmp.eq.s32.totalorder %s22, 0
      %p278 = por %p276, %p277
      %p279 = scmp.ne.s32.totalorder %s268, %s271
      %p280 = scmp.eq.s32.totalorder %s27, 1
      %p281 = por %p279, %p280
      %p282 = scmp.ne.s32.totalorder %s271, %s272
      %p283 = scmp.eq.s32.totalorder %s27, 0
      %p284 = por %p282, %p283
      %p285 = scmp.ne.s32.totalorder %s271, %s272
      %p286 = scmp.eq.s32.totalorder %s28, 1
      %p287 = por %p285, %p286
      %p289 = scmp.ne.s32.totalorder %s272, %s288
      %p290 = scmp.eq.s32.totalorder %s28, 0
      %p291 = por %p289, %p290
      %p292 = scmp.le.s32.totalorder 1, %s22
      %p293 = scmp.lt.s32.totalorder %s22, 3
      %p294 = pnand %p292, %p293
      %p295 = pneg %p294
      // Predicated region
      $region9: #{net_forward.1} parent=5 // pred_check
        _
      $region10: #{net_forward.1} parent=5 // pred_check_branch
        %297 = sbr.rel (%p294) target = $region12
      $region11: #{net_forward.1} parent=5 // pred_region
        %s298 = ssub.s32 %s22, 1
        // Predicated region
        $region13: #{net_forward.1} parent=11 // pred_check
          %p299 = pneg %p69
        $region14: #{net_forward.1} parent=11 // pred_check_branch
          %301 = sbr.rel (%p299) target = $region16
        $region15: #{net_forward.1} parent=11 // pred_region
          %s303 = ssub.s32 1536, 1536
          %304 = vsyncadd [#allocation3], %s303
          %s305 = sshll.u32 [#allocation2], 4
          %s306 = int_to_ptr.vmem [resolvable:$true] %s305
          %311 = dma.hbm_to_vmem [thread:$0]  %s1, 1536, %s306, [#allocation3], 256, 256, 16
        $region16: #{net_forward.1} parent=11 // pred_fallthru
          _
        // Predicated region
        $region17: #{net_forward.1} parent=11 // pred_check
          %p312 = pneg %p90
        $region18: #{net_forward.1} parent=11 // pred_check_branch
          %314 = sbr.rel (%p312) target = $region20
        $region19: #{net_forward.1} parent=11 // pred_region
          _
        $region20: #{net_forward.1} parent=11 // pred_fallthru
          _
        // Predicated region
        $region21: #{net_forward.1} parent=11 // pred_check
          %p315 = pneg %p111
        $region22: #{net_forward.1} parent=11 // pred_check_branch
          %317 = sbr.rel (%p315) target = $region24
        $region23: #{net_forward.1} parent=11 // pred_region
          %s319 = ssub.s32 32256, 32256
          %320 = vsyncadd [#allocation6], %s319
          %s321 = sshll.u32 [#allocation5], 4
          %s322 = int_to_ptr.vmem [resolvable:$true] %s321
          %327 = dma.hbm_to_vmem [thread:$0]  %s3, 32256, %s322, [#allocation6], 192, 192, 12
        $region24: #{net_forward.1} parent=11 // pred_fallthru
          _
        // Predicated region
        $region25: #{net_forward.1} parent=11 // pred_check
          %p328 = pneg %p132
        $region26: #{net_forward.1} parent=11 // pred_check_branch
          %330 = sbr.rel (%p328) target = $region28
        $region27: #{net_forward.1} parent=11 // pred_region
          _
        $region28: #{net_forward.1} parent=11 // pred_fallthru
          _
        // Predicated region
        $region29: #{net_forward.1} parent=11 // pred_check
          %p331 = pneg %p153
        $region30: #{net_forward.1} parent=11 // pred_check_branch
          %333 = sbr.rel (%p331) target = $region32
        $region31: #{net_forward.1} parent=11 // pred_region
          _
        $region32: #{net_forward.1} parent=11 // pred_fallthru
          _
        // Predicated region
        $region33: #{net_forward.1} parent=11 // pred_check
          %p334 = pneg %p174
        $region34: #{net_forward.1} parent=11 // pred_check_branch
          %336 = sbr.rel (%p334) target = $region36
        $region35: #{net_forward.1} parent=11 // pred_region
          _
        $region36: #{net_forward.1} parent=11 // pred_fallthru
          _
        // Predicated region
        $region37: #{net_forward.1} parent=11 // pred_check
          %p337 = pneg %p195
        $region38: #{net_forward.1} parent=11 // pred_check_branch
          %339 = sbr.rel (%p337) target = $region40
        $region39: #{net_forward.1} parent=11 // pred_region
          _
        $region40: #{net_forward.1} parent=11 // pred_fallthru
          _
        // Predicated region
        $region41: #{net_forward.1} parent=11 // pred_check
          %p340 = pneg %p216
        $region42: #{net_forward.1} parent=11 // pred_check_branch
          %342 = sbr.rel (%p340) target = $region44
        $region43: #{net_forward.1} parent=11 // pred_region
          _
        $region44: #{net_forward.1} parent=11 // pred_fallthru
          _
        // Predicated region
        $region45: #{net_forward.1} parent=11 // pred_check
          %p343 = pneg %p237
        $region46: #{net_forward.1} parent=11 // pred_check_branch
          %345 = sbr.rel (%p343) target = $region48
        $region47: #{net_forward.1} parent=11 // pred_region
          _
        $region48: #{net_forward.1} parent=11 // pred_fallthru
          _
        // Predicated region
        $region49: #{net_forward.1} parent=11 // pred_check
          %p346 = pneg %p258
        $region50: #{net_forward.1} parent=11 // pred_check_branch
          %348 = sbr.rel (%p346) target = $region52
        $region51: #{net_forward.1} parent=11 // pred_region
          _
        $region52: #{net_forward.1} parent=11 // pred_fallthru
          _
      $region12: #{net_forward.1} parent=5 // pred_fallthru
        _
      %p349 = scmp.lt.s32.totalorder %s22, 2
      // Predicated region
      $region53: #{net_forward.1} parent=5 // pred_check
        %p350 = pneg %p349
      $region54: #{net_forward.1} parent=5 // pred_check_branch
        %352 = sbr.rel (%p350) target = $region56
      $region55: #{net_forward.1} parent=5 // pred_region
        // Predicated region
        $region57: #{net_forward.1} parent=55 // pred_check
          %p353 = pneg %p42
        $region58: #{net_forward.1} parent=55 // pred_check_branch
          %355 = sbr.rel (%p353) target = $region60
        $region59: #{net_forward.1} parent=55 // pred_region
          %p356 = scmp.lt.s32.totalorder %s22, 1
          %s357 = scalar_select %p356, %s22, 1
          %s358 = smul.addr %s357, 2
          %s359 = smul.addr %s358, 8
          %s360 = scalar_lea.vmem %s0, %s359
        $region60: #{net_forward.1} parent=55 // pred_fallthru
          _
      $region56: #{net_forward.1} parent=5 // pred_fallthru
        _
      %p361 = scmp.le.s32.totalorder 1, %s22
      %p362 = scmp.lt.s32.totalorder %s22, 3
      %p363 = pnand %p361, %p362
      %p364 = pneg %p363
      // Predicated region
      $region61: #{net_forward.1} parent=5 // pred_check
        _
      $region62: #{net_forward.1} parent=5 // pred_check_branch
        %366 = sbr.rel (%p363) target = $region64
      $region63: #{net_forward.1} parent=5 // pred_region
        %s367 = ssub.s32 %s22, 1
        // Predicated region
        $region65: #{net_forward.1} parent=63 // pred_check
          %p368 = pneg %p69
        $region66: #{net_forward.1} parent=63 // pred_check_branch
          %370 = sbr.rel (%p368) target = $region68
        $region67: #{net_forward.1} parent=63 // pred_region
          %371 = dma.done [#allocation3], 1536
        $region68: #{net_forward.1} parent=63 // pred_fallthru
          _
        // Predicated region
        $region69: #{net_forward.1} parent=63 // pred_check
          %p372 = pneg %p111
        $region70: #{net_forward.1} parent=63 // pred_check_branch
          %374 = sbr.rel (%p372) target = $region72
        $region71: #{net_forward.1} parent=63 // pred_region
          %375 = dma.done [#allocation6], 32256
        $region72: #{net_forward.1} parent=63 // pred_fallthru
          _
        %p376 = scmp.lt.s32.totalorder %s27, 1
        %s377 = scalar_select %p376, %s27, 1
        %s378 = smul.addr %s377, 2
        %s379 = smul.addr %s378, 8
        %s380 = scalar_lea.vmem %s0, %s379
        %p381 = pneg %p48
        %p382 = pneg %p45
        %p383 = pneg %p69
        %p384 = pneg %p66
        %p385 = pneg %p90
        %p386 = pneg %p87
        %p387 = pneg %p111
        %p388 = pneg %p108
        %p389 = pneg %p132
        %p390 = pneg %p129
        %p391 = pneg %p153
        %p392 = pneg %p150
        %p393 = pneg %p174
        %p394 = pneg %p171
        %p395 = pneg %p195
        %p396 = pneg %p192
        %p397 = pneg %p216
        %p398 = pneg %p213
        %p399 = pneg %p237
        %p400 = pneg %p234
        %p401 = pneg %p258
        %p402 = pneg %p255
        %p403 = pneg %p284
        %p404 = pneg %p281
        %s405 = sand.u32 %s271, 1
        %s406 = scalar_lea.sflag [#allocation4], %s405
        %s407 = sand.u32 %s271, 1
        %s408 = scalar_lea.vmem [#allocation7], %s407
        %p409 = scmp.lt.s32.totalorder %s27, 1
        %s410 = scalar_select %p409, %s27, 1
        %s411 = smul.addr %s410, 2
        %s412 = smul.addr %s411, 8
        %s413 = scalar_lea.vmem %s0, %s412
        %v415 = vld [vmem:[%s413] sm:$0xff]
        %v416 = vld [vmem:[%s413 + $0x8] sm:$0xff]
        %v417 = vpack.c.bf16 %v416, %v415
        %v418 = vld [vmem:[#allocation2] sm:$0xff]
        %v419 = vld [vmem:[#allocation2 + $0x8] sm:$0xff]
        %v420 = vld [vmem:[#allocation2 + $0x10] sm:$0xff]
        %v421 = vld [vmem:[#allocation2 + $0x18] sm:$0xff]
        %s422 = scalar_lea.vmem [#allocation2], 32
        %v423 = vld [vmem:[%s422] sm:$0xff]
        %v424 = vld [vmem:[%s422 + $0x8] sm:$0xff]
        %v425 = vld [vmem:[%s422 + $0x10] sm:$0xff]
        %v426 = vld [vmem:[%s422 + $0x18] sm:$0xff]
        %v428 = vshrl.u32 %v417, 16
        %v430 = vshll.u32 %v417, 16
        %v432 = vrot.slane %v430, 1
        %v433 = vor.u32 %v428, %v432
        %v438 = vunpack.c.l.b16 %v423
        %v439 = vunpack.c.h.b16 %v423
        %v440 = vunpack.c.l.b16 %v424
        %v441 = vunpack.c.h.b16 %v424
        %v442 = vunpack.c.l.b16 %v425
        %v443 = vunpack.c.h.b16 %v425
        %v444 = vunpack.c.l.b16 %v426
        %v445 = vunpack.c.h.b16 %v426
        %v446 = vpack.c.b16 %v442, %v438
        %v447 = vpack.c.b16 %v443, %v439
        %v448 = vpack.c.b16 %v444, %v440
        %v449 = vpack.c.b16 %v445, %v441
        %vm454 = vcmask 130048
        %v456 = vsel %vm454, %v433, 0
        %458 = vmatprep.subr.bf16.mxu0 %v447
        %459 = vmatpush1.bf16.msra.mxu0 %v446
        %460 = vmatprep.subr.bf16.mxu0 0
        %461 = vmatpush1.bf16.msra.mxu0 0
        %462 = vmatprep.subr.bf16.mxu0 0
        %463 = vmatpush1.bf16.msra.mxu0 0
        %464 = vmatprep.subr.bf16.mxu0 0
        %465 = vmatpush1.bf16.msra.mxu0 0
        %466 = vmatprep.subr.bf16.mxu0 0
        %467 = vmatpush1.bf16.msra.mxu0 0
        %468 = vmatprep.subr.bf16.mxu0 0
        %469 = vmatpush1.bf16.msra.mxu0 0
        %470 = vmatprep.subr.bf16.mxu0 0
        %471 = vmatpush1.bf16.msra.mxu0 0
        %472 = vmatprep.subr.bf16.mxu0 0
        %473 = vmatpush1.bf16.msra.mxu0 0
        %474 = vmatprep.subr.bf16.mxu0 0
        %475 = vmatpush1.bf16.msra.mxu0 0
        %476 = vmatprep.subr.bf16.mxu0 0
        %477 = vmatpush1.bf16.msra.mxu0 0
        %478 = vmatprep.subr.bf16.mxu0 0
        %479 = vmatpush1.bf16.msra.mxu0 0
        %480 = vmatprep.subr.bf16.mxu0 0
        %481 = vmatpush1.bf16.msra.mxu0 0
        %482 = vmatprep.subr.bf16.mxu0 0
        %483 = vmatpush1.bf16.msra.mxu0 0
        %484 = vmatprep.subr.bf16.mxu0 0
        %485 = vmatpush1.bf16.msra.mxu0 0
        %486 = vmatprep.subr.bf16.mxu0 0
        %487 = vmatpush1.bf16.msra.mxu0 0
        %488 = vmatprep.subr.bf16.mxu0 0
        %489 = vmatpush1.bf16.msra.mxu0 0
        %490 = vmatprep.mubr.bf16.mxu0 0
        %491 = vmatmul.mubr.bf16.gmra.mrb[0].mxu0 %v456
        %v492 = vpop.f32.mrb[0].mxu0
        %v493 = vadd.f32 0.0, %v492
        %v494 = vpop.f32.mrb[0].mxu0
        %v495 = vadd.f32 0.0, %v494
        %v496 = vpop.f32.mrb[0].mxu0
        %v497 = vadd.f32 0.0, %v496
        %v498 = vpop.f32.mrb[0].mxu0
        %v499 = vadd.f32 0.0, %v498
        %500 = vdwg.mxu0
        %501 = vmatprep.subr.bf16.mxu0 %v449
        %502 = vmatpush1.bf16.msra.mxu0 %v448
        %503 = vmatprep.subr.bf16.mxu0 0
        %504 = vmatpush1.bf16.msra.mxu0 0
        %505 = vmatprep.subr.bf16.mxu0 0
        %506 = vmatpush1.bf16.msra.mxu0 0
        %507 = vmatprep.subr.bf16.mxu0 0
        %508 = vmatpush1.bf16.msra.mxu0 0
        %509 = vmatprep.subr.bf16.mxu0 0
        %510 = vmatpush1.bf16.msra.mxu0 0
        %511 = vmatprep.subr.bf16.mxu0 0
        %512 = vmatpush1.bf16.msra.mxu0 0
        %513 = vmatprep.subr.bf16.mxu0 0
        %514 = vmatpush1.bf16.msra.mxu0 0
        %515 = vmatprep.subr.bf16.mxu0 0
        %516 = vmatpush1.bf16.msra.mxu0 0
        %517 = vmatprep.subr.bf16.mxu0 0
        %518 = vmatpush1.bf16.msra.mxu0 0
        %519 = vmatprep.subr.bf16.mxu0 0
        %520 = vmatpush1.bf16.msra.mxu0 0
        %521 = vmatprep.subr.bf16.mxu0 0
        %522 = vmatpush1.bf16.msra.mxu0 0
        %523 = vmatprep.subr.bf16.mxu0 0
        %524 = vmatpush1.bf16.msra.mxu0 0
        %525 = vmatprep.subr.bf16.mxu0 0
        %526 = vmatpush1.bf16.msra.mxu0 0
        %527 = vmatprep.subr.bf16.mxu0 0
        %528 = vmatpush1.bf16.msra.mxu0 0
        %529 = vmatprep.subr.bf16.mxu0 0
        %530 = vmatpush1.bf16.msra.mxu0 0
        %531 = vmatprep.subr.bf16.mxu0 0
        %532 = vmatpush1.bf16.msra.mxu0 0
        %533 = vmatprep.mubr.bf16.mxu0 0
        %534 = vmatmul.mubr.bf16.gmra.mrb[0].mxu0 %v456
        %v535 = vpop.f32.mrb[0].mxu0
        %v536 = vadd.f32 0.0, %v535
        %v537 = vpop.f32.mrb[0].mxu0
        %v538 = vadd.f32 0.0, %v537
        %v539 = vpop.f32.mrb[0].mxu0
        %v540 = vadd.f32 0.0, %v539
        %v541 = vpop.f32.mrb[0].mxu0
        %v542 = vadd.f32 0.0, %v541
        %543 = vdwg.mxu0
        %v548 = vunpack.c.l.b16 %v418
        %v549 = vunpack.c.h.b16 %v418
        %v550 = vunpack.c.l.b16 %v419
        %v551 = vunpack.c.h.b16 %v419
        %v552 = vunpack.c.l.b16 %v420
        %v553 = vunpack.c.h.b16 %v420
        %v554 = vunpack.c.l.b16 %v421
        %v555 = vunpack.c.h.b16 %v421
        %v556 = vpack.c.b16 %v552, %v548
        %v557 = vpack.c.b16 %v553, %v549
        %v558 = vpack.c.b16 %v554, %v550
        %v559 = vpack.c.b16 %v555, %v551
        %v564 = vsel %vm454, %v417, 0
        %566 = vmatprep.subr.bf16.mxu0 %v557
        %567 = vmatpush1.bf16.msra.mxu0 %v556
        %568 = vmatprep.subr.bf16.mxu0 0
        %569 = vmatpush1.bf16.msra.mxu0 0
        %570 = vmatprep.subr.bf16.mxu0 0
        %571 = vmatpush1.bf16.msra.mxu0 0
        %572 = vmatprep.subr.bf16.mxu0 0
        %573 = vmatpush1.bf16.msra.mxu0 0
        %574 = vmatprep.subr.bf16.mxu0 0
        %575 = vmatpush1.bf16.msra.mxu0 0
        %576 = vmatprep.subr.bf16.mxu0 0
        %577 = vmatpush1.bf16.msra.mxu0 0
        %578 = vmatprep.subr.bf16.mxu0 0
        %579 = vmatpush1.bf16.msra.mxu0 0
        %580 = vmatprep.subr.bf16.mxu0 0
        %581 = vmatpush1.bf16.msra.mxu0 0
        %582 = vmatprep.subr.bf16.mxu0 0
        %583 = vmatpush1.bf16.msra.mxu0 0
        %584 = vmatprep.subr.bf16.mxu0 0
        %585 = vmatpush1.bf16.msra.mxu0 0
        %586 = vmatprep.subr.bf16.mxu0 0
        %587 = vmatpush1.bf16.msra.mxu0 0
        %588 = vmatprep.subr.bf16.mxu0 0
        %589 = vmatpush1.bf16.msra.mxu0 0
        %590 = vmatprep.subr.bf16.mxu0 0
        %591 = vmatpush1.bf16.msra.mxu0 0
        %592 = vmatprep.subr.bf16.mxu0 0
        %593 = vmatpush1.bf16.msra.mxu0 0
        %594 = vmatprep.subr.bf16.mxu0 0
        %595 = vmatpush1.bf16.msra.mxu0 0
        %596 = vmatprep.subr.bf16.mxu0 0
        %597 = vmatpush1.bf16.msra.mxu0 0
        %598 = vmatprep.mubr.bf16.mxu0 0
        %599 = vmatmul.mubr.bf16.gmra.mrb[0].mxu0 %v564
        %v600 = vpop.f32.mrb[0].mxu0
        %v601 = vadd.f32 %v493, %v600
        %v602 = vpop.f32.mrb[0].mxu0
        %v603 = vadd.f32 %v495, %v602
        %v604 = vpop.f32.mrb[0].mxu0
        %v605 = vadd.f32 %v497, %v604
        %v606 = vpop.f32.mrb[0].mxu0
        %v607 = vadd.f32 %v499, %v606
        %608 = vdwg.mxu0
        %609 = vmatprep.subr.bf16.mxu0 %v559
        %610 = vmatpush1.bf16.msra.mxu0 %v558
        %611 = vmatprep.subr.bf16.mxu0 0
        %612 = vmatpush1.bf16.msra.mxu0 0
        %613 = vmatprep.subr.bf16.mxu0 0
        %614 = vmatpush1.bf16.msra.mxu0 0
        %615 = vmatprep.subr.bf16.mxu0 0
        %616 = vmatpush1.bf16.msra.mxu0 0
        %617 = vmatprep.subr.bf16.mxu0 0
        %618 = vmatpush1.bf16.msra.mxu0 0
        %619 = vmatprep.subr.bf16.mxu0 0
        %620 = vmatpush1.bf16.msra.mxu0 0
        %621 = vmatprep.subr.bf16.mxu0 0
        %622 = vmatpush1.bf16.msra.mxu0 0
        %623 = vmatprep.subr.bf16.mxu0 0
        %624 = vmatpush1.bf16.msra.mxu0 0
        %625 = vmatprep.subr.bf16.mxu0 0
        %626 = vmatpush1.bf16.msra.mxu0 0
        %627 = vmatprep.subr.bf16.mxu0 0
        %628 = vmatpush1.bf16.msra.mxu0 0
        %629 = vmatprep.subr.bf16.mxu0 0
        %630 = vmatpush1.bf16.msra.mxu0 0
        %631 = vmatprep.subr.bf16.mxu0 0
        %632 = vmatpush1.bf16.msra.mxu0 0
        %633 = vmatprep.subr.bf16.mxu0 0
        %634 = vmatpush1.bf16.msra.mxu0 0
        %635 = vmatprep.subr.bf16.mxu0 0
        %636 = vmatpush1.bf16.msra.mxu0 0
        %637 = vmatprep.subr.bf16.mxu0 0
        %638 = vmatpush1.bf16.msra.mxu0 0
        %639 = vmatprep.subr.bf16.mxu0 0
        %640 = vmatpush1.bf16.msra.mxu0 0
        %641 = vmatprep.mubr.bf16.mxu0 0
        %642 = vmatmul.mubr.bf16.gmra.mrb[0].mxu0 %v564
        %v643 = vpop.f32.mrb[0].mxu0
        %v644 = vadd.f32 %v536, %v643
        %v645 = vpop.f32.mrb[0].mxu0
        %v646 = vadd.f32 %v538, %v645
        %v647 = vpop.f32.mrb[0].mxu0
        %v648 = vadd.f32 %v540, %v647
        %v649 = vpop.f32.mrb[0].mxu0
        %v650 = vadd.f32 %v542, %v649
        %651 = vdwg.mxu0
        %s652 = scalar_lea.vmem [#allocation2], 64
        %v653 = vld [vmem:[%s652] sm:$0xff]
        %v654 = vld [vmem:[%s652 + $0x8] sm:$0xff]
        %v655 = vld [vmem:[%s652 + $0x10] sm:$0xff]
        %v656 = vld [vmem:[%s652 + $0x18] sm:$0xff]
        %v658 = vrot.slane %v417, 1
        %v663 = vunpack.c.l.b16 %v653
        %v664 = vunpack.c.h.b16 %v653
        %v665 = vunpack.c.l.b16 %v654
        %v666 = vunpack.c.h.b16 %v654
        %v667 = vunpack.c.l.b16 %v655
        %v668 = vunpack.c.h.b16 %v655
        %v669 = vunpack.c.l.b16 %v656
        %v670 = vunpack.c.h.b16 %v656
        %v671 = vpack.c.b16 %v667, %v663
        %v672 = vpack.c.b16 %v668, %v664
        %v673 = vpack.c.b16 %v669, %v665
        %v674 = vpack.c.b16 %v670, %v666
        %v680 = vsel %vm454, %v658, 0
        %682 = vmatprep.subr.bf16.mxu0 %v672
        %683 = vmatpush1.bf16.msra.mxu0 %v671
        %684 = vmatprep.subr.bf16.mxu0 0
        %685 = vmatpush1.bf16.msra.mxu0 0
        %686 = vmatprep.subr.bf16.mxu0 0
        %687 = vmatpush1.bf16.msra.mxu0 0
        %688 = vmatprep.subr.bf16.mxu0 0
        %689 = vmatpush1.bf16.msra.mxu0 0
        %690 = vmatprep.subr.bf16.mxu0 0
        %691 = vmatpush1.bf16.msra.mxu0 0
        %692 = vmatprep.subr.bf16.mxu0 0
        %693 = vmatpush1.bf16.msra.mxu0 0
        %694 = vmatprep.subr.bf16.mxu0 0
        %695 = vmatpush1.bf16.msra.mxu0 0
        %696 = vmatprep.subr.bf16.mxu0 0
        %697 = vmatpush1.bf16.msra.mxu0 0
        %698 = vmatprep.subr.bf16.mxu0 0
        %699 = vmatpush1.bf16.msra.mxu0 0
        %700 = vmatprep.subr.bf16.mxu0 0
        %701 = vmatpush1.bf16.msra.mxu0 0
        %702 = vmatprep.subr.bf16.mxu0 0
        %703 = vmatpush1.bf16.msra.mxu0 0
        %704 = vmatprep.subr.bf16.mxu0 0
        %705 = vmatpush1.bf16.msra.mxu0 0
        %706 = vmatprep.subr.bf16.mxu0 0
        %707 = vmatpush1.bf16.msra.mxu0 0
        %708 = vmatprep.subr.bf16.mxu0 0
        %709 = vmatpush1.bf16.msra.mxu0 0
        %710 = vmatprep.subr.bf16.mxu0 0
        %711 = vmatpush1.bf16.msra.mxu0 0
        %712 = vmatprep.subr.bf16.mxu0 0
        %713 = vmatpush1.bf16.msra.mxu0 0
        %714 = vmatprep.mubr.bf16.mxu0 0
        %715 = vmatmul.mubr.bf16.gmra.mrb[0].mxu0 %v680
        %v716 = vpop.f32.mrb[0].mxu0
        %v717 = vadd.f32 0.0, %v716
        %v718 = vpop.f32.mrb[0].mxu0
        %v719 = vadd.f32 0.0, %v718
        %v720 = vpop.f32.mrb[0].mxu0
        %v721 = vadd.f32 0.0, %v720
        %v722 = vpop.f32.mrb[0].mxu0
        %v723 = vadd.f32 0.0, %v722
        %724 = vdwg.mxu0
        %725 = vmatprep.subr.bf16.mxu0 %v674
        %726 = vmatpush1.bf16.msra.mxu0 %v673
        %727 = vmatprep.subr.bf16.mxu0 0
        %728 = vmatpush1.bf16.msra.mxu0 0
        %729 = vmatprep.subr.bf16.mxu0 0
        %730 = vmatpush1.bf16.msra.mxu0 0
        %731 = vmatprep.subr.bf16.mxu0 0
        %732 = vmatpush1.bf16.msra.mxu0 0
        %733 = vmatprep.subr.bf16.mxu0 0
        %734 = vmatpush1.bf16.msra.mxu0 0
        %735 = vmatprep.subr.bf16.mxu0 0
        %736 = vmatpush1.bf16.msra.mxu0 0
        %737 = vmatprep.subr.bf16.mxu0 0
        %738 = vmatpush1.bf16.msra.mxu0 0
        %739 = vmatprep.subr.bf16.mxu0 0
        %740 = vmatpush1.bf16.msra.mxu0 0
        %741 = vmatprep.subr.bf16.mxu0 0
        %742 = vmatpush1.bf16.msra.mxu0 0
        %743 = vmatprep.subr.bf16.mxu0 0
        %744 = vmatpush1.bf16.msra.mxu0 0
        %745 = vmatprep.subr.bf16.mxu0 0
        %746 = vmatpush1.bf16.msra.mxu0 0
        %747 = vmatprep.subr.bf16.mxu0 0
        %748 = vmatpush1.bf16.msra.mxu0 0
        %749 = vmatprep.subr.bf16.mxu0 0
        %750 = vmatpush1.bf16.msra.mxu0 0
        %751 = vmatprep.subr.bf16.mxu0 0
        %752 = vmatpush1.bf16.msra.mxu0 0
        %753 = vmatprep.subr.bf16.mxu0 0
        %754 = vmatpush1.bf16.msra.mxu0 0
        %755 = vmatprep.subr.bf16.mxu0 0
        %756 = vmatpush1.bf16.msra.mxu0 0
        %757 = vmatprep.mubr.bf16.mxu0 0
        %758 = vmatmul.mubr.bf16.gmra.mrb[0].mxu0 %v680
        %v759 = vpop.f32.mrb[0].mxu0
        %v760 = vadd.f32 0.0, %v759
        %v761 = vpop.f32.mrb[0].mxu0
        %v762 = vadd.f32 0.0, %v761
        %v763 = vpop.f32.mrb[0].mxu0
        %v764 = vadd.f32 0.0, %v763
        %v765 = vpop.f32.mrb[0].mxu0
        %v766 = vadd.f32 0.0, %v765
        %767 = vdwg.mxu0
        %v768 = vadd.f32 %v601, %v717
        %v769 = vadd.f32 %v603, %v719
        %v770 = vadd.f32 %v644, %v760
        %v771 = vadd.f32 %v646, %v762
        %v772 = vadd.f32 %v605, %v721
        %v773 = vadd.f32 %v607, %v723
        %v774 = vadd.f32 %v648, %v764
        %v775 = vadd.f32 %v650, %v766
        %v776 = vld [vmem:[%s2] sm:$0xf]
        %v778 = vlaneseq
        %v779 = vshrl.u32 %v778, 7
        %v780 = vsub.s32 0, %v779
        %v781 = vrot.slane %v776, %v780
        %v782 = vlaneseq
        %v783 = vshrl.u32 %v782, 7
        %v784 = vsub.s32 1, %v783
        %v785 = vrot.slane %v776, %v784
        %v786 = vlaneseq
        %v787 = vshrl.u32 %v786, 7
        %v788 = vsub.s32 2, %v787
        %v789 = vrot.slane %v776, %v788
        %v790 = vlaneseq
        %v791 = vshrl.u32 %v790, 7
        %v792 = vsub.s32 3, %v791
        %v793 = vrot.slane %v776, %v792
        %v798 = vadd.f32 %v768, %v781
        %v799 = vadd.f32 %v769, %v785
        %v800 = vadd.f32 %v770, %v789
        %v801 = vadd.f32 %v771, %v793
        %v802 = vadd.f32 %v772, %v781
        %v803 = vadd.f32 %v773, %v785
        %v804 = vadd.f32 %v774, %v789
        %v805 = vadd.f32 %v775, %v793
        %v806 = vmax.f32 %v798, 0.0
        %v807 = vmax.f32 %v799, 0.0
        %v808 = vmax.f32 %v800, 0.0
        %v809 = vmax.f32 %v801, 0.0
        %v810 = vmax.f32 %v802, 0.0
        %v811 = vmax.f32 %v803, 0.0
        %v812 = vmax.f32 %v804, 0.0
        %v813 = vmax.f32 %v805, 0.0
        %v814 = vpack.c.bf16 %v810, %v806
        %v815 = vpack.c.bf16 %v811, %v807
        %v816 = vpack.c.bf16 %v812, %v808
        %v817 = vpack.c.bf16 %v813, %v809
        %v818 = vld [vmem:[#allocation5] sm:$0xff]
        %v819 = vld [vmem:[#allocation5 + $0x8] sm:$0xf]
        %v820 = vld [vmem:[#allocation5 + $0xc] sm:$0xff]
        %v821 = vld [vmem:[#allocation5 + $0x14] sm:$0xf]
        %v822 = vld [vmem:[#allocation5 + $0x18] sm:$0xff]
        %v823 = vld [vmem:[#allocation5 + $0x20] sm:$0xf]
        %v824 = vld [vmem:[#allocation5 + $0x24] sm:$0xff]
        %v825 = vld [vmem:[#allocation5 + $0x2c] sm:$0xf]
        %v826 = vld [vmem:[#allocation5 + $0x30] sm:$0xff]
        %v827 = vld [vmem:[#allocation5 + $0x38] sm:$0xf]
        %v828 = vld [vmem:[#allocation5 + $0x3c] sm:$0xff]
        %v829 = vld [vmem:[#allocation5 + $0x44] sm:$0xf]
        %v830 = vld [vmem:[#allocation5 + $0x48] sm:$0xff]
        %v831 = vld [vmem:[#allocation5 + $0x50] sm:$0xf]
        %v832 = vld [vmem:[#allocation5 + $0x54] sm:$0xff]
        %v833 = vld [vmem:[#allocation5 + $0x5c] sm:$0xf]
        %v834 = vld [vmem:[#allocation5 + $0x60] sm:$0xff]
        %v835 = vld [vmem:[#allocation5 + $0x68] sm:$0xf]
        %v836 = vld [vmem:[#allocation5 + $0x6c] sm:$0xff]
        %v837 = vld [vmem:[#allocation5 + $0x74] sm:$0xf]
        %v838 = vld [vmem:[#allocation5 + $0x78] sm:$0xff]
        %v839 = vld [vmem:[#allocation5 + $0x80] sm:$0xf]
        %v840 = vld [vmem:[#allocation5 + $0x84] sm:$0xff]
        %v841 = vld [vmem:[#allocation5 + $0x8c] sm:$0xf]
        %v842 = vld [vmem:[#allocation5 + $0x90] sm:$0xff]
        %v843 = vld [vmem:[#allocation5 + $0x98] sm:$0xf]
        %v844 = vld [vmem:[#allocation5 + $0x9c] sm:$0xff]
        %v845 = vld [vmem:[#allocation5 + $0xa4] sm:$0xf]
        %v846 = vld [vmem:[#allocation5 + $0xa8] sm:$0xff]
        %v847 = vld [vmem:[#allocation5 + $0xb0] sm:$0xf]
        %v848 = vld [vmem:[#allocation5 + $0xb4] sm:$0xff]
        %v849 = vld [vmem:[#allocation5 + $0xbc] sm:$0xf]
        %v850 = vld [vmem:[#allocation5 + $0xc0] sm:$0xff]
        %v851 = vld [vmem:[#allocation5 + $0xc8] sm:$0xf]
        %v852 = vld [vmem:[#allocation5 + $0xcc] sm:$0xff]
        %v853 = vld [vmem:[#allocation5 + $0xd4] sm:$0xf]
        %v854 = vld [vmem:[#allocation5 + $0xd8] sm:$0xff]
        %v855 = vld [vmem:[#allocation5 + $0xe0] sm:$0xf]
        %v856 = vld [vmem:[#allocation5 + $0xe4] sm:$0xff]
        %v857 = vld [vmem:[#allocation5 + $0xec] sm:$0xf]
        %v858 = vld [vmem:[#allocation5 + $0xf0] sm:$0xff]
        %v859 = vld [vmem:[#allocation5 + $0xf8] sm:$0xf]
        %v860 = vld [vmem:[#allocation5 + $0xfc] sm:$0xff]
        %v861 = vld [vmem:[#allocation5 + $0x104] sm:$0xf]
        %v862 = vld [vmem:[#allocation5 + $0x108] sm:$0xff]
        %v863 = vld [vmem:[#allocation5 + $0x110] sm:$0xf]
        %v864 = vld [vmem:[#allocation5 + $0x114] sm:$0xff]
        %v865 = vld [vmem:[#allocation5 + $0x11c] sm:$0xf]
        %v866 = vld [vmem:[#allocation5 + $0x120] sm:$0xff]
        %v867 = vld [vmem:[#allocation5 + $0x128] sm:$0xf]
        %v868 = vld [vmem:[#allocation5 + $0x12c] sm:$0xff]
        %v869 = vld [vmem:[#allocation5 + $0x134] sm:$0xf]
        %v870 = vld [vmem:[#allocation5 + $0x138] sm:$0xff]
        %v871 = vld [vmem:[#allocation5 + $0x140] sm:$0xf]
        %v872 = vld [vmem:[#allocation5 + $0x144] sm:$0xff]
        %v873 = vld [vmem:[#allocation5 + $0x14c] sm:$0xf]
        %v874 = vld [vmem:[#allocation5 + $0x150] sm:$0xff]
        %v875 = vld [vmem:[#allocation5 + $0x158] sm:$0xf]
        %v876 = vld [vmem:[#allocation5 + $0x15c] sm:$0xff]
        %v877 = vld [vmem:[#allocation5 + $0x164] sm:$0xf]
        %v878 = vld [vmem:[#allocation5 + $0x168] sm:$0xff]
        %v879 = vld [vmem:[#allocation5 + $0x170] sm:$0xf]
        %v880 = vld [vmem:[#allocation5 + $0x174] sm:$0xff]
        %v881 = vld [vmem:[#allocation5 + $0x17c] sm:$0xf]
        %v882 = vld [vmem:[#allocation5 + $0x180] sm:$0xff]
        %v883 = vld [vmem:[#allocation5 + $0x188] sm:$0xf]
        %v884 = vld [vmem:[#allocation5 + $0x18c] sm:$0xff]
        %v885 = vld [vmem:[#allocation5 + $0x194] sm:$0xf]
        %v886 = vld [vmem:[#allocation5 + $0x198] sm:$0xff]
        %v887 = vld [vmem:[#allocation5 + $0x1a0] sm:$0xf]
        %v888 = vld [vmem:[#allocation5 + $0x1a4] sm:$0xff]
        %v889 = vld [vmem:[#allocation5 + $0x1ac] sm:$0xf]
        %v890 = vld [vmem:[#allocation5 + $0x1b0] sm:$0xff]
        %v891 = vld [vmem:[#allocation5 + $0x1b8] sm:$0xf]
        %v892 = vld [vmem:[#allocation5 + $0x1bc] sm:$0xff]
        %v893 = vld [vmem:[#allocation5 + $0x1c4] sm:$0xf]
        %v894 = vld [vmem:[#allocation5 + $0x1c8] sm:$0xff]
        %v895 = vld [vmem:[#allocation5 + $0x1d0] sm:$0xf]
        %v896 = vld [vmem:[#allocation5 + $0x1d4] sm:$0xff]
        %v897 = vld [vmem:[#allocation5 + $0x1dc] sm:$0xf]
        %v898 = vld [vmem:[#allocation5 + $0x1e0] sm:$0xff]
        %v899 = vld [vmem:[#allocation5 + $0x1e8] sm:$0xf]
        %v900 = vld [vmem:[#allocation5 + $0x1ec] sm:$0xff]
        %v901 = vld [vmem:[#allocation5 + $0x1f4] sm:$0xf]
        %v902 = vld [vmem:[#allocation5 + $0x1f8] sm:$0xff]
        %v903 = vld [vmem:[#allocation5 + $0x200] sm:$0xf]
        %v904 = vld [vmem:[#allocation5 + $0x204] sm:$0xff]
        %v905 = vld [vmem:[#allocation5 + $0x20c] sm:$0xf]
        %v906 = vld [vmem:[#allocation5 + $0x210] sm:$0xff]
        %v907 = vld [vmem:[#allocation5 + $0x218] sm:$0xf]
        %v908 = vld [vmem:[#allocation5 + $0x21c] sm:$0xff]
        %v909 = vld [vmem:[#allocation5 + $0x224] sm:$0xf]
        %v910 = vld [vmem:[#allocation5 + $0x228] sm:$0xff]
        %v911 = vld [vmem:[#allocation5 + $0x230] sm:$0xf]
        %v912 = vld [vmem:[#allocation5 + $0x234] sm:$0xff]
        %v913 = vld [vmem:[#allocation5 + $0x23c] sm:$0xf]
        %v914 = vld [vmem:[#allocation5 + $0x240] sm:$0xff]
        %v915 = vld [vmem:[#allocation5 + $0x248] sm:$0xf]
        %v916 = vld [vmem:[#allocation5 + $0x24c] sm:$0xff]
        %v917 = vld [vmem:[#allocation5 + $0x254] sm:$0xf]
        %v918 = vld [vmem:[#allocation5 + $0x258] sm:$0xff]
        %v919 = vld [vmem:[#allocation5 + $0x260] sm:$0xf]
        %v920 = vld [vmem:[#allocation5 + $0x264] sm:$0xff]
        %v921 = vld [vmem:[#allocation5 + $0x26c] sm:$0xf]
        %v922 = vld [vmem:[#allocation5 + $0x270] sm:$0xff]
        %v923 = vld [vmem:[#allocation5 + $0x278] sm:$0xf]
        %v924 = vld [vmem:[#allocation5 + $0x27c] sm:$0xff]
        %v925 = vld [vmem:[#allocation5 + $0x284] sm:$0xf]
        %v926 = vld [vmem:[#allocation5 + $0x288] sm:$0xff]
        %v927 = vld [vmem:[#allocation5 + $0x290] sm:$0xf]
        %v928 = vld [vmem:[#allocation5 + $0x294] sm:$0xff]
        %v929 = vld [vmem:[#allocation5 + $0x29c] sm:$0xf]
        %s930 = scalar_lea.vmem [#allocation5], 672
        %v931 = vld [vmem:[%s930] sm:$0xff]
        %v932 = vld [vmem:[%s930 + $0x8] sm:$0xf]
        %v933 = vld [vmem:[%s930 + $0xc] sm:$0xff]
        %v934 = vld [vmem:[%s930 + $0x14] sm:$0xf]
        %v935 = vld [vmem:[%s930 + $0x18] sm:$0xff]
        %v936 = vld [vmem:[%s930 + $0x20] sm:$0xf]
        %v937 = vld [vmem:[%s930 + $0x24] sm:$0xff]
        %v938 = vld [vmem:[%s930 + $0x2c] sm:$0xf]
        %v939 = vld [vmem:[%s930 + $0x30] sm:$0xff]
        %v940 = vld [vmem:[%s930 + $0x38] sm:$0xf]
        %v941 = vld [vmem:[%s930 + $0x3c] sm:$0xff]
        %v942 = vld [vmem:[%s930 + $0x44] sm:$0xf]
        %v943 = vld [vmem:[%s930 + $0x48] sm:$0xff]
        %v944 = vld [vmem:[%s930 + $0x50] sm:$0xf]
        %v945 = vld [vmem:[%s930 + $0x54] sm:$0xff]
        %v946 = vld [vmem:[%s930 + $0x5c] sm:$0xf]
        %v947 = vld [vmem:[%s930 + $0x60] sm:$0xff]
        %v948 = vld [vmem:[%s930 + $0x68] sm:$0xf]
        %v949 = vld [vmem:[%s930 + $0x6c] sm:$0xff]
        %v950 = vld [vmem:[%s930 + $0x74] sm:$0xf]
        %v951 = vld [vmem:[%s930 + $0x78] sm:$0xff]
        %v952 = vld [vmem:[%s930 + $0x80] sm:$0xf]
        %v953 = vld [vmem:[%s930 + $0x84] sm:$0xff]
        %v954 = vld [vmem:[%s930 + $0x8c] sm:$0xf]
        %v955 = vld [vmem:[%s930 + $0x90] sm:$0xff]
        %v956 = vld [vmem:[%s930 + $0x98] sm:$0xf]
        %v957 = vld [vmem:[%s930 + $0x9c] sm:$0xff]
        %v958 = vld [vmem:[%s930 + $0xa4] sm:$0xf]
        %v959 = vld [vmem:[%s930 + $0xa8] sm:$0xff]
        %v960 = vld [vmem:[%s930 + $0xb0] sm:$0xf]
        %v961 = vld [vmem:[%s930 + $0xb4] sm:$0xff]
        %v962 = vld [vmem:[%s930 + $0xbc] sm:$0xf]
        %v963 = vld [vmem:[%s930 + $0xc0] sm:$0xff]
        %v964 = vld [vmem:[%s930 + $0xc8] sm:$0xf]
        %v965 = vld [vmem:[%s930 + $0xcc] sm:$0xff]
        %v966 = vld [vmem:[%s930 + $0xd4] sm:$0xf]
        %v967 = vld [vmem:[%s930 + $0xd8] sm:$0xff]
        %v968 = vld [vmem:[%s930 + $0xe0] sm:$0xf]
        %v969 = vld [vmem:[%s930 + $0xe4] sm:$0xff]
        %v970 = vld [vmem:[%s930 + $0xec] sm:$0xf]
        %v971 = vld [vmem:[%s930 + $0xf0] sm:$0xff]
        %v972 = vld [vmem:[%s930 + $0xf8] sm:$0xf]
        %v973 = vld [vmem:[%s930 + $0xfc] sm:$0xff]
        %v974 = vld [vmem:[%s930 + $0x104] sm:$0xf]
        %v975 = vld [vmem:[%s930 + $0x108] sm:$0xff]
        %v976 = vld [vmem:[%s930 + $0x110] sm:$0xf]
        %v977 = vld [vmem:[%s930 + $0x114] sm:$0xff]
        %v978 = vld [vmem:[%s930 + $0x11c] sm:$0xf]
        %v979 = vld [vmem:[%s930 + $0x120] sm:$0xff]
        %v980 = vld [vmem:[%s930 + $0x128] sm:$0xf]
        %v981 = vld [vmem:[%s930 + $0x12c] sm:$0xff]
        %v982 = vld [vmem:[%s930 + $0x134] sm:$0xf]
        %v983 = vld [vmem:[%s930 + $0x138] sm:$0xff]
        %v984 = vld [vmem:[%s930 + $0x140] sm:$0xf]
        %v985 = vld [vmem:[%s930 + $0x144] sm:$0xff]
        %v986 = vld [vmem:[%s930 + $0x14c] sm:$0xf]
        %v987 = vld [vmem:[%s930 + $0x150] sm:$0xff]
        %v988 = vld [vmem:[%s930 + $0x158] sm:$0xf]
        %v989 = vld [vmem:[%s930 + $0x15c] sm:$0xff]
        %v990 = vld [vmem:[%s930 + $0x164] sm:$0xf]
        %v991 = vld [vmem:[%s930 + $0x168] sm:$0xff]
        %v992 = vld [vmem:[%s930 + $0x170] sm:$0xf]
        %v993 = vld [vmem:[%s930 + $0x174] sm:$0xff]
        %v994 = vld [vmem:[%s930 + $0x17c] sm:$0xf]
        %v995 = vld [vmem:[%s930 + $0x180] sm:$0xff]
        %v996 = vld [vmem:[%s930 + $0x188] sm:$0xf]
        %v997 = vld [vmem:[%s930 + $0x18c] sm:$0xff]
        %v998 = vld [vmem:[%s930 + $0x194] sm:$0xf]
        %v999 = vld [vmem:[%s930 + $0x198] sm:$0xff]
        %v1000 = vld [vmem:[%s930 + $0x1a0] sm:$0xf]
        %v1001 = vld [vmem:[%s930 + $0x1a4] sm:$0xff]
        %v1002 = vld [vmem:[%s930 + $0x1ac] sm:$0xf]
        %v1003 = vld [vmem:[%s930 + $0x1b0] sm:$0xff]
        %v1004 = vld [vmem:[%s930 + $0x1b8] sm:$0xf]
        %v1005 = vld [vmem:[%s930 + $0x1bc] sm:$0xff]
        %v1006 = vld [vmem:[%s930 + $0x1c4] sm:$0xf]
        %v1007 = vld [vmem:[%s930 + $0x1c8] sm:$0xff]
        %v1008 = vld [vmem:[%s930 + $0x1d0] sm:$0xf]
        %v1009 = vld [vmem:[%s930 + $0x1d4] sm:$0xff]
        %v1010 = vld [vmem:[%s930 + $0x1dc] sm:$0xf]
        %v1011 = vld [vmem:[%s930 + $0x1e0] sm:$0xff]
        %v1012 = vld [vmem:[%s930 + $0x1e8] sm:$0xf]
        %v1013 = vld [vmem:[%s930 + $0x1ec] sm:$0xff]
        %v1014 = vld [vmem:[%s930 + $0x1f4] sm:$0xf]
        %v1015 = vld [vmem:[%s930 + $0x1f8] sm:$0xff]
        %v1016 = vld [vmem:[%s930 + $0x200] sm:$0xf]
        %v1017 = vld [vmem:[%s930 + $0x204] sm:$0xff]
        %v1018 = vld [vmem:[%s930 + $0x20c] sm:$0xf]
        %v1019 = vld [vmem:[%s930 + $0x210] sm:$0xff]
        %v1020 = vld [vmem:[%s930 + $0x218] sm:$0xf]
        %v1021 = vld [vmem:[%s930 + $0x21c] sm:$0xff]
        %v1022 = vld [vmem:[%s930 + $0x224] sm:$0xf]
        %v1023 = vld [vmem:[%s930 + $0x228] sm:$0xff]
        %v1024 = vld [vmem:[%s930 + $0x230] sm:$0xf]
        %v1025 = vld [vmem:[%s930 + $0x234] sm:$0xff]
        %v1026 = vld [vmem:[%s930 + $0x23c] sm:$0xf]
        %v1027 = vld [vmem:[%s930 + $0x240] sm:$0xff]
        %v1028 = vld [vmem:[%s930 + $0x248] sm:$0xf]
        %v1029 = vld [vmem:[%s930 + $0x24c] sm:$0xff]
        %v1030 = vld [vmem:[%s930 + $0x254] sm:$0xf]
        %v1031 = vld [vmem:[%s930 + $0x258] sm:$0xff]
        %v1032 = vld [vmem:[%s930 + $0x260] sm:$0xf]
        %v1033 = vld [vmem:[%s930 + $0x264] sm:$0xff]
        %v1034 = vld [vmem:[%s930 + $0x26c] sm:$0xf]
        %v1035 = vld [vmem:[%s930 + $0x270] sm:$0xff]
        %v1036 = vld [vmem:[%s930 + $0x278] sm:$0xf]
        %v1037 = vld [vmem:[%s930 + $0x27c] sm:$0xff]
        %v1038 = vld [vmem:[%s930 + $0x284] sm:$0xf]
        %v1039 = vld [vmem:[%s930 + $0x288] sm:$0xff]
        %v1040 = vld [vmem:[%s930 + $0x290] sm:$0xf]
        %v1041 = vld [vmem:[%s930 + $0x294] sm:$0xff]
        %v1042 = vld [vmem:[%s930 + $0x29c] sm:$0xf]
        %v1044 = vshrl.u32 %v814, 16
        %v1046 = vshll.u32 %v814, 16
        %v1048 = vrot.slane %v1046, 1
        %v1049 = vor.u32 %v1044, %v1048
        %v1051 = vshrl.u32 %v815, 16
        %v1053 = vshll.u32 %v815, 16
        %v1055 = vrot.slane %v1053, 1
        %v1056 = vor.u32 %v1051, %v1055
        %v1058 = vshrl.u32 %v816, 16
        %v1060 = vshll.u32 %v816, 16
        %v1062 = vrot.slane %v1060, 1
        %v1063 = vor.u32 %v1058, %v1062
        %v1065 = vshrl.u32 %v817, 16
        %v1067 = vshll.u32 %v817, 16
        %v1069 = vrot.slane %v1067, 1
        %v1070 = vor.u32 %v1065, %v1069
        %v1186 = vunpack.c.l.b16 %v931
        %v1187 = vunpack.c.h.b16 %v931
        %v1188 = vunpack.c.l.b16 %v932
        %v1189 = vunpack.c.l.b16 %v933
        %v1190 = vunpack.c.h.b16 %v933
        %v1191 = vunpack.c.l.b16 %v934
        %v1192 = vunpack.c.l.b16 %v935
        %v1193 = vunpack.c.h.b16 %v935
        %v1194 = vunpack.c.l.b16 %v936
        %v1195 = vunpack.c.l.b16 %v937
        %v1196 = vunpack.c.h.b16 %v937
        %v1197 = vunpack.c.l.b16 %v938
        %v1198 = vunpack.c.l.b16 %v939
        %v1199 = vunpack.c.h.b16 %v939
        %v1200 = vunpack.c.l.b16 %v940
        %v1201 = vunpack.c.l.b16 %v941
        %v1202 = vunpack.c.h.b16 %v941
        %v1203 = vunpack.c.l.b16 %v942
        %v1204 = vunpack.c.l.b16 %v943
        %v1205 = vunpack.c.h.b16 %v943
        %v1206 = vunpack.c.l.b16 %v944
        %v1207 = vunpack.c.l.b16 %v945
        %v1208 = vunpack.c.h.b16 %v945
        %v1209 = vunpack.c.l.b16 %v946
        %v1210 = vunpack.c.l.b16 %v947
        %v1211 = vunpack.c.h.b16 %v947
        %v1212 = vunpack.c.l.b16 %v948
        %v1213 = vunpack.c.l.b16 %v949
        %v1214 = vunpack.c.h.b16 %v949
        %v1215 = vunpack.c.l.b16 %v950
        %v1216 = vunpack.c.l.b16 %v951
        %v1217 = vunpack.c.h.b16 %v951
        %v1218 = vunpack.c.l.b16 %v952
        %v1219 = vunpack.c.l.b16 %v953
        %v1220 = vunpack.c.h.b16 %v953
        %v1221 = vunpack.c.l.b16 %v954
        %v1222 = vunpack.c.l.b16 %v955
        %v1223 = vunpack.c.h.b16 %v955
        %v1224 = vunpack.c.l.b16 %v956
        %v1225 = vunpack.c.l.b16 %v957
        %v1226 = vunpack.c.h.b16 %v957
        %v1227 = vunpack.c.l.b16 %v958
        %v1228 = vunpack.c.l.b16 %v959
        %v1229 = vunpack.c.h.b16 %v959
        %v1230 = vunpack.c.l.b16 %v960
        %v1231 = vunpack.c.l.b16 %v961
        %v1232 = vunpack.c.h.b16 %v961
        %v1233 = vunpack.c.l.b16 %v962
        %v1234 = vunpack.c.l.b16 %v963
        %v1235 = vunpack.c.h.b16 %v963
        %v1236 = vunpack.c.l.b16 %v964
        %v1237 = vunpack.c.l.b16 %v965
        %v1238 = vunpack.c.h.b16 %v965
        %v1239 = vunpack.c.l.b16 %v966
        %v1240 = vunpack.c.l.b16 %v967
        %v1241 = vunpack.c.h.b16 %v967
        %v1242 = vunpack.c.l.b16 %v968
        %v1243 = vunpack.c.l.b16 %v969
        %v1244 = vunpack.c.h.b16 %v969
        %v1245 = vunpack.c.l.b16 %v970
        %v1246 = vunpack.c.l.b16 %v971
        %v1247 = vunpack.c.h.b16 %v971
        %v1248 = vunpack.c.l.b16 %v972
        %v1249 = vunpack.c.l.b16 %v973
        %v1250 = vunpack.c.h.b16 %v973
        %v1251 = vunpack.c.l.b16 %v974
        %v1252 = vunpack.c.l.b16 %v975
        %v1253 = vunpack.c.h.b16 %v975
        %v1254 = vunpack.c.l.b16 %v976
        %v1255 = vunpack.c.l.b16 %v977
        %v1256 = vunpack.c.h.b16 %v977
        %v1257 = vunpack.c.l.b16 %v978
        %v1258 = vunpack.c.l.b16 %v979
        %v1259 = vunpack.c.h.b16 %v979
        %v1260 = vunpack.c.l.b16 %v980
        %v1261 = vunpack.c.l.b16 %v981
        %v1262 = vunpack.c.h.b16 %v981
        %v1263 = vunpack.c.l.b16 %v982
        %v1264 = vunpack.c.l.b16 %v983
        %v1265 = vunpack.c.h.b16 %v983
        %v1266 = vunpack.c.l.b16 %v984
        %v1267 = vunpack.c.l.b16 %v985
        %v1268 = vunpack.c.h.b16 %v985
        %v1269 = vunpack.c.l.b16 %v986
        %v1270 = vunpack.c.l.b16 %v987
        %v1271 = vunpack.c.h.b16 %v987
        %v1272 = vunpack.c.l.b16 %v988
        %v1273 = vunpack.c.l.b16 %v989
        %v1274 = vunpack.c.h.b16 %v989
        %v1275 = vunpack.c.l.b16 %v990
        %v1276 = vunpack.c.l.b16 %v991
        %v1277 = vunpack.c.h.b16 %v991
        %v1278 = vunpack.c.l.b16 %v992
        %v1279 = vunpack.c.l.b16 %v993
        %v1280 = vunpack.c.h.b16 %v993
        %v1281 = vunpack.c.l.b16 %v994
        %v1282 = vunpack.c.l.b16 %v995
        %v1283 = vunpack.c.h.b16 %v995
        %v1284 = vunpack.c.l.b16 %v996
        %v1285 = vunpack.c.l.b16 %v997
        %v1286 = vunpack.c.h.b16 %v997
        %v1287 = vunpack.c.l.b16 %v998
        %v1288 = vunpack.c.l.b16 %v999
        %v1289 = vunpack.c.h.b16 %v999
        %v1290 = vunpack.c.l.b16 %v1000
        %v1291 = vunpack.c.l.b16 %v1001
        %v1292 = vunpack.c.h.b16 %v1001
        %v1293 = vunpack.c.l.b16 %v1002
        %v1294 = vunpack.c.l.b16 %v1003
        %v1295 = vunpack.c.h.b16 %v1003
        %v1296 = vunpack.c.l.b16 %v1004
        %v1297 = vunpack.c.l.b16 %v1005
        %v1298 = vunpack.c.h.b16 %v1005
        %v1299 = vunpack.c.l.b16 %v1006
        %v1300 = vunpack.c.l.b16 %v1007
        %v1301 = vunpack.c.h.b16 %v1007
        %v1302 = vunpack.c.l.b16 %v1008
        %v1303 = vunpack.c.l.b16 %v1009
        %v1304 = vunpack.c.h.b16 %v1009
        %v1305 = vunpack.c.l.b16 %v1010
        %v1306 = vunpack.c.l.b16 %v1011
        %v1307 = vunpack.c.h.b16 %v1011
        %v1308 = vunpack.c.l.b16 %v1012
        %v1309 = vunpack.c.l.b16 %v1013
        %v1310 = vunpack.c.h.b16 %v1013
        %v1311 = vunpack.c.l.b16 %v1014
        %v1312 = vunpack.c.l.b16 %v1015
        %v1313 = vunpack.c.h.b16 %v1015
        %v1314 = vunpack.c.l.b16 %v1016
        %v1315 = vunpack.c.l.b16 %v1017
        %v1316 = vunpack.c.h.b16 %v1017
        %v1317 = vunpack.c.l.b16 %v1018
        %v1318 = vunpack.c.l.b16 %v1019
        %v1319 = vunpack.c.h.b16 %v1019
        %v1320 = vunpack.c.l.b16 %v1020
        %v1321 = vunpack.c.l.b16 %v1021
        %v1322 = vunpack.c.h.b16 %v1021
        %v1323 = vunpack.c.l.b16 %v1022
        %v1324 = vunpack.c.l.b16 %v1023
        %v1325 = vunpack.c.h.b16 %v1023
        %v1326 = vunpack.c.l.b16 %v1024
        %v1327 = vunpack.c.l.b16 %v1025
        %v1328 = vunpack.c.h.b16 %v1025
        %v1329 = vunpack.c.l.b16 %v1026
        %v1330 = vunpack.c.l.b16 %v1027
        %v1331 = vunpack.c.h.b16 %v1027
        %v1332 = vunpack.c.l.b16 %v1028
        %v1333 = vunpack.c.l.b16 %v1029
        %v1334 = vunpack.c.h.b16 %v1029
        %v1335 = vunpack.c.l.b16 %v1030
        %v1336 = vunpack.c.l.b16 %v1031
        %v1337 = vunpack.c.h.b16 %v1031
        %v1338 = vunpack.c.l.b16 %v1032
        %v1339 = vunpack.c.l.b16 %v1033
        %v1340 = vunpack.c.h.b16 %v1033
        %v1341 = vunpack.c.l.b16 %v1034
        %v1342 = vunpack.c.l.b16 %v1035
        %v1343 = vunpack.c.h.b16 %v1035
        %v1344 = vunpack.c.l.b16 %v1036
        %v1345 = vunpack.c.l.b16 %v1037
        %v1346 = vunpack.c.h.b16 %v1037
        %v1347 = vunpack.c.l.b16 %v1038
        %v1348 = vunpack.c.l.b16 %v1039
        %v1349 = vunpack.c.h.b16 %v1039
        %v1350 = vunpack.c.l.b16 %v1040
        %v1351 = vunpack.c.l.b16 %v1041
        %v1352 = vunpack.c.h.b16 %v1041
        %v1353 = vunpack.c.l.b16 %v1042
        %v1354 = vpack.c.b16 %v1189, %v1186
        %v1355 = vpack.c.b16 %v1190, %v1187
        %v1356 = vpack.c.b16 %v1191, %v1188
        %v1357 = vpack.c.b16 %v1195, %v1192
        %v1358 = vpack.c.b16 %v1196, %v1193
        %v1359 = vpack.c.b16 %v1197, %v1194
        %v1360 = vpack.c.b16 %v1201, %v1198
        %v1361 = vpack.c.b16 %v1202, %v1199
        %v1362 = vpack.c.b16 %v1203, %v1200
        %v1363 = vpack.c.b16 %v1207, %v1204
        %v1364 = vpack.c.b16 %v1208, %v1205
        %v1365 = vpack.c.b16 %v1209, %v1206
        %v1366 = vpack.c.b16 %v1213, %v1210
        %v1367 = vpack.c.b16 %v1214, %v1211
        %v1368 = vpack.c.b16 %v1215, %v1212
        %v1369 = vpack.c.b16 %v1219, %v1216
        %v1370 = vpack.c.b16 %v1220, %v1217
        %v1371 = vpack.c.b16 %v1221, %v1218
        %v1372 = vpack.c.b16 %v1225, %v1222
        %v1373 = vpack.c.b16 %v1226, %v1223
        %v1374 = vpack.c.b16 %v1227, %v1224
        %v1375 = vpack.c.b16 %v1231, %v1228
        %v1376 = vpack.c.b16 %v1232, %v1229
        %v1377 = vpack.c.b16 %v1233, %v1230
        %v1378 = vpack.c.b16 %v1237, %v1234
        %v1379 = vpack.c.b16 %v1238, %v1235
        %v1380 = vpack.c.b16 %v1239, %v1236
        %v1381 = vpack.c.b16 %v1243, %v1240
        %v1382 = vpack.c.b16 %v1244, %v1241
        %v1383 = vpack.c.b16 %v1245, %v1242
        %v1384 = vpack.c.b16 %v1249, %v1246
        %v1385 = vpack.c.b16 %v1250, %v1247
        %v1386 = vpack.c.b16 %v1251, %v1248
        %v1387 = vpack.c.b16 %v1255, %v1252
        %v1388 = vpack.c.b16 %v1256, %v1253
        %v1389 = vpack.c.b16 %v1257, %v1254
        %v1390 = vpack.c.b16 %v1261, %v1258
        %v1391 = vpack.c.b16 %v1262, %v1259
        %v1392 = vpack.c.b16 %v1263, %v1260
        %v1393 = vpack.c.b16 %v1267, %v1264
        %v1394 = vpack.c.b16 %v1268, %v1265
        %v1395 = vpack.c.b16 %v1269, %v1266
        %v1396 = vpack.c.b16 %v1273, %v1270
        %v1397 = vpack.c.b16 %v1274, %v1271
        %v1398 = vpack.c.b16 %v1275, %v1272
        %v1399 = vpack.c.b16 %v1279, %v1276
        %v1400 = vpack.c.b16 %v1280, %v1277
        %v1401 = vpack.c.b16 %v1281, %v1278
        %v1402 = vpack.c.b16 %v1285, %v1282
        %v1403 = vpack.c.b16 %v1286, %v1283
        %v1404 = vpack.c.b16 %v1287, %v1284
        %v1405 = vpack.c.b16 %v1291, %v1288
        %v1406 = vpack.c.b16 %v1292, %v1289
        %v1407 = vpack.c.b16 %v1293, %v1290
        %v1408 = vpack.c.b16 %v1297, %v1294
        %v1409 = vpack.c.b16 %v1298, %v1295
        %v1410 = vpack.c.b16 %v1299, %v1296
        %v1411 = vpack.c.b16 %v1303, %v1300
        %v1412 = vpack.c.b16 %v1304, %v1301
        %v1413 = vpack.c.b16 %v1305, %v1302
        %v1414 = vpack.c.b16 %v1309, %v1306
        %v1415 = vpack.c.b16 %v1310, %v1307
        %v1416 = vpack.c.b16 %v1311, %v1308
        %v1417 = vpack.c.b16 %v1315, %v1312
        %v1418 = vpack.c.b16 %v1316, %v1313
        %v1419 = vpack.c.b16 %v1317, %v1314
        %v1420 = vpack.c.b16 %v1321, %v1318
        %v1421 = vpack.c.b16 %v1322, %v1319
        %v1422 = vpack.c.b16 %v1323, %v1320
        %v1423 = vpack.c.b16 %v1327, %v1324
        %v1424 = vpack.c.b16 %v1328, %v1325
        %v1425 = vpack.c.b16 %v1329, %v1326
        %v1426 = vpack.c.b16 %v1333, %v1330
        %v1427 = vpack.c.b16 %v1334, %v1331
        %v1428 = vpack.c.b16 %v1335, %v1332
        %v1429 = vpack.c.b16 %v1339, %v1336
        %v1430 = vpack.c.b16 %v1340, %v1337
        %v1431 = vpack.c.b16 %v1341, %v1338
        %v1432 = vpack.c.b16 %v1345, %v1342
        %v1433 = vpack.c.b16 %v1346, %v1343
        %v1434 = vpack.c.b16 %v1347, %v1344
        %v1435 = vpack.c.b16 %v1351, %v1348
        %v1436 = vpack.c.b16 %v1352, %v1349
        %v1437 = vpack.c.b16 %v1353, %v1350
        %vm1522 = vcmask 523264
        %v1524 = vsel %vm1522, %v1070, 0
        %1526 = vmatprep.subr.bf16.mxu0 %v1355
        %1527 = vmatpush1.bf16.msra.mxu0 %v1354
        %1528 = vmatprep.subr.bf16.mxu0 %v1358
        %1529 = vmatpush1.bf16.msra.mxu0 %v1357
        %1530 = vmatprep.subr.bf16.mxu0 %v1361
        %1531 = vmatpush1.bf16.msra.mxu0 %v1360
        %1532 = vmatprep.subr.bf16.mxu0 %v1364
        %1533 = vmatpush1.bf16.msra.mxu0 %v1363
        %1534 = vmatprep.subr.bf16.mxu0 %v1367
        %1535 = vmatpush1.bf16.msra.mxu0 %v1366
        %1536 = vmatprep.subr.bf16.mxu0 %v1370
        %1537 = vmatpush1.bf16.msra.mxu0 %v1369
        %1538 = vmatprep.subr.bf16.mxu0 %v1373
        %1539 = vmatpush1.bf16.msra.mxu0 %v1372
        %1540 = vmatprep.subr.bf16.mxu0 %v1376
        %1541 = vmatpush1.bf16.msra.mxu0 %v1375
        %1542 = vmatprep.subr.bf16.mxu0 %v1379
        %1543 = vmatpush1.bf16.msra.mxu0 %v1378
        %1544 = vmatprep.subr.bf16.mxu0 %v1382
        %1545 = vmatpush1.bf16.msra.mxu0 %v1381
        %1546 = vmatprep.subr.bf16.mxu0 %v1385
        %1547 = vmatpush1.bf16.msra.mxu0 %v1384
        %1548 = vmatprep.subr.bf16.mxu0 %v1388
        %1549 = vmatpush1.bf16.msra.mxu0 %v1387
        %1550 = vmatprep.subr.bf16.mxu0 %v1391
        %1551 = vmatpush1.bf16.msra.mxu0 %v1390
        %1552 = vmatprep.subr.bf16.mxu0 %v1394
        %1553 = vmatpush1.bf16.msra.mxu0 %v1393
        %1554 = vmatprep.subr.bf16.mxu0 %v1397
        %1555 = vmatpush1.bf16.msra.mxu0 %v1396
        %1556 = vmatprep.subr.bf16.mxu0 %v1400
        %1557 = vmatpush1.bf16.msra.mxu0 %v1399
        %1558 = vmatprep.mubr.bf16.mxu0 %v1056
        %1559 = vmatmul.mubr.bf16.gmra.mrb[0].mxu0 %v1049
        %v1560 = vpop.f32.mrb[0].mxu0
        %v1561 = vadd.f32 0.0, %v1560
        %v1562 = vpop.f32.mrb[0].mxu0
        %v1563 = vadd.f32 0.0, %v1562
        %v1564 = vpop.f32.mrb[0].mxu0
        %v1565 = vadd.f32 0.0, %v1564
        %v1566 = vpop.f32.mrb[0].mxu0
        %v1567 = vadd.f32 0.0, %v1566
        %1568 = vdwg.mxu0
        %1569 = vmatprep.subr.bf16.mxu0 %v1403
        %1570 = vmatpush1.bf16.msra.mxu0 %v1402
        %1571 = vmatprep.subr.bf16.mxu0 %v1406
        %1572 = vmatpush1.bf16.msra.mxu0 %v1405
        %1573 = vmatprep.subr.bf16.mxu0 %v1409
        %1574 = vmatpush1.bf16.msra.mxu0 %v1408
        %1575 = vmatprep.subr.bf16.mxu0 %v1412
        %1576 = vmatpush1.bf16.msra.mxu0 %v1411
        %1577 = vmatprep.subr.bf16.mxu0 %v1415
        %1578 = vmatpush1.bf16.msra.mxu0 %v1414
        %1579 = vmatprep.subr.bf16.mxu0 %v1418
        %1580 = vmatpush1.bf16.msra.mxu0 %v1417
        %1581 = vmatprep.subr.bf16.mxu0 %v1421
        %1582 = vmatpush1.bf16.msra.mxu0 %v1420
        %1583 = vmatprep.subr.bf16.mxu0 %v1424
        %1584 = vmatpush1.bf16.msra.mxu0 %v1423
        %1585 = vmatprep.subr.bf16.mxu0 %v1427
        %1586 = vmatpush1.bf16.msra.mxu0 %v1426
        %1587 = vmatprep.subr.bf16.mxu0 %v1430
        %1588 = vmatpush1.bf16.msra.mxu0 %v1429
        %1589 = vmatprep.subr.bf16.mxu0 %v1433
        %1590 = vmatpush1.bf16.msra.mxu0 %v1432
        %1591 = vmatprep.subr.bf16.mxu0 %v1436
        %1592 = vmatpush1.bf16.msra.mxu0 %v1435
        %1593 = vmatprep.subr.bf16.mxu0 0
        %1594 = vmatpush1.bf16.msra.mxu0 0
        %1595 = vmatprep.subr.bf16.mxu0 0
        %1596 = vmatpush1.bf16.msra.mxu0 0
        %1597 = vmatprep.subr.bf16.mxu0 0
        %1598 = vmatpush1.bf16.msra.mxu0 0
        %1599 = vmatprep.subr.bf16.mxu0 0
        %1600 = vmatpush1.bf16.msra.mxu0 0
        %1601 = vmatprep.mubr.bf16.mxu0 %v1524
        %1602 = vmatmul.mubr.bf16.gmra.mrb[0].mxu0 %v1063
        %v1603 = vpop.f32.mrb[0].mxu0
        %v1604 = vadd.f32 %v1561, %v1603
        %v1605 = vpop.f32.mrb[0].mxu0
        %v1606 = vadd.f32 %v1563, %v1605
        %v1607 = vpop.f32.mrb[0].mxu0
        %v1608 = vadd.f32 %v1565, %v1607
        %v1609 = vpop.f32.mrb[0].mxu0
        %v1610 = vadd.f32 %v1567, %v1609
        %1611 = vdwg.mxu0
        %1612 = vmatprep.subr.bf16.mxu0 0
        %1613 = vmatpush1.bf16.msra.mxu0 %v1356
        %1614 = vmatprep.subr.bf16.mxu0 0
        %1615 = vmatpush1.bf16.msra.mxu0 %v1359
        %1616 = vmatprep.subr.bf16.mxu0 0
        %1617 = vmatpush1.bf16.msra.mxu0 %v1362
        %1618 = vmatprep.subr.bf16.mxu0 0
        %1619 = vmatpush1.bf16.msra.mxu0 %v1365
        %1620 = vmatprep.subr.bf16.mxu0 0
        %1621 = vmatpush1.bf16.msra.mxu0 %v1368
        %1622 = vmatprep.subr.bf16.mxu0 0
        %1623 = vmatpush1.bf16.msra.mxu0 %v1371
        %1624 = vmatprep.subr.bf16.mxu0 0
        %1625 = vmatpush1.bf16.msra.mxu0 %v1374
        %1626 = vmatprep.subr.bf16.mxu0 0
        %1627 = vmatpush1.bf16.msra.mxu0 %v1377
        %1628 = vmatprep.subr.bf16.mxu0 0
        %1629 = vmatpush1.bf16.msra.mxu0 %v1380
        %1630 = vmatprep.subr.bf16.mxu0 0
        %1631 = vmatpush1.bf16.msra.mxu0 %v1383
        %1632 = vmatprep.subr.bf16.mxu0 0
        %1633 = vmatpush1.bf16.msra.mxu0 %v1386
        %1634 = vmatprep.subr.bf16.mxu0 0
        %1635 = vmatpush1.bf16.msra.mxu0 %v1389
        %1636 = vmatprep.subr.bf16.mxu0 0
        %1637 = vmatpush1.bf16.msra.mxu0 %v1392
        %1638 = vmatprep.subr.bf16.mxu0 0
        %1639 = vmatpush1.bf16.msra.mxu0 %v1395
        %1640 = vmatprep.subr.bf16.mxu0 0
        %1641 = vmatpush1.bf16.msra.mxu0 %v1398
        %1642 = vmatprep.subr.bf16.mxu0 0
        %1643 = vmatpush1.bf16.msra.mxu0 %v1401
        %1644 = vmatprep.mubr.bf16.mxu0 %v1056
        %1645 = vmatmul.mubr.bf16.gmra.mrb[0].mxu0 %v1049
        %v1646 = vpop.f32.mrb[0].mxu0
        %v1647 = vadd.f32 0.0, %v1646
        %v1648 = vpop.f32.mrb[0].mxu0
        %v1649 = vpop.f32.mrb[0].mxu0
        %v1650 = vadd.f32 0.0, %v1649
        %v1651 = vpop.f32.mrb[0].mxu0
        %1652 = vdwg.mxu0
        %1653 = vmatprep.subr.bf16.mxu0 0
        %1654 = vmatpush1.bf16.msra.mxu0 %v1404
        %1655 = vmatprep.subr.bf16.mxu0 0
        %1656 = vmatpush1.bf16.msra.mxu0 %v1407
        %1657 = vmatprep.subr.bf16.mxu0 0
        %1658 = vmatpush1.bf16.msra.mxu0 %v1410
        %1659 = vmatprep.subr.bf16.mxu0 0
        %1660 = vmatpush1.bf16.msra.mxu0 %v1413
        %1661 = vmatprep.subr.bf16.mxu0 0
        %1662 = vmatpush1.bf16.msra.mxu0 %v1416
        %1663 = vmatprep.subr.bf16.mxu0 0
        %1664 = vmatpush1.bf16.msra.mxu0 %v1419
        %1665 = vmatprep.subr.bf16.mxu0 0
        %1666 = vmatpush1.bf16.msra.mxu0 %v1422
        %1667 = vmatprep.subr.bf16.mxu0 0
        %1668 = vmatpush1.bf16.msra.mxu0 %v1425
        %1669 = vmatprep.subr.bf16.mxu0 0
        %1670 = vmatpush1.bf16.msra.mxu0 %v1428
        %1671 = vmatprep.subr.bf16.mxu0 0
        %1672 = vmatpush1.bf16.msra.mxu0 %v1431
        %1673 = vmatprep.subr.bf16.mxu0 0
        %1674 = vmatpush1.bf16.msra.mxu0 %v1434
        %1675 = vmatprep.subr.bf16.mxu0 0
        %1676 = vmatpush1.bf16.msra.mxu0 %v1437
        %1677 = vmatprep.subr.bf16.mxu0 0
        %1678 = vmatpush1.bf16.msra.mxu0 0
        %1679 = vmatprep.subr.bf16.mxu0 0
        %1680 = vmatpush1.bf16.msra.mxu0 0
        %1681 = vmatprep.subr.bf16.mxu0 0
        %1682 = vmatpush1.bf16.msra.mxu0 0
        %1683 = vmatprep.subr.bf16.mxu0 0
        %1684 = vmatpush1.bf16.msra.mxu0 0
        %1685 = vmatprep.mubr.bf16.mxu0 %v1524
        %1686 = vmatmul.mubr.bf16.gmra.mrb[0].mxu0 %v1063
        %v1687 = vpop.f32.mrb[0].mxu0
        %v1688 = vadd.f32 %v1647, %v1687
        %v1689 = vpop.f32.mrb[0].mxu0
        %v1690 = vpop.f32.mrb[0].mxu0
        %v1691 = vadd.f32 %v1650, %v1690
        %v1692 = vpop.f32.mrb[0].mxu0
        %1693 = vdwg.mxu0
        %v1806 = vunpack.c.l.b16 %v818
        %v1807 = vunpack.c.h.b16 %v818
        %v1808 = vunpack.c.l.b16 %v819
        %v1809 = vunpack.c.l.b16 %v820
        %v1810 = vunpack.c.h.b16 %v820
        %v1811 = vunpack.c.l.b16 %v821
        %v1812 = vunpack.c.l.b16 %v822
        %v1813 = vunpack.c.h.b16 %v822
        %v1814 = vunpack.c.l.b16 %v823
        %v1815 = vunpack.c.l.b16 %v824
        %v1816 = vunpack.c.h.b16 %v824
        %v1817 = vunpack.c.l.b16 %v825
        %v1818 = vunpack.c.l.b16 %v826
        %v1819 = vunpack.c.h.b16 %v826
        %v1820 = vunpack.c.l.b16 %v827
        %v1821 = vunpack.c.l.b16 %v828
        %v1822 = vunpack.c.h.b16 %v828
        %v1823 = vunpack.c.l.b16 %v829
        %v1824 = vunpack.c.l.b16 %v830
        %v1825 = vunpack.c.h.b16 %v830
        %v1826 = vunpack.c.l.b16 %v831
        %v1827 = vunpack.c.l.b16 %v832
        %v1828 = vunpack.c.h.b16 %v832
        %v1829 = vunpack.c.l.b16 %v833
        %v1830 = vunpack.c.l.b16 %v834
        %v1831 = vunpack.c.h.b16 %v834
        %v1832 = vunpack.c.l.b16 %v835
        %v1833 = vunpack.c.l.b16 %v836
        %v1834 = vunpack.c.h.b16 %v836
        %v1835 = vunpack.c.l.b16 %v837
        %v1836 = vunpack.c.l.b16 %v838
        %v1837 = vunpack.c.h.b16 %v838
        %v1838 = vunpack.c.l.b16 %v839
        %v1839 = vunpack.c.l.b16 %v840
        %v1840 = vunpack.c.h.b16 %v840
        %v1841 = vunpack.c.l.b16 %v841
        %v1842 = vunpack.c.l.b16 %v842
        %v1843 = vunpack.c.h.b16 %v842
        %v1844 = vunpack.c.l.b16 %v843
        %v1845 = vunpack.c.l.b16 %v844
        %v1846 = vunpack.c.h.b16 %v844
        %v1847 = vunpack.c.l.b16 %v845
        %v1848 = vunpack.c.l.b16 %v846
        %v1849 = vunpack.c.h.b16 %v846
        %v1850 = vunpack.c.l.b16 %v847
        %v1851 = vunpack.c.l.b16 %v848
        %v1852 = vunpack.c.h.b16 %v848
        %v1853 = vunpack.c.l.b16 %v849
        %v1854 = vunpack.c.l.b16 %v850
        %v1855 = vunpack.c.h.b16 %v850
        %v1856 = vunpack.c.l.b16 %v851
        %v1857 = vunpack.c.l.b16 %v852
        %v1858 = vunpack.c.h.b16 %v852
        %v1859 = vunpack.c.l.b16 %v853
        %v1860 = vunpack.c.l.b16 %v854
        %v1861 = vunpack.c.h.b16 %v854
        %v1862 = vunpack.c.l.b16 %v855
        %v1863 = vunpack.c.l.b16 %v856
        %v1864 = vunpack.c.h.b16 %v856
        %v1865 = vunpack.c.l.b16 %v857
        %v1866 = vunpack.c.l.b16 %v858
        %v1867 = vunpack.c.h.b16 %v858
        %v1868 = vunpack.c.l.b16 %v859
        %v1869 = vunpack.c.l.b16 %v860
        %v1870 = vunpack.c.h.b16 %v860
        %v1871 = vunpack.c.l.b16 %v861
        %v1872 = vunpack.c.l.b16 %v862
        %v1873 = vunpack.c.h.b16 %v862
        %v1874 = vunpack.c.l.b16 %v863
        %v1875 = vunpack.c.l.b16 %v864
        %v1876 = vunpack.c.h.b16 %v864
        %v1877 = vunpack.c.l.b16 %v865
        %v1878 = vunpack.c.l.b16 %v866
        %v1879 = vunpack.c.h.b16 %v866
        %v1880 = vunpack.c.l.b16 %v867
        %v1881 = vunpack.c.l.b16 %v868
        %v1882 = vunpack.c.h.b16 %v868
        %v1883 = vunpack.c.l.b16 %v869
        %v1884 = vunpack.c.l.b16 %v870
        %v1885 = vunpack.c.h.b16 %v870
        %v1886 = vunpack.c.l.b16 %v871
        %v1887 = vunpack.c.l.b16 %v872
        %v1888 = vunpack.c.h.b16 %v872
        %v1889 = vunpack.c.l.b16 %v873
        %v1890 = vunpack.c.l.b16 %v874
        %v1891 = vunpack.c.h.b16 %v874
        %v1892 = vunpack.c.l.b16 %v875
        %v1893 = vunpack.c.l.b16 %v876
        %v1894 = vunpack.c.h.b16 %v876
        %v1895 = vunpack.c.l.b16 %v877
        %v1896 = vunpack.c.l.b16 %v878
        %v1897 = vunpack.c.h.b16 %v878
        %v1898 = vunpack.c.l.b16 %v879
        %v1899 = vunpack.c.l.b16 %v880
        %v1900 = vunpack.c.h.b16 %v880
        %v1901 = vunpack.c.l.b16 %v881
        %v1902 = vunpack.c.l.b16 %v882
        %v1903 = vunpack.c.h.b16 %v882
        %v1904 = vunpack.c.l.b16 %v883
        %v1905 = vunpack.c.l.b16 %v884
        %v1906 = vunpack.c.h.b16 %v884
        %v1907 = vunpack.c.l.b16 %v885
        %v1908 = vunpack.c.l.b16 %v886
        %v1909 = vunpack.c.h.b16 %v886
        %v1910 = vunpack.c.l.b16 %v887
        %v1911 = vunpack.c.l.b16 %v888
        %v1912 = vunpack.c.h.b16 %v888
        %v1913 = vunpack.c.l.b16 %v889
        %v1914 = vunpack.c.l.b16 %v890
        %v1915 = vunpack.c.h.b16 %v890
        %v1916 = vunpack.c.l.b16 %v891
        %v1917 = vunpack.c.l.b16 %v892
        %v1918 = vunpack.c.h.b16 %v892
        %v1919 = vunpack.c.l.b16 %v893
        %v1920 = vunpack.c.l.b16 %v894
        %v1921 = vunpack.c.h.b16 %v894
        %v1922 = vunpack.c.l.b16 %v895
        %v1923 = vunpack.c.l.b16 %v896
        %v1924 = vunpack.c.h.b16 %v896
        %v1925 = vunpack.c.l.b16 %v897
        %v1926 = vunpack.c.l.b16 %v898
        %v1927 = vunpack.c.h.b16 %v898
        %v1928 = vunpack.c.l.b16 %v899
        %v1929 = vunpack.c.l.b16 %v900
        %v1930 = vunpack.c.h.b16 %v900
        %v1931 = vunpack.c.l.b16 %v901
        %v1932 = vunpack.c.l.b16 %v902
        %v1933 = vunpack.c.h.b16 %v902
        %v1934 = vunpack.c.l.b16 %v903
        %v1935 = vunpack.c.l.b16 %v904
        %v1936 = vunpack.c.h.b16 %v904
        %v1937 = vunpack.c.l.b16 %v905
        %v1938 = vunpack.c.l.b16 %v906
        %v1939 = vunpack.c.h.b16 %v906
        %v1940 = vunpack.c.l.b16 %v907
        %v1941 = vunpack.c.l.b16 %v908
        %v1942 = vunpack.c.h.b16 %v908
        %v1943 = vunpack.c.l.b16 %v909
        %v1944 = vunpack.c.l.b16 %v910
        %v1945 = vunpack.c.h.b16 %v910
        %v1946 = vunpack.c.l.b16 %v911
        %v1947 = vunpack.c.l.b16 %v912
        %v1948 = vunpack.c.h.b16 %v912
        %v1949 = vunpack.c.l.b16 %v913
        %v1950 = vunpack.c.l.b16 %v914
        %v1951 = vunpack.c.h.b16 %v914
        %v1952 = vunpack.c.l.b16 %v915
        %v1953 = vunpack.c.l.b16 %v916
        %v1954 = vunpack.c.h.b16 %v916
        %v1955 = vunpack.c.l.b16 %v917
        %v1956 = vunpack.c.l.b16 %v918
        %v1957 = vunpack.c.h.b16 %v918
        %v1958 = vunpack.c.l.b16 %v919
        %v1959 = vunpack.c.l.b16 %v920
        %v1960 = vunpack.c.h.b16 %v920
        %v1961 = vunpack.c.l.b16 %v921
        %v1962 = vunpack.c.l.b16 %v922
        %v1963 = vunpack.c.h.b16 %v922
        %v1964 = vunpack.c.l.b16 %v923
        %v1965 = vunpack.c.l.b16 %v924
        %v1966 = vunpack.c.h.b16 %v924
        %v1967 = vunpack.c.l.b16 %v925
        %v1968 = vunpack.c.l.b16 %v926
        %v1969 = vunpack.c.h.b16 %v926
        %v1970 = vunpack.c.l.b16 %v927
        %v1971 = vunpack.c.l.b16 %v928
        %v1972 = vunpack.c.h.b16 %v928
        %v1973 = vunpack.c.l.b16 %v929
        %v1974 = vpack.c.b16 %v1809, %v1806
        %v1975 = vpack.c.b16 %v1810, %v1807
        %v1976 = vpack.c.b16 %v1811, %v1808
        %v1977 = vpack.c.b16 %v1815, %v1812
        %v1978 = vpack.c.b16 %v1816, %v1813
        %v1979 = vpack.c.b16 %v1817, %v1814
        %v1980 = vpack.c.b16 %v1821, %v1818
        %v1981 = vpack.c.b16 %v1822, %v1819
        %v1982 = vpack.c.b16 %v1823, %v1820
        %v1983 = vpack.c.b16 %v1827, %v1824
        %v1984 = vpack.c.b16 %v1828, %v1825
        %v1985 = vpack.c.b16 %v1829, %v1826
        %v1986 = vpack.c.b16 %v1833, %v1830
        %v1987 = vpack.c.b16 %v1834, %v1831
        %v1988 = vpack.c.b16 %v1835, %v1832
        %v1989 = vpack.c.b16 %v1839, %v1836
        %v1990 = vpack.c.b16 %v1840, %v1837
        %v1991 = vpack.c.b16 %v1841, %v1838
        %v1992 = vpack.c.b16 %v1845, %v1842
        %v1993 = vpack.c.b16 %v1846, %v1843
        %v1994 = vpack.c.b16 %v1847, %v1844
        %v1995 = vpack.c.b16 %v1851, %v1848
        %v1996 = vpack.c.b16 %v1852, %v1849
        %v1997 = vpack.c.b16 %v1853, %v1850
        %v1998 = vpack.c.b16 %v1857, %v1854
        %v1999 = vpack.c.b16 %v1858, %v1855
        %v2000 = vpack.c.b16 %v1859, %v1856
        %v2001 = vpack.c.b16 %v1863, %v1860
        %v2002 = vpack.c.b16 %v1864, %v1861
        %v2003 = vpack.c.b16 %v1865, %v1862
        %v2004 = vpack.c.b16 %v1869, %v1866
        %v2005 = vpack.c.b16 %v1870, %v1867
        %v2006 = vpack.c.b16 %v1871, %v1868
        %v2007 = vpack.c.b16 %v1875, %v1872
        %v2008 = vpack.c.b16 %v1876, %v1873
        %v2009 = vpack.c.b16 %v1877, %v1874
        %v2010 = vpack.c.b16 %v1881, %v1878
        %v2011 = vpack.c.b16 %v1882, %v1879
        %v2012 = vpack.c.b16 %v1883, %v1880
        %v2013 = vpack.c.b16 %v1887, %v1884
        %v2014 = vpack.c.b16 %v1888, %v1885
        %v2015 = vpack.c.b16 %v1889, %v1886
        %v2016 = vpack.c.b16 %v1893, %v1890
        %v2017 = vpack.c.b16 %v1894, %v1891
        %v2018 = vpack.c.b16 %v1895, %v1892
        %v2019 = vpack.c.b16 %v1899, %v1896
        %v2020 = vpack.c.b16 %v1900, %v1897
        %v2021 = vpack.c.b16 %v1901, %v1898
        %v2022 = vpack.c.b16 %v1905, %v1902
        %v2023 = vpack.c.b16 %v1906, %v1903
        %v2024 = vpack.c.b16 %v1907, %v1904
        %v2025 = vpack.c.b16 %v1911, %v1908
        %v2026 = vpack.c.b16 %v1912, %v1909
        %v2027 = vpack.c.b16 %v1913, %v1910
        %v2028 = vpack.c.b16 %v1917, %v1914
        %v2029 = vpack.c.b16 %v1918, %v1915
        %v2030 = vpack.c.b16 %v1919, %v1916
        %v2031 = vpack.c.b16 %v1923, %v1920
        %v2032 = vpack.c.b16 %v1924, %v1921
        %v2033 = vpack.c.b16 %v1925, %v1922
        %v2034 = vpack.c.b16 %v1929, %v1926
        %v2035 = vpack.c.b16 %v1930, %v1927
        %v2036 = vpack.c.b16 %v1931, %v1928
        %v2037 = vpack.c.b16 %v1935, %v1932
        %v2038 = vpack.c.b16 %v1936, %v1933
        %v2039 = vpack.c.b16 %v1937, %v1934
        %v2040 = vpack.c.b16 %v1941, %v1938
        %v2041 = vpack.c.b16 %v1942, %v1939
        %v2042 = vpack.c.b16 %v1943, %v1940
        %v2043 = vpack.c.b16 %v1947, %v1944
        %v2044 = vpack.c.b16 %v1948, %v1945
        %v2045 = vpack.c.b16 %v1949, %v1946
        %v2046 = vpack.c.b16 %v1953, %v1950
        %v2047 = vpack.c.b16 %v1954, %v1951
        %v2048 = vpack.c.b16 %v1955, %v1952
        %v2049 = vpack.c.b16 %v1959, %v1956
        %v2050 = vpack.c.b16 %v1960, %v1957
        %v2051 = vpack.c.b16 %v1961, %v1958
        %v2052 = vpack.c.b16 %v1965, %v1962
        %v2053 = vpack.c.b16 %v1966, %v1963
        %v2054 = vpack.c.b16 %v1967, %v1964
        %v2055 = vpack.c.b16 %v1971, %v1968
        %v2056 = vpack.c.b16 %v1972, %v1969
        %v2057 = vpack.c.b16 %v1973, %v1970
        %v2142 = vsel %vm1522, %v817, 0
        %2144 = vmatprep.subr.bf16.mxu0 %v1975
        %2145 = vmatpush1.bf16.msra.mxu0 %v1974
        %2146 = vmatprep.subr.bf16.mxu0 %v1978
        %2147 = vmatpush1.bf16.msra.mxu0 %v1977
        %2148 = vmatprep.subr.bf16.mxu0 %v1981
        %2149 = vmatpush1.bf16.msra.mxu0 %v1980
        %2150 = vmatprep.subr.bf16.mxu0 %v1984
        %2151 = vmatpush1.bf16.msra.mxu0 %v1983
        %2152 = vmatprep.subr.bf16.mxu0 %v1987
        %2153 = vmatpush1.bf16.msra.mxu0 %v1986
        %2154 = vmatprep.subr.bf16.mxu0 %v1990
        %2155 = vmatpush1.bf16.msra.mxu0 %v1989
        %2156 = vmatprep.subr.bf16.mxu0 %v1993
        %2157 = vmatpush1.bf16.msra.mxu0 %v1992
        %2158 = vmatprep.subr.bf16.mxu0 %v1996
        %2159 = vmatpush1.bf16.msra.mxu0 %v1995
        %2160 = vmatprep.subr.bf16.mxu0 %v1999
        %2161 = vmatpush1.bf16.msra.mxu0 %v1998
        %2162 = vmatprep.subr.bf16.mxu0 %v2002
        %2163 = vmatpush1.bf16.msra.mxu0 %v2001
        %2164 = vmatprep.subr.bf16.mxu0 %v2005
        %2165 = vmatpush1.bf16.msra.mxu0 %v2004
        %2166 = vmatprep.subr.bf16.mxu0 %v2008
        %2167 = vmatpush1.bf16.msra.mxu0 %v2007
        %2168 = vmatprep.subr.bf16.mxu0 %v2011
        %2169 = vmatpush1.bf16.msra.mxu0 %v2010
        %2170 = vmatprep.subr.bf16.mxu0 %v2014
        %2171 = vmatpush1.bf16.msra.mxu0 %v2013
        %2172 = vmatprep.subr.bf16.mxu0 %v2017
        %2173 = vmatpush1.bf16.msra.mxu0 %v2016
        %2174 = vmatprep.subr.bf16.mxu0 %v2020
        %2175 = vmatpush1.bf16.msra.mxu0 %v2019
        %2176 = vmatprep.mubr.bf16.mxu0 %v815
        %2177 = vmatmul.mubr.bf16.gmra.mrb[0].mxu0 %v814
        %v2178 = vpop.f32.mrb[0].mxu0
        %v2179 = vadd.f32 %v1604, %v2178
        %v2180 = vpop.f32.mrb[0].mxu0
        %v2181 = vadd.f32 %v1606, %v2180
        %v2182 = vpop.f32.mrb[0].mxu0
        %v2183 = vadd.f32 %v1608, %v2182
        %v2184 = vpop.f32.mrb[0].mxu0
        %v2185 = vadd.f32 %v1610, %v2184
        %2186 = vdwg.mxu0
        %2187 = vmatprep.subr.bf16.mxu0 %v2023
        %2188 = vmatpush1.bf16.msra.mxu0 %v2022
        %2189 = vmatprep.subr.bf16.mxu0 %v2026
        %2190 = vmatpush1.bf16.msra.mxu0 %v2025
        %2191 = vmatprep.subr.bf16.mxu0 %v2029
        %2192 = vmatpush1.bf16.msra.mxu0 %v2028
        %2193 = vmatprep.subr.bf16.mxu0 %v2032
        %2194 = vmatpush1.bf16.msra.mxu0 %v2031
        %2195 = vmatprep.subr.bf16.mxu0 %v2035
        %2196 = vmatpush1.bf16.msra.mxu0 %v2034
        %2197 = vmatprep.subr.bf16.mxu0 %v2038
        %2198 = vmatpush1.bf16.msra.mxu0 %v2037
        %2199 = vmatprep.subr.bf16.mxu0 %v2041
        %2200 = vmatpush1.bf16.msra.mxu0 %v2040
        %2201 = vmatprep.subr.bf16.mxu0 %v2044
        %2202 = vmatpush1.bf16.msra.mxu0 %v2043
        %2203 = vmatprep.subr.bf16.mxu0 %v2047
        %2204 = vmatpush1.bf16.msra.mxu0 %v2046
        %2205 = vmatprep.subr.bf16.mxu0 %v2050
        %2206 = vmatpush1.bf16.msra.mxu0 %v2049
        %2207 = vmatprep.subr.bf16.mxu0 %v2053
        %2208 = vmatpush1.bf16.msra.mxu0 %v2052
        %2209 = vmatprep.subr.bf16.mxu0 %v2056
        %2210 = vmatpush1.bf16.msra.mxu0 %v2055
        %2211 = vmatprep.subr.bf16.mxu0 0
        %2212 = vmatpush1.bf16.msra.mxu0 0
        %2213 = vmatprep.subr.bf16.mxu0 0
        %2214 = vmatpush1.bf16.msra.mxu0 0
        %2215 = vmatprep.subr.bf16.mxu0 0
        %2216 = vmatpush1.bf16.msra.mxu0 0
        %2217 = vmatprep.subr.bf16.mxu0 0
        %2218 = vmatpush1.bf16.msra.mxu0 0
        %2219 = vmatprep.mubr.bf16.mxu0 %v2142
        %2220 = vmatmul.mubr.bf16.gmra.mrb[0].mxu0 %v816
        %v2221 = vpop.f32.mrb[0].mxu0
        %v2222 = vadd.f32 %v2179, %v2221
        %v2223 = vpop.f32.mrb[0].mxu0
        %v2224 = vadd.f32 %v2181, %v2223
        %v2225 = vpop.f32.mrb[0].mxu0
        %v2226 = vadd.f32 %v2183, %v2225
        %v2227 = vpop.f32.mrb[0].mxu0
        %v2228 = vadd.f32 %v2185, %v2227
        %2229 = vdwg.mxu0
        %2230 = vmatprep.subr.bf16.mxu0 0
        %2231 = vmatpush1.bf16.msra.mxu0 %v1976
        %2232 = vmatprep.subr.bf16.mxu0 0
        %2233 = vmatpush1.bf16.msra.mxu0 %v1979
        %2234 = vmatprep.subr.bf16.mxu0 0
        %2235 = vmatpush1.bf16.msra.mxu0 %v1982
        %2236 = vmatprep.subr.bf16.mxu0 0
        %2237 = vmatpush1.bf16.msra.mxu0 %v1985
        %2238 = vmatprep.subr.bf16.mxu0 0
        %2239 = vmatpush1.bf16.msra.mxu0 %v1988
        %2240 = vmatprep.subr.bf16.mxu0 0
        %2241 = vmatpush1.bf16.msra.mxu0 %v1991
        %2242 = vmatprep.subr.bf16.mxu0 0
        %2243 = vmatpush1.bf16.msra.mxu0 %v1994
        %2244 = vmatprep.subr.bf16.mxu0 0
        %2245 = vmatpush1.bf16.msra.mxu0 %v1997
        %2246 = vmatprep.subr.bf16.mxu0 0
        %2247 = vmatpush1.bf16.msra.mxu0 %v2000
        %2248 = vmatprep.subr.bf16.mxu0 0
        %2249 = vmatpush1.bf16.msra.mxu0 %v2003
        %2250 = vmatprep.subr.bf16.mxu0 0
        %2251 = vmatpush1.bf16.msra.mxu0 %v2006
        %2252 = vmatprep.subr.bf16.mxu0 0
        %2253 = vmatpush1.bf16.msra.mxu0 %v2009
        %2254 = vmatprep.subr.bf16.mxu0 0
        %2255 = vmatpush1.bf16.msra.mxu0 %v2012
        %2256 = vmatprep.subr.bf16.mxu0 0
        %2257 = vmatpush1.bf16.msra.mxu0 %v2015
        %2258 = vmatprep.subr.bf16.mxu0 0
        %2259 = vmatpush1.bf16.msra.mxu0 %v2018
        %2260 = vmatprep.subr.bf16.mxu0 0
        %2261 = vmatpush1.bf16.msra.mxu0 %v2021
        %2262 = vmatprep.mubr.bf16.mxu0 %v815
        %2263 = vmatmul.mubr.bf16.gmra.mrb[0].mxu0 %v814
        %v2264 = vpop.f32.mrb[0].mxu0
        %v2265 = vadd.f32 %v1688, %v2264
        %v2266 = vpop.f32.mrb[0].mxu0
        %v2267 = vpop.f32.mrb[0].mxu0
        %v2268 = vadd.f32 %v1691, %v2267
        %v2269 = vpop.f32.mrb[0].mxu0
        %2270 = vdwg.mxu0
        %2271 = vmatprep.subr.bf16.mxu0 0
        %2272 = vmatpush1.bf16.msra.mxu0 %v2024
        %2273 = vmatprep.subr.bf16.mxu0 0
        %2274 = vmatpush1.bf16.msra.mxu0 %v2027
        %2275 = vmatprep.subr.bf16.mxu0 0
        %2276 = vmatpush1.bf16.msra.mxu0 %v2030
        %2277 = vmatprep.subr.bf16.mxu0 0
        %2278 = vmatpush1.bf16.msra.mxu0 %v2033
        %2279 = vmatprep.subr.bf16.mxu0 0
        %2280 = vmatpush1.bf16.msra.mxu0 %v2036
        %2281 = vmatprep.subr.bf16.mxu0 0
        %2282 = vmatpush1.bf16.msra.mxu0 %v2039
        %2283 = vmatprep.subr.bf16.mxu0 0
        %2284 = vmatpush1.bf16.msra.mxu0 %v2042
        %2285 = vmatprep.subr.bf16.mxu0 0
        %2286 = vmatpush1.bf16.msra.mxu0 %v2045
        %2287 = vmatprep.subr.bf16.mxu0 0
        %2288 = vmatpush1.bf16.msra.mxu0 %v2048
        %2289 = vmatprep.subr.bf16.mxu0 0
        %2290 = vmatpush1.bf16.msra.mxu0 %v2051
        %2291 = vmatprep.subr.bf16.mxu0 0
        %2292 = vmatpush1.bf16.msra.mxu0 %v2054
        %2293 = vmatprep.subr.bf16.mxu0 0
        %2294 = vmatpush1.bf16.msra.mxu0 %v2057
        %2295 = vmatprep.subr.bf16.mxu0 0
        %2296 = vmatpush1.bf16.msra.mxu0 0
        %2297 = vmatprep.subr.bf16.mxu0 0
        %2298 = vmatpush1.bf16.msra.mxu0 0
        %2299 = vmatprep.subr.bf16.mxu0 0
        %2300 = vmatpush1.bf16.msra.mxu0 0
        %2301 = vmatprep.subr.bf16.mxu0 0
        %2302 = vmatpush1.bf16.msra.mxu0 0
        %2303 = vmatprep.mubr.bf16.mxu0 %v2142
        %2304 = vmatmul.mubr.bf16.gmra.mrb[0].mxu0 %v816
        %v2305 = vpop.f32.mrb[0].mxu0
        %v2306 = vadd.f32 %v2265, %v2305
        %v2307 = vpop.f32.mrb[0].mxu0
        %v2308 = vpop.f32.mrb[0].mxu0
        %v2309 = vadd.f32 %v2268, %v2308
        %v2310 = vpop.f32.mrb[0].mxu0
        %2311 = vdwg.mxu0
        %s2312 = scalar_lea.vmem [#allocation5], 1344
        %v2313 = vld [vmem:[%s2312] sm:$0xff]
        %v2314 = vld [vmem:[%s2312 + $0x8] sm:$0xf]
        %v2315 = vld [vmem:[%s2312 + $0xc] sm:$0xff]
        %v2316 = vld [vmem:[%s2312 + $0x14] sm:$0xf]
        %v2317 = vld [vmem:[%s2312 + $0x18] sm:$0xff]
        %v2318 = vld [vmem:[%s2312 + $0x20] sm:$0xf]
        %v2319 = vld [vmem:[%s2312 + $0x24] sm:$0xff]
        %v2320 = vld [vmem:[%s2312 + $0x2c] sm:$0xf]
        %v2321 = vld [vmem:[%s2312 + $0x30] sm:$0xff]
        %v2322 = vld [vmem:[%s2312 + $0x38] sm:$0xf]
        %v2323 = vld [vmem:[%s2312 + $0x3c] sm:$0xff]
        %v2324 = vld [vmem:[%s2312 + $0x44] sm:$0xf]
        %v2325 = vld [vmem:[%s2312 + $0x48] sm:$0xff]
        %v2326 = vld [vmem:[%s2312 + $0x50] sm:$0xf]
        %v2327 = vld [vmem:[%s2312 + $0x54] sm:$0xff]
        %v2328 = vld [vmem:[%s2312 + $0x5c] sm:$0xf]
        %v2329 = vld [vmem:[%s2312 + $0x60] sm:$0xff]
        %v2330 = vld [vmem:[%s2312 + $0x68] sm:$0xf]
        %v2331 = vld [vmem:[%s2312 + $0x6c] sm:$0xff]
        %v2332 = vld [vmem:[%s2312 + $0x74] sm:$0xf]
        %v2333 = vld [vmem:[%s2312 + $0x78] sm:$0xff]
        %v2334 = vld [vmem:[%s2312 + $0x80] sm:$0xf]
        %v2335 = vld [vmem:[%s2312 + $0x84] sm:$0xff]
        %v2336 = vld [vmem:[%s2312 + $0x8c] sm:$0xf]
        %v2337 = vld [vmem:[%s2312 + $0x90] sm:$0xff]
        %v2338 = vld [vmem:[%s2312 + $0x98] sm:$0xf]
        %v2339 = vld [vmem:[%s2312 + $0x9c] sm:$0xff]
        %v2340 = vld [vmem:[%s2312 + $0xa4] sm:$0xf]
        %v2341 = vld [vmem:[%s2312 + $0xa8] sm:$0xff]
        %v2342 = vld [vmem:[%s2312 + $0xb0] sm:$0xf]
        %v2343 = vld [vmem:[%s2312 + $0xb4] sm:$0xff]
        %v2344 = vld [vmem:[%s2312 + $0xbc] sm:$0xf]
        %v2345 = vld [vmem:[%s2312 + $0xc0] sm:$0xff]
        %v2346 = vld [vmem:[%s2312 + $0xc8] sm:$0xf]
        %v2347 = vld [vmem:[%s2312 + $0xcc] sm:$0xff]
        %v2348 = vld [vmem:[%s2312 + $0xd4] sm:$0xf]
        %v2349 = vld [vmem:[%s2312 + $0xd8] sm:$0xff]
        %v2350 = vld [vmem:[%s2312 + $0xe0] sm:$0xf]
        %v2351 = vld [vmem:[%s2312 + $0xe4] sm:$0xff]
        %v2352 = vld [vmem:[%s2312 + $0xec] sm:$0xf]
        %v2353 = vld [vmem:[%s2312 + $0xf0] sm:$0xff]
        %v2354 = vld [vmem:[%s2312 + $0xf8] sm:$0xf]
        %v2355 = vld [vmem:[%s2312 + $0xfc] sm:$0xff]
        %v2356 = vld [vmem:[%s2312 + $0x104] sm:$0xf]
        %v2357 = vld [vmem:[%s2312 + $0x108] sm:$0xff]
        %v2358 = vld [vmem:[%s2312 + $0x110] sm:$0xf]
        %v2359 = vld [vmem:[%s2312 + $0x114] sm:$0xff]
        %v2360 = vld [vmem:[%s2312 + $0x11c] sm:$0xf]
        %v2361 = vld [vmem:[%s2312 + $0x120] sm:$0xff]
        %v2362 = vld [vmem:[%s2312 + $0x128] sm:$0xf]
        %v2363 = vld [vmem:[%s2312 + $0x12c] sm:$0xff]
        %v2364 = vld [vmem:[%s2312 + $0x134] sm:$0xf]
        %v2365 = vld [vmem:[%s2312 + $0x138] sm:$0xff]
        %v2366 = vld [vmem:[%s2312 + $0x140] sm:$0xf]
        %v2367 = vld [vmem:[%s2312 + $0x144] sm:$0xff]
        %v2368 = vld [vmem:[%s2312 + $0x14c] sm:$0xf]
        %v2369 = vld [vmem:[%s2312 + $0x150] sm:$0xff]
        %v2370 = vld [vmem:[%s2312 + $0x158] sm:$0xf]
        %v2371 = vld [vmem:[%s2312 + $0x15c] sm:$0xff]
        %v2372 = vld [vmem:[%s2312 + $0x164] sm:$0xf]
        %v2373 = vld [vmem:[%s2312 + $0x168] sm:$0xff]
        %v2374 = vld [vmem:[%s2312 + $0x170] sm:$0xf]
        %v2375 = vld [vmem:[%s2312 + $0x174] sm:$0xff]
        %v2376 = vld [vmem:[%s2312 + $0x17c] sm:$0xf]
        %v2377 = vld [vmem:[%s2312 + $0x180] sm:$0xff]
        %v2378 = vld [vmem:[%s2312 + $0x188] sm:$0xf]
        %v2379 = vld [vmem:[%s2312 + $0x18c] sm:$0xff]
        %v2380 = vld [vmem:[%s2312 + $0x194] sm:$0xf]
        %v2381 = vld [vmem:[%s2312 + $0x198] sm:$0xff]
        %v2382 = vld [vmem:[%s2312 + $0x1a0] sm:$0xf]
        %v2383 = vld [vmem:[%s2312 + $0x1a4] sm:$0xff]
        %v2384 = vld [vmem:[%s2312 + $0x1ac] sm:$0xf]
        %v2385 = vld [vmem:[%s2312 + $0x1b0] sm:$0xff]
        %v2386 = vld [vmem:[%s2312 + $0x1b8] sm:$0xf]
        %v2387 = vld [vmem:[%s2312 + $0x1bc] sm:$0xff]
        %v2388 = vld [vmem:[%s2312 + $0x1c4] sm:$0xf]
        %v2389 = vld [vmem:[%s2312 + $0x1c8] sm:$0xff]
        %v2390 = vld [vmem:[%s2312 + $0x1d0] sm:$0xf]
        %v2391 = vld [vmem:[%s2312 + $0x1d4] sm:$0xff]
        %v2392 = vld [vmem:[%s2312 + $0x1dc] sm:$0xf]
        %v2393 = vld [vmem:[%s2312 + $0x1e0] sm:$0xff]
        %v2394 = vld [vmem:[%s2312 + $0x1e8] sm:$0xf]
        %v2395 = vld [vmem:[%s2312 + $0x1ec] sm:$0xff]
        %v2396 = vld [vmem:[%s2312 + $0x1f4] sm:$0xf]
        %v2397 = vld [vmem:[%s2312 + $0x1f8] sm:$0xff]
        %v2398 = vld [vmem:[%s2312 + $0x200] sm:$0xf]
        %v2399 = vld [vmem:[%s2312 + $0x204] sm:$0xff]
        %v2400 = vld [vmem:[%s2312 + $0x20c] sm:$0xf]
        %v2401 = vld [vmem:[%s2312 + $0x210] sm:$0xff]
        %v2402 = vld [vmem:[%s2312 + $0x218] sm:$0xf]
        %v2403 = vld [vmem:[%s2312 + $0x21c] sm:$0xff]
        %v2404 = vld [vmem:[%s2312 + $0x224] sm:$0xf]
        %v2405 = vld [vmem:[%s2312 + $0x228] sm:$0xff]
        %v2406 = vld [vmem:[%s2312 + $0x230] sm:$0xf]
        %v2407 = vld [vmem:[%s2312 + $0x234] sm:$0xff]
        %v2408 = vld [vmem:[%s2312 + $0x23c] sm:$0xf]
        %v2409 = vld [vmem:[%s2312 + $0x240] sm:$0xff]
        %v2410 = vld [vmem:[%s2312 + $0x248] sm:$0xf]
        %v2411 = vld [vmem:[%s2312 + $0x24c] sm:$0xff]
        %v2412 = vld [vmem:[%s2312 + $0x254] sm:$0xf]
        %v2413 = vld [vmem:[%s2312 + $0x258] sm:$0xff]
        %v2414 = vld [vmem:[%s2312 + $0x260] sm:$0xf]
        %v2415 = vld [vmem:[%s2312 + $0x264] sm:$0xff]
        %v2416 = vld [vmem:[%s2312 + $0x26c] sm:$0xf]
        %v2417 = vld [vmem:[%s2312 + $0x270] sm:$0xff]
        %v2418 = vld [vmem:[%s2312 + $0x278] sm:$0xf]
        %v2419 = vld [vmem:[%s2312 + $0x27c] sm:$0xff]
        %v2420 = vld [vmem:[%s2312 + $0x284] sm:$0xf]
        %v2421 = vld [vmem:[%s2312 + $0x288] sm:$0xff]
        %v2422 = vld [vmem:[%s2312 + $0x290] sm:$0xf]
        %v2423 = vld [vmem:[%s2312 + $0x294] sm:$0xff]
        %v2424 = vld [vmem:[%s2312 + $0x29c] sm:$0xf]
        %v2429 = vrot.slane %v814, 1
        %v2430 = vrot.slane %v815, 1
        %v2431 = vrot.slane %v816, 1
        %v2432 = vrot.slane %v817, 1
        %v2548 = vunpack.c.l.b16 %v2313
        %v2549 = vunpack.c.h.b16 %v2313
        %v2550 = vunpack.c.l.b16 %v2314
        %v2551 = vunpack.c.l.b16 %v2315
        %v2552 = vunpack.c.h.b16 %v2315
        %v2553 = vunpack.c.l.b16 %v2316
        %v2554 = vunpack.c.l.b16 %v2317
        %v2555 = vunpack.c.h.b16 %v2317
        %v2556 = vunpack.c.l.b16 %v2318
        %v2557 = vunpack.c.l.b16 %v2319
        %v2558 = vunpack.c.h.b16 %v2319
        %v2559 = vunpack.c.l.b16 %v2320
        %v2560 = vunpack.c.l.b16 %v2321
        %v2561 = vunpack.c.h.b16 %v2321
        %v2562 = vunpack.c.l.b16 %v2322
        %v2563 = vunpack.c.l.b16 %v2323
        %v2564 = vunpack.c.h.b16 %v2323
        %v2565 = vunpack.c.l.b16 %v2324
        %v2566 = vunpack.c.l.b16 %v2325
        %v2567 = vunpack.c.h.b16 %v2325
        %v2568 = vunpack.c.l.b16 %v2326
        %v2569 = vunpack.c.l.b16 %v2327
        %v2570 = vunpack.c.h.b16 %v2327
        %v2571 = vunpack.c.l.b16 %v2328
        %v2572 = vunpack.c.l.b16 %v2329
        %v2573 = vunpack.c.h.b16 %v2329
        %v2574 = vunpack.c.l.b16 %v2330
        %v2575 = vunpack.c.l.b16 %v2331
        %v2576 = vunpack.c.h.b16 %v2331
        %v2577 = vunpack.c.l.b16 %v2332
        %v2578 = vunpack.c.l.b16 %v2333
        %v2579 = vunpack.c.h.b16 %v2333
        %v2580 = vunpack.c.l.b16 %v2334
        %v2581 = vunpack.c.l.b16 %v2335
        %v2582 = vunpack.c.h.b16 %v2335
        %v2583 = vunpack.c.l.b16 %v2336
        %v2584 = vunpack.c.l.b16 %v2337
        %v2585 = vunpack.c.h.b16 %v2337
        %v2586 = vunpack.c.l.b16 %v2338
        %v2587 = vunpack.c.l.b16 %v2339
        %v2588 = vunpack.c.h.b16 %v2339
        %v2589 = vunpack.c.l.b16 %v2340
        %v2590 = vunpack.c.l.b16 %v2341
        %v2591 = vunpack.c.h.b16 %v2341
        %v2592 = vunpack.c.l.b16 %v2342
        %v2593 = vunpack.c.l.b16 %v2343
        %v2594 = vunpack.c.h.b16 %v2343
        %v2595 = vunpack.c.l.b16 %v2344
        %v2596 = vunpack.c.l.b16 %v2345
        %v2597 = vunpack.c.h.b16 %v2345
        %v2598 = vunpack.c.l.b16 %v2346
        %v2599 = vunpack.c.l.b16 %v2347
        %v2600 = vunpack.c.h.b16 %v2347
        %v2601 = vunpack.c.l.b16 %v2348
        %v2602 = vunpack.c.l.b16 %v2349
        %v2603 = vunpack.c.h.b16 %v2349
        %v2604 = vunpack.c.l.b16 %v2350
        %v2605 = vunpack.c.l.b16 %v2351
        %v2606 = vunpack.c.h.b16 %v2351
        %v2607 = vunpack.c.l.b16 %v2352
        %v2608 = vunpack.c.l.b16 %v2353
        %v2609 = vunpack.c.h.b16 %v2353
        %v2610 = vunpack.c.l.b16 %v2354
        %v2611 = vunpack.c.l.b16 %v2355
        %v2612 = vunpack.c.h.b16 %v2355
        %v2613 = vunpack.c.l.b16 %v2356
        %v2614 = vunpack.c.l.b16 %v2357
        %v2615 = vunpack.c.h.b16 %v2357
        %v2616 = vunpack.c.l.b16 %v2358
        %v2617 = vunpack.c.l.b16 %v2359
        %v2618 = vunpack.c.h.b16 %v2359
        %v2619 = vunpack.c.l.b16 %v2360
        %v2620 = vunpack.c.l.b16 %v2361
        %v2621 = vunpack.c.h.b16 %v2361
        %v2622 = vunpack.c.l.b16 %v2362
        %v2623 = vunpack.c.l.b16 %v2363
        %v2624 = vunpack.c.h.b16 %v2363
        %v2625 = vunpack.c.l.b16 %v2364
        %v2626 = vunpack.c.l.b16 %v2365
        %v2627 = vunpack.c.h.b16 %v2365
        %v2628 = vunpack.c.l.b16 %v2366
        %v2629 = vunpack.c.l.b16 %v2367
        %v2630 = vunpack.c.h.b16 %v2367
        %v2631 = vunpack.c.l.b16 %v2368
        %v2632 = vunpack.c.l.b16 %v2369
        %v2633 = vunpack.c.h.b16 %v2369
        %v2634 = vunpack.c.l.b16 %v2370
        %v2635 = vunpack.c.l.b16 %v2371
        %v2636 = vunpack.c.h.b16 %v2371
        %v2637 = vunpack.c.l.b16 %v2372
        %v2638 = vunpack.c.l.b16 %v2373
        %v2639 = vunpack.c.h.b16 %v2373
        %v2640 = vunpack.c.l.b16 %v2374
        %v2641 = vunpack.c.l.b16 %v2375
        %v2642 = vunpack.c.h.b16 %v2375
        %v2643 = vunpack.c.l.b16 %v2376
        %v2644 = vunpack.c.l.b16 %v2377
        %v2645 = vunpack.c.h.b16 %v2377
        %v2646 = vunpack.c.l.b16 %v2378
        %v2647 = vunpack.c.l.b16 %v2379
        %v2648 = vunpack.c.h.b16 %v2379
        %v2649 = vunpack.c.l.b16 %v2380
        %v2650 = vunpack.c.l.b16 %v2381
        %v2651 = vunpack.c.h.b16 %v2381
        %v2652 = vunpack.c.l.b16 %v2382
        %v2653 = vunpack.c.l.b16 %v2383
        %v2654 = vunpack.c.h.b16 %v2383
        %v2655 = vunpack.c.l.b16 %v2384
        %v2656 = vunpack.c.l.b16 %v2385
        %v2657 = vunpack.c.h.b16 %v2385
        %v2658 = vunpack.c.l.b16 %v2386
        %v2659 = vunpack.c.l.b16 %v2387
        %v2660 = vunpack.c.h.b16 %v2387
        %v2661 = vunpack.c.l.b16 %v2388
        %v2662 = vunpack.c.l.b16 %v2389
        %v2663 = vunpack.c.h.b16 %v2389
        %v2664 = vunpack.c.l.b16 %v2390
        %v2665 = vunpack.c.l.b16 %v2391
        %v2666 = vunpack.c.h.b16 %v2391
        %v2667 = vunpack.c.l.b16 %v2392
        %v2668 = vunpack.c.l.b16 %v2393
        %v2669 = vunpack.c.h.b16 %v2393
        %v2670 = vunpack.c.l.b16 %v2394
        %v2671 = vunpack.c.l.b16 %v2395
        %v2672 = vunpack.c.h.b16 %v2395
        %v2673 = vunpack.c.l.b16 %v2396
        %v2674 = vunpack.c.l.b16 %v2397
        %v2675 = vunpack.c.h.b16 %v2397
        %v2676 = vunpack.c.l.b16 %v2398
        %v2677 = vunpack.c.l.b16 %v2399
        %v2678 = vunpack.c.h.b16 %v2399
        %v2679 = vunpack.c.l.b16 %v2400
        %v2680 = vunpack.c.l.b16 %v2401
        %v2681 = vunpack.c.h.b16 %v2401
        %v2682 = vunpack.c.l.b16 %v2402
        %v2683 = vunpack.c.l.b16 %v2403
        %v2684 = vunpack.c.h.b16 %v2403
        %v2685 = vunpack.c.l.b16 %v2404
        %v2686 = vunpack.c.l.b16 %v2405
        %v2687 = vunpack.c.h.b16 %v2405
        %v2688 = vunpack.c.l.b16 %v2406
        %v2689 = vunpack.c.l.b16 %v2407
        %v2690 = vunpack.c.h.b16 %v2407
        %v2691 = vunpack.c.l.b16 %v2408
        %v2692 = vunpack.c.l.b16 %v2409
        %v2693 = vunpack.c.h.b16 %v2409
        %v2694 = vunpack.c.l.b16 %v2410
        %v2695 = vunpack.c.l.b16 %v2411
        %v2696 = vunpack.c.h.b16 %v2411
        %v2697 = vunpack.c.l.b16 %v2412
        %v2698 = vunpack.c.l.b16 %v2413
        %v2699 = vunpack.c.h.b16 %v2413
        %v2700 = vunpack.c.l.b16 %v2414
        %v2701 = vunpack.c.l.b16 %v2415
        %v2702 = vunpack.c.h.b16 %v2415
        %v2703 = vunpack.c.l.b16 %v2416
        %v2704 = vunpack.c.l.b16 %v2417
        %v2705 = vunpack.c.h.b16 %v2417
        %v2706 = vunpack.c.l.b16 %v2418
        %v2707 = vunpack.c.l.b16 %v2419
        %v2708 = vunpack.c.h.b16 %v2419
        %v2709 = vunpack.c.l.b16 %v2420
        %v2710 = vunpack.c.l.b16 %v2421
        %v2711 = vunpack.c.h.b16 %v2421
        %v2712 = vunpack.c.l.b16 %v2422
        %v2713 = vunpack.c.l.b16 %v2423
        %v2714 = vunpack.c.h.b16 %v2423
        %v2715 = vunpack.c.l.b16 %v2424
        %v2716 = vpack.c.b16 %v2551, %v2548
        %v2717 = vpack.c.b16 %v2552, %v2549
        %v2718 = vpack.c.b16 %v2553, %v2550
        %v2719 = vpack.c.b16 %v2557, %v2554
        %v2720 = vpack.c.b16 %v2558, %v2555
        %v2721 = vpack.c.b16 %v2559, %v2556
        %v2722 = vpack.c.b16 %v2563, %v2560
        %v2723 = vpack.c.b16 %v2564, %v2561
        %v2724 = vpack.c.b16 %v2565, %v2562
        %v2725 = vpack.c.b16 %v2569, %v2566
        %v2726 = vpack.c.b16 %v2570, %v2567
        %v2727 = vpack.c.b16 %v2571, %v2568
        %v2728 = vpack.c.b16 %v2575, %v2572
        %v2729 = vpack.c.b16 %v2576, %v2573
        %v2730 = vpack.c.b16 %v2577, %v2574
        %v2731 = vpack.c.b16 %v2581, %v2578
        %v2732 = vpack.c.b16 %v2582, %v2579
        %v2733 = vpack.c.b16 %v2583, %v2580
        %v2734 = vpack.c.b16 %v2587, %v2584
        %v2735 = vpack.c.b16 %v2588, %v2585
        %v2736 = vpack.c.b16 %v2589, %v2586
        %v2737 = vpack.c.b16 %v2593, %v2590
        %v2738 = vpack.c.b16 %v2594, %v2591
        %v2739 = vpack.c.b16 %v2595, %v2592
        %v2740 = vpack.c.b16 %v2599, %v2596
        %v2741 = vpack.c.b16 %v2600, %v2597
        %v2742 = vpack.c.b16 %v2601, %v2598
        %v2743 = vpack.c.b16 %v2605, %v2602
        %v2744 = vpack.c.b16 %v2606, %v2603
        %v2745 = vpack.c.b16 %v2607, %v2604
        %v2746 = vpack.c.b16 %v2611, %v2608
        %v2747 = vpack.c.b16 %v2612, %v2609
        %v2748 = vpack.c.b16 %v2613, %v2610
        %v2749 = vpack.c.b16 %v2617, %v2614
        %v2750 = vpack.c.b16 %v2618, %v2615
        %v2751 = vpack.c.b16 %v2619, %v2616
        %v2752 = vpack.c.b16 %v2623, %v2620
        %v2753 = vpack.c.b16 %v2624, %v2621
        %v2754 = vpack.c.b16 %v2625, %v2622
        %v2755 = vpack.c.b16 %v2629, %v2626
        %v2756 = vpack.c.b16 %v2630, %v2627
        %v2757 = vpack.c.b16 %v2631, %v2628
        %v2758 = vpack.c.b16 %v2635, %v2632
        %v2759 = vpack.c.b16 %v2636, %v2633
        %v2760 = vpack.c.b16 %v2637, %v2634
        %v2761 = vpack.c.b16 %v2641, %v2638
        %v2762 = vpack.c.b16 %v2642, %v2639
        %v2763 = vpack.c.b16 %v2643, %v2640
        %v2764 = vpack.c.b16 %v2647, %v2644
        %v2765 = vpack.c.b16 %v2648, %v2645
        %v2766 = vpack.c.b16 %v2649, %v2646
        %v2767 = vpack.c.b16 %v2653, %v2650
        %v2768 = vpack.c.b16 %v2654, %v2651
        %v2769 = vpack.c.b16 %v2655, %v2652
        %v2770 = vpack.c.b16 %v2659, %v2656
        %v2771 = vpack.c.b16 %v2660, %v2657
        %v2772 = vpack.c.b16 %v2661, %v2658
        %v2773 = vpack.c.b16 %v2665, %v2662
        %v2774 = vpack.c.b16 %v2666, %v2663
        %v2775 = vpack.c.b16 %v2667, %v2664
        %v2776 = vpack.c.b16 %v2671, %v2668
        %v2777 = vpack.c.b16 %v2672, %v2669
        %v2778 = vpack.c.b16 %v2673, %v2670
        %v2779 = vpack.c.b16 %v2677, %v2674
        %v2780 = vpack.c.b16 %v2678, %v2675
        %v2781 = vpack.c.b16 %v2679, %v2676
        %v2782 = vpack.c.b16 %v2683, %v2680
        %v2783 = vpack.c.b16 %v2684, %v2681
        %v2784 = vpack.c.b16 %v2685, %v2682
        %v2785 = vpack.c.b16 %v2689, %v2686
        %v2786 = vpack.c.b16 %v2690, %v2687
        %v2787 = vpack.c.b16 %v2691, %v2688
        %v2788 = vpack.c.b16 %v2695, %v2692
        %v2789 = vpack.c.b16 %v2696, %v2693
        %v2790 = vpack.c.b16 %v2697, %v2694
        %v2791 = vpack.c.b16 %v2701, %v2698
        %v2792 = vpack.c.b16 %v2702, %v2699
        %v2793 = vpack.c.b16 %v2703, %v2700
        %v2794 = vpack.c.b16 %v2707, %v2704
        %v2795 = vpack.c.b16 %v2708, %v2705
        %v2796 = vpack.c.b16 %v2709, %v2706
        %v2797 = vpack.c.b16 %v2713, %v2710
        %v2798 = vpack.c.b16 %v2714, %v2711
        %v2799 = vpack.c.b16 %v2715, %v2712
        %v2885 = vsel %vm1522, %v2432, 0
        %2887 = vmatprep.subr.bf16.mxu0 %v2717
        %2888 = vmatpush1.bf16.msra.mxu0 %v2716
        %2889 = vmatprep.subr.bf16.mxu0 %v2720
        %2890 = vmatpush1.bf16.msra.mxu0 %v2719
        %2891 = vmatprep.subr.bf16.mxu0 %v2723
        %2892 = vmatpush1.bf16.msra.mxu0 %v2722
        %2893 = vmatprep.subr.bf16.mxu0 %v2726
        %2894 = vmatpush1.bf16.msra.mxu0 %v2725
        %2895 = vmatprep.subr.bf16.mxu0 %v2729
        %2896 = vmatpush1.bf16.msra.mxu0 %v2728
        %2897 = vmatprep.subr.bf16.mxu0 %v2732
        %2898 = vmatpush1.bf16.msra.mxu0 %v2731
        %2899 = vmatprep.subr.bf16.mxu0 %v2735
        %2900 = vmatpush1.bf16.msra.mxu0 %v2734
        %2901 = vmatprep.subr.bf16.mxu0 %v2738
        %2902 = vmatpush1.bf16.msra.mxu0 %v2737
        %2903 = vmatprep.subr.bf16.mxu0 %v2741
        %2904 = vmatpush1.bf16.msra.mxu0 %v2740
        %2905 = vmatprep.subr.bf16.mxu0 %v2744
        %2906 = vmatpush1.bf16.msra.mxu0 %v2743
        %2907 = vmatprep.subr.bf16.mxu0 %v2747
        %2908 = vmatpush1.bf16.msra.mxu0 %v2746
        %2909 = vmatprep.subr.bf16.mxu0 %v2750
        %2910 = vmatpush1.bf16.msra.mxu0 %v2749
        %2911 = vmatprep.subr.bf16.mxu0 %v2753
        %2912 = vmatpush1.bf16.msra.mxu0 %v2752
        %2913 = vmatprep.subr.bf16.mxu0 %v2756
        %2914 = vmatpush1.bf16.msra.mxu0 %v2755
        %2915 = vmatprep.subr.bf16.mxu0 %v2759
        %2916 = vmatpush1.bf16.msra.mxu0 %v2758
        %2917 = vmatprep.subr.bf16.mxu0 %v2762
        %2918 = vmatpush1.bf16.msra.mxu0 %v2761
        %2919 = vmatprep.mubr.bf16.mxu0 %v2430
        %2920 = vmatmul.mubr.bf16.gmra.mrb[0].mxu0 %v2429
        %v2921 = vpop.f32.mrb[0].mxu0
        %v2922 = vadd.f32 0.0, %v2921
        %v2923 = vpop.f32.mrb[0].mxu0
        %v2924 = vadd.f32 0.0, %v2923
        %v2925 = vpop.f32.mrb[0].mxu0
        %v2926 = vadd.f32 0.0, %v2925
        %v2927 = vpop.f32.mrb[0].mxu0
        %v2928 = vadd.f32 0.0, %v2927
        %2929 = vdwg.mxu0
        %2930 = vmatprep.subr.bf16.mxu0 %v2765
        %2931 = vmatpush1.bf16.msra.mxu0 %v2764
        %2932 = vmatprep.subr.bf16.mxu0 %v2768
        %2933 = vmatpush1.bf16.msra.mxu0 %v2767
        %2934 = vmatprep.subr.bf16.mxu0 %v2771
        %2935 = vmatpush1.bf16.msra.mxu0 %v2770
        %2936 = vmatprep.subr.bf16.mxu0 %v2774
        %2937 = vmatpush1.bf16.msra.mxu0 %v2773
        %2938 = vmatprep.subr.bf16.mxu0 %v2777
        %2939 = vmatpush1.bf16.msra.mxu0 %v2776
        %2940 = vmatprep.subr.bf16.mxu0 %v2780
        %2941 = vmatpush1.bf16.msra.mxu0 %v2779
        %2942 = vmatprep.subr.bf16.mxu0 %v2783
        %2943 = vmatpush1.bf16.msra.mxu0 %v2782
        %2944 = vmatprep.subr.bf16.mxu0 %v2786
        %2945 = vmatpush1.bf16.msra.mxu0 %v2785
        %2946 = vmatprep.subr.bf16.mxu0 %v2789
        %2947 = vmatpush1.bf16.msra.mxu0 %v2788
        %2948 = vmatprep.subr.bf16.mxu0 %v2792
        %2949 = vmatpush1.bf16.msra.mxu0 %v2791
        %2950 = vmatprep.subr.bf16.mxu0 %v2795
        %2951 = vmatpush1.bf16.msra.mxu0 %v2794
        %2952 = vmatprep.subr.bf16.mxu0 %v2798
        %2953 = vmatpush1.bf16.msra.mxu0 %v2797
        %2954 = vmatprep.subr.bf16.mxu0 0
        %2955 = vmatpush1.bf16.msra.mxu0 0
        %2956 = vmatprep.subr.bf16.mxu0 0
        %2957 = vmatpush1.bf16.msra.mxu0 0
        %2958 = vmatprep.subr.bf16.mxu0 0
        %2959 = vmatpush1.bf16.msra.mxu0 0
        %2960 = vmatprep.subr.bf16.mxu0 0
        %2961 = vmatpush1.bf16.msra.mxu0 0
        %2962 = vmatprep.mubr.bf16.mxu0 %v2885
        %2963 = vmatmul.mubr.bf16.gmra.mrb[0].mxu0 %v2431
        %v2964 = vpop.f32.mrb[0].mxu0
        %v2965 = vadd.f32 %v2922, %v2964
        %v2966 = vpop.f32.mrb[0].mxu0
        %v2967 = vadd.f32 %v2924, %v2966
        %v2968 = vpop.f32.mrb[0].mxu0
        %v2969 = vadd.f32 %v2926, %v2968
        %v2970 = vpop.f32.mrb[0].mxu0
        %v2971 = vadd.f32 %v2928, %v2970
        %2972 = vdwg.mxu0
        %2973 = vmatprep.subr.bf16.mxu0 0
        %2974 = vmatpush1.bf16.msra.mxu0 %v2718
        %2975 = vmatprep.subr.bf16.mxu0 0
        %2976 = vmatpush1.bf16.msra.mxu0 %v2721
        %2977 = vmatprep.subr.bf16.mxu0 0
        %2978 = vmatpush1.bf16.msra.mxu0 %v2724
        %2979 = vmatprep.subr.bf16.mxu0 0
        %2980 = vmatpush1.bf16.msra.mxu0 %v2727
        %2981 = vmatprep.subr.bf16.mxu0 0
        %2982 = vmatpush1.bf16.msra.mxu0 %v2730
        %2983 = vmatprep.subr.bf16.mxu0 0
        %2984 = vmatpush1.bf16.msra.mxu0 %v2733
        %2985 = vmatprep.subr.bf16.mxu0 0
        %2986 = vmatpush1.bf16.msra.mxu0 %v2736
        %2987 = vmatprep.subr.bf16.mxu0 0
        %2988 = vmatpush1.bf16.msra.mxu0 %v2739
        %2989 = vmatprep.subr.bf16.mxu0 0
        %2990 = vmatpush1.bf16.msra.mxu0 %v2742
        %2991 = vmatprep.subr.bf16.mxu0 0
        %2992 = vmatpush1.bf16.msra.mxu0 %v2745
        %2993 = vmatprep.subr.bf16.mxu0 0
        %2994 = vmatpush1.bf16.msra.mxu0 %v2748
        %2995 = vmatprep.subr.bf16.mxu0 0
        %2996 = vmatpush1.bf16.msra.mxu0 %v2751
        %2997 = vmatprep.subr.bf16.mxu0 0
        %2998 = vmatpush1.bf16.msra.mxu0 %v2754
        %2999 = vmatprep.subr.bf16.mxu0 0
        %3000 = vmatpush1.bf16.msra.mxu0 %v2757
        %3001 = vmatprep.subr.bf16.mxu0 0
        %3002 = vmatpush1.bf16.msra.mxu0 %v2760
        %3003 = vmatprep.subr.bf16.mxu0 0
        %3004 = vmatpush1.bf16.msra.mxu0 %v2763
        %3005 = vmatprep.mubr.bf16.mxu0 %v2430
        %3006 = vmatmul.mubr.bf16.gmra.mrb[0].mxu0 %v2429
        %v3007 = vpop.f32.mrb[0].mxu0
        %v3008 = vadd.f32 0.0, %v3007
        %v3009 = vpop.f32.mrb[0].mxu0
        %v3010 = vpop.f32.mrb[0].mxu0
        %v3011 = vadd.f32 0.0, %v3010
        %v3012 = vpop.f32.mrb[0].mxu0
        %3013 = vdwg.mxu0
        %3014 = vmatprep.subr.bf16.mxu0 0
        %3015 = vmatpush1.bf16.msra.mxu0 %v2766
        %3016 = vmatprep.subr.bf16.mxu0 0
        %3017 = vmatpush1.bf16.msra.mxu0 %v2769
        %3018 = vmatprep.subr.bf16.mxu0 0
        %3019 = vmatpush1.bf16.msra.mxu0 %v2772
        %3020 = vmatprep.subr.bf16.mxu0 0
        %3021 = vmatpush1.bf16.msra.mxu0 %v2775
        %3022 = vmatprep.subr.bf16.mxu0 0
        %3023 = vmatpush1.bf16.msra.mxu0 %v2778
        %3024 = vmatprep.subr.bf16.mxu0 0
        %3025 = vmatpush1.bf16.msra.mxu0 %v2781
        %3026 = vmatprep.subr.bf16.mxu0 0
        %3027 = vmatpush1.bf16.msra.mxu0 %v2784
        %3028 = vmatprep.subr.bf16.mxu0 0
        %3029 = vmatpush1.bf16.msra.mxu0 %v2787
        %3030 = vmatprep.subr.bf16.mxu0 0
        %3031 = vmatpush1.bf16.msra.mxu0 %v2790
        %3032 = vmatprep.subr.bf16.mxu0 0
        %3033 = vmatpush1.bf16.msra.mxu0 %v2793
        %3034 = vmatprep.subr.bf16.mxu0 0
        %3035 = vmatpush1.bf16.msra.mxu0 %v2796
        %3036 = vmatprep.subr.bf16.mxu0 0
        %3037 = vmatpush1.bf16.msra.mxu0 %v2799
        %3038 = vmatprep.subr.bf16.mxu0 0
        %3039 = vmatpush1.bf16.msra.mxu0 0
        %3040 = vmatprep.subr.bf16.mxu0 0
        %3041 = vmatpush1.bf16.msra.mxu0 0
        %3042 = vmatprep.subr.bf16.mxu0 0
        %3043 = vmatpush1.bf16.msra.mxu0 0
        %3044 = vmatprep.subr.bf16.mxu0 0
        %3045 = vmatpush1.bf16.msra.mxu0 0
        %3046 = vmatprep.mubr.bf16.mxu0 %v2885
        %3047 = vmatmul.mubr.bf16.gmra.mrb[0].mxu0 %v2431
        %v3048 = vpop.f32.mrb[0].mxu0
        %v3049 = vadd.f32 %v3008, %v3048
        %v3050 = vpop.f32.mrb[0].mxu0
        %v3051 = vpop.f32.mrb[0].mxu0
        %v3052 = vadd.f32 %v3011, %v3051
        %v3053 = vpop.f32.mrb[0].mxu0
        %3054 = vdwg.mxu0
        %v3055 = vadd.f32 %v2222, %v2965
        %v3056 = vadd.f32 %v2224, %v2967
        %v3057 = vadd.f32 %v2306, %v3049
        %v3058 = vadd.f32 %v2226, %v2969
        %v3059 = vadd.f32 %v2228, %v2971
        %v3060 = vadd.f32 %v2309, %v3052
        %v3061 = vld [vmem:[%s4] sm:$0x7]
        %v3063 = vlaneseq
        %v3064 = vshrl.u32 %v3063, 7
        %v3065 = vsub.s32 0, %v3064
        %v3066 = vrot.slane %v3061, %v3065
        %v3067 = vlaneseq
        %v3068 = vshrl.u32 %v3067, 7
        %v3069 = vsub.s32 1, %v3068
        %v3070 = vrot.slane %v3061, %v3069
        %v3071 = vlaneseq
        %v3072 = vshrl.u32 %v3071, 7
        %v3073 = vsub.s32 2, %v3072
        %v3074 = vrot.slane %v3061, %v3073
        %v3078 = vadd.f32 %v3055, %v3066
        %v3079 = vadd.f32 %v3056, %v3070
        %v3080 = vadd.f32 %v3057, %v3074
        %v3081 = vadd.f32 %v3058, %v3066
        %v3082 = vadd.f32 %v3059, %v3070
        %v3083 = vadd.f32 %v3060, %v3074
        %v3084 = vmax.f32 %v3078, 0.0
        %v3085 = vmax.f32 %v3079, 0.0
        %v3086 = vmax.f32 %v3080, 0.0
        %v3087 = vmax.f32 %v3081, 0.0
        %v3088 = vmax.f32 %v3082, 0.0
        %v3089 = vmax.f32 %v3083, 0.0
        %vm3096 = vcmask 1046528
        %v3097 = vrot.slane %v3084, 1
        %v3098 = vrot.slane %v3087, 1
        %v3099 = vsel %vm3096, %v3097, %v3098
        %v3100 = vrot.slane %v3085, 1
        %v3101 = vrot.slane %v3088, 1
        %v3102 = vsel %vm3096, %v3100, %v3101
        %v3103 = vrot.slane %v3086, 1
        %v3104 = vrot.slane %v3089, 1
        %v3105 = vsel %vm3096, %v3103, %v3104
        %v3112 = vmax.f32 %v3084, %v3099
        %v3113 = vmax.f32 %v3085, %v3102
        %v3114 = vmax.f32 %v3086, %v3105
        %v3115 = vmax.f32 %v3087, %v3098
        %v3116 = vmax.f32 %v3088, %v3101
        %v3117 = vmax.f32 %v3089, %v3104
        %3124 = vrot.lane.b32.xlu0 %v3112, 96
        %v3125 = vpop.permute.xlu0 %3124
        %3126 = vrot.lane.b32.xlu0 %v3113, 96
        %v3127 = vpop.permute.xlu0 %3126
        %3128 = vrot.lane.b32.xlu0 %v3114, 96
        %v3129 = vpop.permute.xlu0 %3128
        %3130 = vrot.lane.b32.xlu0 %v3115, 96
        %v3131 = vpop.permute.xlu0 %3130
        %3132 = vrot.lane.b32.xlu0 %v3116, 96
        %v3133 = vpop.permute.xlu0 %3132
        %3134 = vrot.lane.b32.xlu0 %v3117, 96
        %v3135 = vpop.permute.xlu0 %3134
        %vm3136 = vcmask 785408
        %v3137 = vsel %vm3136, %v3125, %v3127
        %v3138 = vsel %vm3136, %v3127, %v3129
        %v3139 = vsel %vm3136, %v3131, %v3133
        %v3140 = vsel %vm3136, %v3133, %v3135
        %v3147 = vmax.f32 %v3112, %v3137
        %v3148 = vmax.f32 %v3113, %v3138
        %v3149 = vmax.f32 %v3114, %v3129
        %v3150 = vmax.f32 %v3115, %v3139
        %v3151 = vmax.f32 %v3116, %v3140
        %v3152 = vmax.f32 %v3117, %v3135
        %v3153 = vpack.c.bf16 %v3147, %v3147
        %v3154 = vpack.c.bf16 %v3148, %v3148
        %v3155 = vpack.c.bf16 %v3149, %v3149
        %v3156 = vld [vmem:[%s5] sm:$0xf]
        %v3157 = vld [vmem:[%s5 + $0x4] sm:$0xf]
        %v3158 = vld [vmem:[%s5 + $0x8] sm:$0xf]
        %v3159 = vld [vmem:[%s5 + $0xc] sm:$0xf]
        %v3160 = vld [vmem:[%s5 + $0x10] sm:$0xf]
        %v3161 = vld [vmem:[%s5 + $0x14] sm:$0xf]
        %v3162 = vld [vmem:[%s5 + $0x18] sm:$0xf]
        %v3163 = vld [vmem:[%s5 + $0x1c] sm:$0xf]
        %v3164 = vld [vmem:[%s5 + $0x20] sm:$0xf]
        %v3165 = vld [vmem:[%s5 + $0x24] sm:$0xf]
        %v3166 = vld [vmem:[%s5 + $0x28] sm:$0xf]
        %v3167 = vld [vmem:[%s5 + $0x2c] sm:$0xf]
        %v3168 = vld [vmem:[%s5 + $0x30] sm:$0xf]
        %v3169 = vld [vmem:[%s5 + $0x34] sm:$0xf]
        %v3170 = vld [vmem:[%s5 + $0x38] sm:$0xf]
        %v3171 = vld [vmem:[%s5 + $0x3c] sm:$0xf]
        %v3172 = vld [vmem:[%s5 + $0x40] sm:$0xf]
        %v3173 = vld [vmem:[%s5 + $0x44] sm:$0xf]
        %v3174 = vld [vmem:[%s5 + $0x48] sm:$0xf]
        %v3175 = vld [vmem:[%s5 + $0x4c] sm:$0xf]
        %v3176 = vld [vmem:[%s5 + $0x50] sm:$0xf]
        %v3177 = vld [vmem:[%s5 + $0x54] sm:$0xf]
        %v3178 = vld [vmem:[%s5 + $0x58] sm:$0xf]
        %v3179 = vld [vmem:[%s5 + $0x5c] sm:$0xf]
        %v3180 = vld [vmem:[%s5 + $0x60] sm:$0xf]
        %v3181 = vld [vmem:[%s5 + $0x64] sm:$0xf]
        %v3182 = vld [vmem:[%s5 + $0x68] sm:$0xf]
        %v3183 = vld [vmem:[%s5 + $0x6c] sm:$0xf]
        %v3184 = vld [vmem:[%s5 + $0x70] sm:$0xf]
        %v3185 = vld [vmem:[%s5 + $0x74] sm:$0xf]
        %v3186 = vld [vmem:[%s5 + $0x78] sm:$0xf]
        %v3187 = vld [vmem:[%s5 + $0x7c] sm:$0xf]
        %v3188 = vld [vmem:[%s5 + $0x80] sm:$0xf]
        %v3189 = vld [vmem:[%s5 + $0x84] sm:$0xf]
        %v3190 = vld [vmem:[%s5 + $0x88] sm:$0xf]
        %v3191 = vld [vmem:[%s5 + $0x8c] sm:$0xf]
        %v3192 = vld [vmem:[%s5 + $0x90] sm:$0xf]
        %v3193 = vld [vmem:[%s5 + $0x94] sm:$0xf]
        %v3194 = vld [vmem:[%s5 + $0x98] sm:$0xf]
        %v3195 = vld [vmem:[%s5 + $0x9c] sm:$0xf]
        %v3196 = vld [vmem:[%s5 + $0xa0] sm:$0xf]
        %v3197 = vld [vmem:[%s5 + $0xa4] sm:$0xf]
        %v3198 = vld [vmem:[%s5 + $0xa8] sm:$0xf]
        %v3199 = vld [vmem:[%s5 + $0xac] sm:$0xf]
        %v3200 = vpack.c.bf16 %v3150, %v3147
        %v3201 = vpack.c.bf16 %v3151, %v3148
        %v3202 = vpack.c.bf16 %v3152, %v3149
        %s3203 = scalar_lea.vmem %s5, 176
        %v3204 = vld [vmem:[%s3203] sm:$0xf]
        %v3205 = vld [vmem:[%s3203 + $0x4] sm:$0xf]
        %v3206 = vld [vmem:[%s3203 + $0x8] sm:$0xf]
        %v3207 = vld [vmem:[%s3203 + $0xc] sm:$0xf]
        %v3208 = vld [vmem:[%s3203 + $0x10] sm:$0xf]
        %v3209 = vld [vmem:[%s3203 + $0x14] sm:$0xf]
        %v3210 = vld [vmem:[%s3203 + $0x18] sm:$0xf]
        %v3211 = vld [vmem:[%s3203 + $0x1c] sm:$0xf]
        %v3212 = vld [vmem:[%s3203 + $0x20] sm:$0xf]
        %v3213 = vld [vmem:[%s3203 + $0x24] sm:$0xf]
        %v3214 = vld [vmem:[%s3203 + $0x28] sm:$0xf]
        %v3215 = vld [vmem:[%s3203 + $0x2c] sm:$0xf]
        %v3216 = vld [vmem:[%s3203 + $0x30] sm:$0xf]
        %v3217 = vld [vmem:[%s3203 + $0x34] sm:$0xf]
        %v3218 = vld [vmem:[%s3203 + $0x38] sm:$0xf]
        %v3219 = vld [vmem:[%s3203 + $0x3c] sm:$0xf]
        %v3220 = vld [vmem:[%s3203 + $0x40] sm:$0xf]
        %v3221 = vld [vmem:[%s3203 + $0x44] sm:$0xf]
        %v3222 = vld [vmem:[%s3203 + $0x48] sm:$0xf]
        %v3223 = vld [vmem:[%s3203 + $0x4c] sm:$0xf]
        %v3224 = vld [vmem:[%s3203 + $0x50] sm:$0xf]
        %v3225 = vld [vmem:[%s3203 + $0x54] sm:$0xf]
        %v3226 = vld [vmem:[%s3203 + $0x58] sm:$0xf]
        %v3227 = vld [vmem:[%s3203 + $0x5c] sm:$0xf]
        %v3228 = vld [vmem:[%s3203 + $0x60] sm:$0xf]
        %v3229 = vld [vmem:[%s3203 + $0x64] sm:$0xf]
        %v3230 = vld [vmem:[%s3203 + $0x68] sm:$0xf]
        %v3231 = vld [vmem:[%s3203 + $0x6c] sm:$0xf]
        %v3232 = vld [vmem:[%s3203 + $0x70] sm:$0xf]
        %v3233 = vld [vmem:[%s3203 + $0x74] sm:$0xf]
        %v3234 = vld [vmem:[%s3203 + $0x78] sm:$0xf]
        %v3235 = vld [vmem:[%s3203 + $0x7c] sm:$0xf]
        %v3236 = vld [vmem:[%s3203 + $0x80] sm:$0xf]
        %v3237 = vld [vmem:[%s3203 + $0x84] sm:$0xf]
        %v3238 = vld [vmem:[%s3203 + $0x88] sm:$0xf]
        %v3239 = vld [vmem:[%s3203 + $0x8c] sm:$0xf]
        %v3240 = vld [vmem:[%s3203 + $0x90] sm:$0xf]
        %v3241 = vld [vmem:[%s3203 + $0x94] sm:$0xf]
        %v3242 = vld [vmem:[%s3203 + $0x98] sm:$0xf]
        %v3243 = vld [vmem:[%s3203 + $0x9c] sm:$0xf]
        %v3244 = vld [vmem:[%s3203 + $0xa0] sm:$0xf]
        %v3245 = vld [vmem:[%s3203 + $0xa4] sm:$0xf]
        %v3246 = vld [vmem:[%s3203 + $0xa8] sm:$0xf]
        %v3247 = vld [vmem:[%s3203 + $0xac] sm:$0xf]
        %v3251 = vrot.slane %v3200, 1
        %v3252 = vrot.slane %v3201, 1
        %v3253 = vrot.slane %v3202, 1
        %v3300 = vunpack.c.l.b16 %v3204
        %v3301 = vunpack.c.l.b16 %v3205
        %v3302 = vunpack.c.l.b16 %v3206
        %v3303 = vunpack.c.l.b16 %v3207
        %v3304 = vunpack.c.l.b16 %v3208
        %v3305 = vunpack.c.l.b16 %v3209
        %v3306 = vunpack.c.l.b16 %v3210
        %v3307 = vunpack.c.l.b16 %v3211
        %v3308 = vunpack.c.l.b16 %v3212
        %v3309 = vunpack.c.l.b16 %v3213
        %v3310 = vunpack.c.l.b16 %v3214
        %v3311 = vunpack.c.l.b16 %v3215
        %v3312 = vunpack.c.l.b16 %v3216
        %v3313 = vunpack.c.l.b16 %v3217
        %v3314 = vunpack.c.l.b16 %v3218
        %v3315 = vunpack.c.l.b16 %v3219
        %v3316 = vunpack.c.l.b16 %v3220
        %v3317 = vunpack.c.l.b16 %v3221
        %v3318 = vunpack.c.l.b16 %v3222
        %v3319 = vunpack.c.l.b16 %v3223
        %v3320 = vunpack.c.l.b16 %v3224
        %v3321 = vunpack.c.l.b16 %v3225
        %v3322 = vunpack.c.l.b16 %v3226
        %v3323 = vunpack.c.l.b16 %v3227
        %v3324 = vunpack.c.l.b16 %v3228
        %v3325 = vunpack.c.l.b16 %v3229
        %v3326 = vunpack.c.l.b16 %v3230
        %v3327 = vunpack.c.l.b16 %v3231
        %v3328 = vunpack.c.l.b16 %v3232
        %v3329 = vunpack.c.l.b16 %v3233
        %v3330 = vunpack.c.l.b16 %v3234
        %v3331 = vunpack.c.l.b16 %v3235
        %v3332 = vunpack.c.l.b16 %v3236
        %v3333 = vunpack.c.l.b16 %v3237
        %v3334 = vunpack.c.l.b16 %v3238
        %v3335 = vunpack.c.l.b16 %v3239
        %v3336 = vunpack.c.l.b16 %v3240
        %v3337 = vunpack.c.l.b16 %v3241
        %v3338 = vunpack.c.l.b16 %v3242
        %v3339 = vunpack.c.l.b16 %v3243
        %v3340 = vunpack.c.l.b16 %v3244
        %v3341 = vunpack.c.l.b16 %v3245
        %v3342 = vunpack.c.l.b16 %v3246
        %v3343 = vunpack.c.l.b16 %v3247
        %v3344 = vpack.c.b16 %v3301, %v3300
        %v3345 = vpack.c.b16 %v3303, %v3302
        %v3346 = vpack.c.b16 %v3305, %v3304
        %v3347 = vpack.c.b16 %v3307, %v3306
        %v3348 = vpack.c.b16 %v3309, %v3308
        %v3349 = vpack.c.b16 %v3311, %v3310
        %v3350 = vpack.c.b16 %v3313, %v3312
        %v3351 = vpack.c.b16 %v3315, %v3314
        %v3352 = vpack.c.b16 %v3317, %v3316
        %v3353 = vpack.c.b16 %v3319, %v3318
        %v3354 = vpack.c.b16 %v3321, %v3320
        %v3355 = vpack.c.b16 %v3323, %v3322
        %v3356 = vpack.c.b16 %v3325, %v3324
        %v3357 = vpack.c.b16 %v3327, %v3326
        %v3358 = vpack.c.b16 %v3329, %v3328
        %v3359 = vpack.c.b16 %v3331, %v3330
        %v3360 = vpack.c.b16 %v3333, %v3332
        %v3361 = vpack.c.b16 %v3335, %v3334
        %v3362 = vpack.c.b16 %v3337, %v3336
        %v3363 = vpack.c.b16 %v3339, %v3338
        %v3364 = vpack.c.b16 %v3341, %v3340
        %v3365 = vpack.c.b16 %v3343, %v3342
        %v3389 = vsel %vm3136, %v3253, 0
        %3391 = vmatprep.subr.bf16.mxu0 0
        %3392 = vmatpush1.bf16.msra.mxu0 %v3344
        %3393 = vmatprep.subr.bf16.mxu0 0
        %3394 = vmatpush1.bf16.msra.mxu0 %v3345
        %3395 = vmatprep.subr.bf16.mxu0 0
        %3396 = vmatpush1.bf16.msra.mxu0 %v3346
        %3397 = vmatprep.subr.bf16.mxu0 0
        %3398 = vmatpush1.bf16.msra.mxu0 %v3347
        %3399 = vmatprep.subr.bf16.mxu0 0
        %3400 = vmatpush1.bf16.msra.mxu0 %v3348
        %3401 = vmatprep.subr.bf16.mxu0 0
        %3402 = vmatpush1.bf16.msra.mxu0 %v3349
        %3403 = vmatprep.subr.bf16.mxu0 0
        %3404 = vmatpush1.bf16.msra.mxu0 %v3350
        %3405 = vmatprep.subr.bf16.mxu0 0
        %3406 = vmatpush1.bf16.msra.mxu0 %v3351
        %3407 = vmatprep.subr.bf16.mxu0 0
        %3408 = vmatpush1.bf16.msra.mxu0 %v3352
        %3409 = vmatprep.subr.bf16.mxu0 0
        %3410 = vmatpush1.bf16.msra.mxu0 %v3353
        %3411 = vmatprep.subr.bf16.mxu0 0
        %3412 = vmatpush1.bf16.msra.mxu0 %v3354
        %3413 = vmatprep.subr.bf16.mxu0 0
        %3414 = vmatpush1.bf16.msra.mxu0 %v3355
        %3415 = vmatprep.subr.bf16.mxu0 0
        %3416 = vmatpush1.bf16.msra.mxu0 %v3356
        %3417 = vmatprep.subr.bf16.mxu0 0
        %3418 = vmatpush1.bf16.msra.mxu0 %v3357
        %3419 = vmatprep.subr.bf16.mxu0 0
        %3420 = vmatpush1.bf16.msra.mxu0 %v3358
        %3421 = vmatprep.subr.bf16.mxu0 0
        %3422 = vmatpush1.bf16.msra.mxu0 %v3359
        %3423 = vmatprep.mubr.bf16.mxu0 %v3252
        %3424 = vmatmul.mubr.bf16.gmra.mrb[0].mxu0 %v3251
        %v3425 = vpop.f32.mrb[0].mxu0
        %v3426 = vadd.f32 0.0, %v3425
        %v3427 = vpop.f32.mrb[0].mxu0
        %v3428 = vpop.f32.mrb[0].mxu0
        %v3429 = vpop.f32.mrb[0].mxu0
        %3430 = vdwg.mxu0
        %3431 = vmatprep.subr.bf16.mxu0 0
        %3432 = vmatpush1.bf16.msra.mxu0 %v3360
        %3433 = vmatprep.subr.bf16.mxu0 0
        %3434 = vmatpush1.bf16.msra.mxu0 %v3361
        %3435 = vmatprep.subr.bf16.mxu0 0
        %3436 = vmatpush1.bf16.msra.mxu0 %v3362
        %3437 = vmatprep.subr.bf16.mxu0 0
        %3438 = vmatpush1.bf16.msra.mxu0 %v3363
        %3439 = vmatprep.subr.bf16.mxu0 0
        %3440 = vmatpush1.bf16.msra.mxu0 %v3364
        %3441 = vmatprep.subr.bf16.mxu0 0
        %3442 = vmatpush1.bf16.msra.mxu0 %v3365
        %3443 = vmatprep.subr.bf16.mxu0 0
        %3444 = vmatpush1.bf16.msra.mxu0 0
        %3445 = vmatprep.subr.bf16.mxu0 0
        %3446 = vmatpush1.bf16.msra.mxu0 0
        %3447 = vmatprep.subr.bf16.mxu0 0
        %3448 = vmatpush1.bf16.msra.mxu0 0
        %3449 = vmatprep.subr.bf16.mxu0 0
        %3450 = vmatpush1.bf16.msra.mxu0 0
        %3451 = vmatprep.subr.bf16.mxu0 0
        %3452 = vmatpush1.bf16.msra.mxu0 0
        %3453 = vmatprep.subr.bf16.mxu0 0
        %3454 = vmatpush1.bf16.msra.mxu0 0
        %3455 = vmatprep.subr.bf16.mxu0 0
        %3456 = vmatpush1.bf16.msra.mxu0 0
        %3457 = vmatprep.subr.bf16.mxu0 0
        %3458 = vmatpush1.bf16.msra.mxu0 0
        %3459 = vmatprep.subr.bf16.mxu0 0
        %3460 = vmatpush1.bf16.msra.mxu0 0
        %3461 = vmatprep.subr.bf16.mxu0 0
        %3462 = vmatpush1.bf16.msra.mxu0 0
        %3463 = vmatprep.mubr.bf16.mxu0 0
        %3464 = vmatmul.mubr.bf16.gmra.mrb[0].mxu0 %v3389
        %v3465 = vpop.f32.mrb[0].mxu0
        %v3466 = vadd.f32 %v3426, %v3465
        %v3467 = vpop.f32.mrb[0].mxu0
        %v3468 = vpop.f32.mrb[0].mxu0
        %v3469 = vpop.f32.mrb[0].mxu0
        %3470 = vdwg.mxu0
        %v3515 = vunpack.c.l.b16 %v3156
        %v3516 = vunpack.c.l.b16 %v3157
        %v3517 = vunpack.c.l.b16 %v3158
        %v3518 = vunpack.c.l.b16 %v3159
        %v3519 = vunpack.c.l.b16 %v3160
        %v3520 = vunpack.c.l.b16 %v3161
        %v3521 = vunpack.c.l.b16 %v3162
        %v3522 = vunpack.c.l.b16 %v3163
        %v3523 = vunpack.c.l.b16 %v3164
        %v3524 = vunpack.c.l.b16 %v3165
        %v3525 = vunpack.c.l.b16 %v3166
        %v3526 = vunpack.c.l.b16 %v3167
        %v3527 = vunpack.c.l.b16 %v3168
        %v3528 = vunpack.c.l.b16 %v3169
        %v3529 = vunpack.c.l.b16 %v3170
        %v3530 = vunpack.c.l.b16 %v3171
        %v3531 = vunpack.c.l.b16 %v3172
        %v3532 = vunpack.c.l.b16 %v3173
        %v3533 = vunpack.c.l.b16 %v3174
        %v3534 = vunpack.c.l.b16 %v3175
        %v3535 = vunpack.c.l.b16 %v3176
        %v3536 = vunpack.c.l.b16 %v3177
        %v3537 = vunpack.c.l.b16 %v3178
        %v3538 = vunpack.c.l.b16 %v3179
        %v3539 = vunpack.c.l.b16 %v3180
        %v3540 = vunpack.c.l.b16 %v3181
        %v3541 = vunpack.c.l.b16 %v3182
        %v3542 = vunpack.c.l.b16 %v3183
        %v3543 = vunpack.c.l.b16 %v3184
        %v3544 = vunpack.c.l.b16 %v3185
        %v3545 = vunpack.c.l.b16 %v3186
        %v3546 = vunpack.c.l.b16 %v3187
        %v3547 = vunpack.c.l.b16 %v3188
        %v3548 = vunpack.c.l.b16 %v3189
        %v3549 = vunpack.c.l.b16 %v3190
        %v3550 = vunpack.c.l.b16 %v3191
        %v3551 = vunpack.c.l.b16 %v3192
        %v3552 = vunpack.c.l.b16 %v3193
        %v3553 = vunpack.c.l.b16 %v3194
        %v3554 = vunpack.c.l.b16 %v3195
        %v3555 = vunpack.c.l.b16 %v3196
        %v3556 = vunpack.c.l.b16 %v3197
        %v3557 = vunpack.c.l.b16 %v3198
        %v3558 = vunpack.c.l.b16 %v3199
        %v3559 = vpack.c.b16 %v3516, %v3515
        %v3560 = vpack.c.b16 %v3518, %v3517
        %v3561 = vpack.c.b16 %v3520, %v3519
        %v3562 = vpack.c.b16 %v3522, %v3521
        %v3563 = vpack.c.b16 %v3524, %v3523
        %v3564 = vpack.c.b16 %v3526, %v3525
        %v3565 = vpack.c.b16 %v3528, %v3527
        %v3566 = vpack.c.b16 %v3530, %v3529
        %v3567 = vpack.c.b16 %v3532, %v3531
        %v3568 = vpack.c.b16 %v3534, %v3533
        %v3569 = vpack.c.b16 %v3536, %v3535
        %v3570 = vpack.c.b16 %v3538, %v3537
        %v3571 = vpack.c.b16 %v3540, %v3539
        %v3572 = vpack.c.b16 %v3542, %v3541
        %v3573 = vpack.c.b16 %v3544, %v3543
        %v3574 = vpack.c.b16 %v3546, %v3545
        %v3575 = vpack.c.b16 %v3548, %v3547
        %v3576 = vpack.c.b16 %v3550, %v3549
        %v3577 = vpack.c.b16 %v3552, %v3551
        %v3578 = vpack.c.b16 %v3554, %v3553
        %v3579 = vpack.c.b16 %v3556, %v3555
        %v3580 = vpack.c.b16 %v3558, %v3557
        %v3604 = vsel %vm3136, %v3155, 0
        %3606 = vmatprep.subr.bf16.mxu0 0
        %3607 = vmatpush1.bf16.msra.mxu0 %v3559
        %3608 = vmatprep.subr.bf16.mxu0 0
        %3609 = vmatpush1.bf16.msra.mxu0 %v3560
        %3610 = vmatprep.subr.bf16.mxu0 0
        %3611 = vmatpush1.bf16.msra.mxu0 %v3561
        %3612 = vmatprep.subr.bf16.mxu0 0
        %3613 = vmatpush1.bf16.msra.mxu0 %v3562
        %3614 = vmatprep.subr.bf16.mxu0 0
        %3615 = vmatpush1.bf16.msra.mxu0 %v3563
        %3616 = vmatprep.subr.bf16.mxu0 0
        %3617 = vmatpush1.bf16.msra.mxu0 %v3564
        %3618 = vmatprep.subr.bf16.mxu0 0
        %3619 = vmatpush1.bf16.msra.mxu0 %v3565
        %3620 = vmatprep.subr.bf16.mxu0 0
        %3621 = vmatpush1.bf16.msra.mxu0 %v3566
        %3622 = vmatprep.subr.bf16.mxu0 0
        %3623 = vmatpush1.bf16.msra.mxu0 %v3567
        %3624 = vmatprep.subr.bf16.mxu0 0
        %3625 = vmatpush1.bf16.msra.mxu0 %v3568
        %3626 = vmatprep.subr.bf16.mxu0 0
        %3627 = vmatpush1.bf16.msra.mxu0 %v3569
        %3628 = vmatprep.subr.bf16.mxu0 0
        %3629 = vmatpush1.bf16.msra.mxu0 %v3570
        %3630 = vmatprep.subr.bf16.mxu0 0
        %3631 = vmatpush1.bf16.msra.mxu0 %v3571
        %3632 = vmatprep.subr.bf16.mxu0 0
        %3633 = vmatpush1.bf16.msra.mxu0 %v3572
        %3634 = vmatprep.subr.bf16.mxu0 0
        %3635 = vmatpush1.bf16.msra.mxu0 %v3573
        %3636 = vmatprep.subr.bf16.mxu0 0
        %3637 = vmatpush1.bf16.msra.mxu0 %v3574
        %3638 = vmatprep.mubr.bf16.mxu0 %v3154
        %3639 = vmatmul.mubr.bf16.gmra.mrb[0].mxu0 %v3153
        %v3640 = vpop.f32.mrb[0].mxu0
        %v3641 = vadd.f32 %v3466, %v3640
        %v3642 = vpop.f32.mrb[0].mxu0
        %v3643 = vpop.f32.mrb[0].mxu0
        %v3644 = vpop.f32.mrb[0].mxu0
        %3645 = vdwg.mxu0
        %3646 = vmatprep.subr.bf16.mxu0 0
        %3647 = vmatpush1.bf16.msra.mxu0 %v3575
        %3648 = vmatprep.subr.bf16.mxu0 0
        %3649 = vmatpush1.bf16.msra.mxu0 %v3576
        %3650 = vmatprep.subr.bf16.mxu0 0
        %3651 = vmatpush1.bf16.msra.mxu0 %v3577
        %3652 = vmatprep.subr.bf16.mxu0 0
        %3653 = vmatpush1.bf16.msra.mxu0 %v3578
        %3654 = vmatprep.subr.bf16.mxu0 0
        %3655 = vmatpush1.bf16.msra.mxu0 %v3579
        %3656 = vmatprep.subr.bf16.mxu0 0
        %3657 = vmatpush1.bf16.msra.mxu0 %v3580
        %3658 = vmatprep.subr.bf16.mxu0 0
        %3659 = vmatpush1.bf16.msra.mxu0 0
        %3660 = vmatprep.subr.bf16.mxu0 0
        %3661 = vmatpush1.bf16.msra.mxu0 0
        %3662 = vmatprep.subr.bf16.mxu0 0
        %3663 = vmatpush1.bf16.msra.mxu0 0
        %3664 = vmatprep.subr.bf16.mxu0 0
        %3665 = vmatpush1.bf16.msra.mxu0 0
        %3666 = vmatprep.subr.bf16.mxu0 0
        %3667 = vmatpush1.bf16.msra.mxu0 0
        %3668 = vmatprep.subr.bf16.mxu0 0
        %3669 = vmatpush1.bf16.msra.mxu0 0
        %3670 = vmatprep.subr.bf16.mxu0 0
        %3671 = vmatpush1.bf16.msra.mxu0 0
        %3672 = vmatprep.subr.bf16.mxu0 0
        %3673 = vmatpush1.bf16.msra.mxu0 0
        %3674 = vmatprep.subr.bf16.mxu0 0
        %3675 = vmatpush1.bf16.msra.mxu0 0
        %3676 = vmatprep.subr.bf16.mxu0 0
        %3677 = vmatpush1.bf16.msra.mxu0 0
        %3678 = vmatprep.mubr.bf16.mxu0 0
        %3679 = vmatmul.mubr.bf16.gmra.mrb[0].mxu0 %v3604
        %v3680 = vpop.f32.mrb[0].mxu0
        %v3681 = vadd.f32 %v3641, %v3680
        %v3682 = vpop.f32.mrb[0].mxu0
        %v3683 = vpop.f32.mrb[0].mxu0
        %v3684 = vpop.f32.mrb[0].mxu0
        %3685 = vdwg.mxu0
        %s3686 = scalar_lea.vmem %s5, 352
        %v3687 = vld [vmem:[%s3686] sm:$0xf]
        %v3688 = vld [vmem:[%s3686 + $0x4] sm:$0xf]
        %v3689 = vld [vmem:[%s3686 + $0x8] sm:$0xf]
        %v3690 = vld [vmem:[%s3686 + $0xc] sm:$0xf]
        %v3691 = vld [vmem:[%s3686 + $0x10] sm:$0xf]
        %v3692 = vld [vmem:[%s3686 + $0x14] sm:$0xf]
        %v3693 = vld [vmem:[%s3686 + $0x18] sm:$0xf]
        %v3694 = vld [vmem:[%s3686 + $0x1c] sm:$0xf]
        %v3695 = vld [vmem:[%s3686 + $0x20] sm:$0xf]
        %v3696 = vld [vmem:[%s3686 + $0x24] sm:$0xf]
        %v3697 = vld [vmem:[%s3686 + $0x28] sm:$0xf]
        %v3698 = vld [vmem:[%s3686 + $0x2c] sm:$0xf]
        %v3699 = vld [vmem:[%s3686 + $0x30] sm:$0xf]
        %v3700 = vld [vmem:[%s3686 + $0x34] sm:$0xf]
        %v3701 = vld [vmem:[%s3686 + $0x38] sm:$0xf]
        %v3702 = vld [vmem:[%s3686 + $0x3c] sm:$0xf]
        %v3703 = vld [vmem:[%s3686 + $0x40] sm:$0xf]
        %v3704 = vld [vmem:[%s3686 + $0x44] sm:$0xf]
        %v3705 = vld [vmem:[%s3686 + $0x48] sm:$0xf]
        %v3706 = vld [vmem:[%s3686 + $0x4c] sm:$0xf]
        %v3707 = vld [vmem:[%s3686 + $0x50] sm:$0xf]
        %v3708 = vld [vmem:[%s3686 + $0x54] sm:$0xf]
        %v3709 = vld [vmem:[%s3686 + $0x58] sm:$0xf]
        %v3710 = vld [vmem:[%s3686 + $0x5c] sm:$0xf]
        %v3711 = vld [vmem:[%s3686 + $0x60] sm:$0xf]
        %v3712 = vld [vmem:[%s3686 + $0x64] sm:$0xf]
        %v3713 = vld [vmem:[%s3686 + $0x68] sm:$0xf]
        %v3714 = vld [vmem:[%s3686 + $0x6c] sm:$0xf]
        %v3715 = vld [vmem:[%s3686 + $0x70] sm:$0xf]
        %v3716 = vld [vmem:[%s3686 + $0x74] sm:$0xf]
        %v3717 = vld [vmem:[%s3686 + $0x78] sm:$0xf]
        %v3718 = vld [vmem:[%s3686 + $0x7c] sm:$0xf]
        %v3719 = vld [vmem:[%s3686 + $0x80] sm:$0xf]
        %v3720 = vld [vmem:[%s3686 + $0x84] sm:$0xf]
        %v3721 = vld [vmem:[%s3686 + $0x88] sm:$0xf]
        %v3722 = vld [vmem:[%s3686 + $0x8c] sm:$0xf]
        %v3723 = vld [vmem:[%s3686 + $0x90] sm:$0xf]
        %v3724 = vld [vmem:[%s3686 + $0x94] sm:$0xf]
        %v3725 = vld [vmem:[%s3686 + $0x98] sm:$0xf]
        %v3726 = vld [vmem:[%s3686 + $0x9c] sm:$0xf]
        %v3727 = vld [vmem:[%s3686 + $0xa0] sm:$0xf]
        %v3728 = vld [vmem:[%s3686 + $0xa4] sm:$0xf]
        %v3729 = vld [vmem:[%s3686 + $0xa8] sm:$0xf]
        %v3730 = vld [vmem:[%s3686 + $0xac] sm:$0xf]
        %v3731 = vrot.slane %v3200, 2
        %v3732 = vrot.slane %v3201, 2
        %v3733 = vrot.slane %v3202, 2
        %v3780 = vunpack.c.l.b16 %v3687
        %v3781 = vunpack.c.l.b16 %v3688
        %v3782 = vunpack.c.l.b16 %v3689
        %v3783 = vunpack.c.l.b16 %v3690
        %v3784 = vunpack.c.l.b16 %v3691
        %v3785 = vunpack.c.l.b16 %v3692
        %v3786 = vunpack.c.l.b16 %v3693
        %v3787 = vunpack.c.l.b16 %v3694
        %v3788 = vunpack.c.l.b16 %v3695
        %v3789 = vunpack.c.l.b16 %v3696
        %v3790 = vunpack.c.l.b16 %v3697
        %v3791 = vunpack.c.l.b16 %v3698
        %v3792 = vunpack.c.l.b16 %v3699
        %v3793 = vunpack.c.l.b16 %v3700
        %v3794 = vunpack.c.l.b16 %v3701
        %v3795 = vunpack.c.l.b16 %v3702
        %v3796 = vunpack.c.l.b16 %v3703
        %v3797 = vunpack.c.l.b16 %v3704
        %v3798 = vunpack.c.l.b16 %v3705
        %v3799 = vunpack.c.l.b16 %v3706
        %v3800 = vunpack.c.l.b16 %v3707
        %v3801 = vunpack.c.l.b16 %v3708
        %v3802 = vunpack.c.l.b16 %v3709
        %v3803 = vunpack.c.l.b16 %v3710
        %v3804 = vunpack.c.l.b16 %v3711
        %v3805 = vunpack.c.l.b16 %v3712
        %v3806 = vunpack.c.l.b16 %v3713
        %v3807 = vunpack.c.l.b16 %v3714
        %v3808 = vunpack.c.l.b16 %v3715
        %v3809 = vunpack.c.l.b16 %v3716
        %v3810 = vunpack.c.l.b16 %v3717
        %v3811 = vunpack.c.l.b16 %v3718
        %v3812 = vunpack.c.l.b16 %v3719
        %v3813 = vunpack.c.l.b16 %v3720
        %v3814 = vunpack.c.l.b16 %v3721
        %v3815 = vunpack.c.l.b16 %v3722
        %v3816 = vunpack.c.l.b16 %v3723
        %v3817 = vunpack.c.l.b16 %v3724
        %v3818 = vunpack.c.l.b16 %v3725
        %v3819 = vunpack.c.l.b16 %v3726
        %v3820 = vunpack.c.l.b16 %v3727
        %v3821 = vunpack.c.l.b16 %v3728
        %v3822 = vunpack.c.l.b16 %v3729
        %v3823 = vunpack.c.l.b16 %v3730
        %v3824 = vpack.c.b16 %v3781, %v3780
        %v3825 = vpack.c.b16 %v3783, %v3782
        %v3826 = vpack.c.b16 %v3785, %v3784
        %v3827 = vpack.c.b16 %v3787, %v3786
        %v3828 = vpack.c.b16 %v3789, %v3788
        %v3829 = vpack.c.b16 %v3791, %v3790
        %v3830 = vpack.c.b16 %v3793, %v3792
        %v3831 = vpack.c.b16 %v3795, %v3794
        %v3832 = vpack.c.b16 %v3797, %v3796
        %v3833 = vpack.c.b16 %v3799, %v3798
        %v3834 = vpack.c.b16 %v3801, %v3800
        %v3835 = vpack.c.b16 %v3803, %v3802
        %v3836 = vpack.c.b16 %v3805, %v3804
        %v3837 = vpack.c.b16 %v3807, %v3806
        %v3838 = vpack.c.b16 %v3809, %v3808
        %v3839 = vpack.c.b16 %v3811, %v3810
        %v3840 = vpack.c.b16 %v3813, %v3812
        %v3841 = vpack.c.b16 %v3815, %v3814
        %v3842 = vpack.c.b16 %v3817, %v3816
        %v3843 = vpack.c.b16 %v3819, %v3818
        %v3844 = vpack.c.b16 %v3821, %v3820
        %v3845 = vpack.c.b16 %v3823, %v3822
        %v3869 = vsel %vm3136, %v3733, 0
        %3871 = vmatprep.subr.bf16.mxu0 0
        %3872 = vmatpush1.bf16.msra.mxu0 %v3824
        %3873 = vmatprep.subr.bf16.mxu0 0
        %3874 = vmatpush1.bf16.msra.mxu0 %v3825
        %3875 = vmatprep.subr.bf16.mxu0 0
        %3876 = vmatpush1.bf16.msra.mxu0 %v3826
        %3877 = vmatprep.subr.bf16.mxu0 0
        %3878 = vmatpush1.bf16.msra.mxu0 %v3827
        %3879 = vmatprep.subr.bf16.mxu0 0
        %3880 = vmatpush1.bf16.msra.mxu0 %v3828
        %3881 = vmatprep.subr.bf16.mxu0 0
        %3882 = vmatpush1.bf16.msra.mxu0 %v3829
        %3883 = vmatprep.subr.bf16.mxu0 0
        %3884 = vmatpush1.bf16.msra.mxu0 %v3830
        %3885 = vmatprep.subr.bf16.mxu0 0
        %3886 = vmatpush1.bf16.msra.mxu0 %v3831
        %3887 = vmatprep.subr.bf16.mxu0 0
        %3888 = vmatpush1.bf16.msra.mxu0 %v3832
        %3889 = vmatprep.subr.bf16.mxu0 0
        %3890 = vmatpush1.bf16.msra.mxu0 %v3833
        %3891 = vmatprep.subr.bf16.mxu0 0
        %3892 = vmatpush1.bf16.msra.mxu0 %v3834
        %3893 = vmatprep.subr.bf16.mxu0 0
        %3894 = vmatpush1.bf16.msra.mxu0 %v3835
        %3895 = vmatprep.subr.bf16.mxu0 0
        %3896 = vmatpush1.bf16.msra.mxu0 %v3836
        %3897 = vmatprep.subr.bf16.mxu0 0
        %3898 = vmatpush1.bf16.msra.mxu0 %v3837
        %3899 = vmatprep.subr.bf16.mxu0 0
        %3900 = vmatpush1.bf16.msra.mxu0 %v3838
        %3901 = vmatprep.subr.bf16.mxu0 0
        %3902 = vmatpush1.bf16.msra.mxu0 %v3839
        %3903 = vmatprep.mubr.bf16.mxu0 %v3732
        %3904 = vmatmul.mubr.bf16.gmra.mrb[0].mxu0 %v3731
        %v3905 = vpop.f32.mrb[0].mxu0
        %v3906 = vadd.f32 0.0, %v3905
        %v3907 = vpop.f32.mrb[0].mxu0
        %v3908 = vpop.f32.mrb[0].mxu0
        %v3909 = vpop.f32.mrb[0].mxu0
        %3910 = vdwg.mxu0
        %3911 = vmatprep.subr.bf16.mxu0 0
        %3912 = vmatpush1.bf16.msra.mxu0 %v3840
        %3913 = vmatprep.subr.bf16.mxu0 0
        %3914 = vmatpush1.bf16.msra.mxu0 %v3841
        %3915 = vmatprep.subr.bf16.mxu0 0
        %3916 = vmatpush1.bf16.msra.mxu0 %v3842
        %3917 = vmatprep.subr.bf16.mxu0 0
        %3918 = vmatpush1.bf16.msra.mxu0 %v3843
        %3919 = vmatprep.subr.bf16.mxu0 0
        %3920 = vmatpush1.bf16.msra.mxu0 %v3844
        %3921 = vmatprep.subr.bf16.mxu0 0
        %3922 = vmatpush1.bf16.msra.mxu0 %v3845
        %3923 = vmatprep.subr.bf16.mxu0 0
        %3924 = vmatpush1.bf16.msra.mxu0 0
        %3925 = vmatprep.subr.bf16.mxu0 0
        %3926 = vmatpush1.bf16.msra.mxu0 0
        %3927 = vmatprep.subr.bf16.mxu0 0
        %3928 = vmatpush1.bf16.msra.mxu0 0
        %3929 = vmatprep.subr.bf16.mxu0 0
        %3930 = vmatpush1.bf16.msra.mxu0 0
        %3931 = vmatprep.subr.bf16.mxu0 0
        %3932 = vmatpush1.bf16.msra.mxu0 0
        %3933 = vmatprep.subr.bf16.mxu0 0
        %3934 = vmatpush1.bf16.msra.mxu0 0
        %3935 = vmatprep.subr.bf16.mxu0 0
        %3936 = vmatpush1.bf16.msra.mxu0 0
        %3937 = vmatprep.subr.bf16.mxu0 0
        %3938 = vmatpush1.bf16.msra.mxu0 0
        %3939 = vmatprep.subr.bf16.mxu0 0
        %3940 = vmatpush1.bf16.msra.mxu0 0
        %3941 = vmatprep.subr.bf16.mxu0 0
        %3942 = vmatpush1.bf16.msra.mxu0 0
        %3943 = vmatprep.mubr.bf16.mxu0 0
        %3944 = vmatmul.mubr.bf16.gmra.mrb[0].mxu0 %v3869
        %v3945 = vpop.f32.mrb[0].mxu0
        %v3946 = vadd.f32 %v3906, %v3945
        %v3947 = vpop.f32.mrb[0].mxu0
        %v3948 = vpop.f32.mrb[0].mxu0
        %v3949 = vpop.f32.mrb[0].mxu0
        %3950 = vdwg.mxu0
        %v3951 = vadd.f32 %v3681, %v3946
        %v3952 = vld [vmem:[%s6] sm:$0x1]
        %v3954 = vlaneseq
        %v3955 = vshrl.u32 %v3954, 7
        %v3956 = vsub.s32 0, %v3955
        %v3957 = vrot.slane %v3952, %v3956
        %v3959 = vadd.f32 %v3951, %v3957
        %v3960 = vmax.f32 %v3959, 0.0
        %v3961 = vld [vmem:[%s8] sm:$0x1]
        %v3962 = vld [vmem:[%s7] sm:$0xff]
        %v3963 = vld [vmem:[%s7 + $0x8] sm:$0xff]
        %v3964 = vld [vmem:[%s7 + $0x10] sm:$0xff]
        %v3965 = vld [vmem:[%s7 + $0x18] sm:$0xff]
        %v3966 = vld [vmem:[%s7 + $0x20] sm:$0xff]
        %v3967 = vld [vmem:[%s7 + $0x28] sm:$0xff]
        %v3968 = vld [vmem:[%s7 + $0x30] sm:$0xff]
        %v3969 = vld [vmem:[%s7 + $0x38] sm:$0xff]
        %v3970 = vld [vmem:[%s7 + $0x40] sm:$0xff]
        %v3971 = vld [vmem:[%s7 + $0x48] sm:$0xff]
        %v3972 = vld [vmem:[%s7 + $0x50] sm:$0xff]
        %v3973 = vld [vmem:[%s7 + $0x58] sm:$0xff]
        %v3974 = vld [vmem:[%s7 + $0x60] sm:$0xff]
        %v3975 = vld [vmem:[%s7 + $0x68] sm:$0xff]
        %v3976 = vld [vmem:[%s7 + $0x70] sm:$0xff]
        %v3977 = vld [vmem:[%s7 + $0x78] sm:$0xff]
        %3978 = vmatprep.subr.mxu0 0.0
        %3979 = vmatpush1.msra.mxu0 %v3962
        %3980 = vmatprep.subr.mxu0 0.0
        %3981 = vmatpush1.msra.mxu0 %v3963
        %3982 = vmatprep.subr.mxu0 0.0
        %3983 = vmatpush1.msra.mxu0 %v3964
        %3984 = vmatprep.subr.mxu0 0.0
        %3985 = vmatpush1.msra.mxu0 %v3965
        %3986 = vmatprep.subr.mxu0 0.0
        %3987 = vmatpush1.msra.mxu0 %v3966
        %3988 = vmatprep.subr.mxu0 0.0
        %3989 = vmatpush1.msra.mxu0 %v3967
        %3990 = vmatprep.subr.mxu0 0.0
        %3991 = vmatpush1.msra.mxu0 %v3968
        %3992 = vmatprep.subr.mxu0 0.0
        %3993 = vmatpush1.msra.mxu0 %v3969
        %3994 = vmatprep.subr.mxu0 0.0
        %3995 = vmatpush1.msra.mxu0 %v3970
        %3996 = vmatprep.subr.mxu0 0.0
        %3997 = vmatpush1.msra.mxu0 %v3971
        %3998 = vmatprep.subr.mxu0 0.0
        %3999 = vmatpush1.msra.mxu0 %v3972
        %4000 = vmatprep.subr.mxu0 0.0
        %4001 = vmatpush1.msra.mxu0 %v3973
        %4002 = vmatprep.subr.mxu0 0.0
        %4003 = vmatpush1.msra.mxu0 %v3974
        %4004 = vmatprep.subr.mxu0 0.0
        %4005 = vmatpush1.msra.mxu0 %v3975
        %4006 = vmatprep.subr.mxu0 0.0
        %4007 = vmatpush1.msra.mxu0 %v3976
        %4008 = vmatprep.subr.mxu0 0.0
        %4009 = vmatpush1.msra.mxu0 %v3977
        %4010 = vmatprep.subr.mxu0 0.0
        %4011 = vmatpush1.msra.mxu0 0.0
        %4012 = vmatprep.subr.mxu0 0.0
        %4013 = vmatpush1.msra.mxu0 0.0
        %4014 = vmatprep.subr.mxu0 0.0
        %4015 = vmatpush1.msra.mxu0 0.0
        %4016 = vmatprep.subr.mxu0 0.0
        %4017 = vmatpush1.msra.mxu0 0.0
        %4018 = vmatprep.subr.mxu0 0.0
        %4019 = vmatpush1.msra.mxu0 0.0
        %4020 = vmatprep.subr.mxu0 0.0
        %4021 = vmatpush1.msra.mxu0 0.0
        %4022 = vmatprep.subr.mxu0 0.0
        %4023 = vmatpush1.msra.mxu0 0.0
        %4024 = vmatprep.subr.mxu0 0.0
        %4025 = vmatpush1.msra.mxu0 0.0
        %4026 = vmatprep.subr.mxu0 0.0
        %4027 = vmatpush1.msra.mxu0 0.0
        %4028 = vmatprep.subr.mxu0 0.0
        %4029 = vmatpush1.msra.mxu0 0.0
        %4030 = vmatprep.subr.mxu0 0.0
        %4031 = vmatpush1.msra.mxu0 0.0
        %4032 = vmatprep.subr.mxu0 0.0
        %4033 = vmatpush1.msra.mxu0 0.0
        %4034 = vmatprep.subr.mxu0 0.0
        %4035 = vmatpush1.msra.mxu0 0.0
        %4036 = vmatprep.subr.mxu0 0.0
        %4037 = vmatpush1.msra.mxu0 0.0
        %4038 = vmatprep.subr.mxu0 0.0
        %4039 = vmatpush1.msra.mxu0 0.0
        %4040 = vmatprep.subr.mxu0 0.0
        %4041 = vmatpush1.msra.mxu0 0.0
        %4042 = vmatprep.mubr.f32.mxu0 0.0
        %4043 = vmatmul.mubr.f32.gmra.mrb[0].mxu0 %v3960
        %v4044 = vpop.f32.mrb[0].mxu0
        %v4045 = vadd.f32 0.0, %v4044
        %v4046 = vpop.f32.mrb[0].mxu0
        %4047 = vdwg.mxu0
        %v4048 = vadd.f32 %v3961, %v4045
        %s4049 = scalar_lea.vmem %s7, 128
        %v4050 = vld [vmem:[%s4049] sm:$0xff]
        %v4051 = vld [vmem:[%s4049 + $0x8] sm:$0xff]
        %v4052 = vld [vmem:[%s4049 + $0x10] sm:$0xff]
        %v4053 = vld [vmem:[%s4049 + $0x18] sm:$0xff]
        %v4054 = vld [vmem:[%s4049 + $0x20] sm:$0xff]
        %v4055 = vld [vmem:[%s4049 + $0x28] sm:$0xff]
        %v4056 = vld [vmem:[%s4049 + $0x30] sm:$0xff]
        %v4057 = vld [vmem:[%s4049 + $0x38] sm:$0xff]
        %v4058 = vld [vmem:[%s4049 + $0x40] sm:$0xff]
        %v4059 = vld [vmem:[%s4049 + $0x48] sm:$0xff]
        %v4060 = vld [vmem:[%s4049 + $0x50] sm:$0xff]
        %v4061 = vld [vmem:[%s4049 + $0x58] sm:$0xff]
        %v4062 = vld [vmem:[%s4049 + $0x60] sm:$0xff]
        %v4063 = vld [vmem:[%s4049 + $0x68] sm:$0xff]
        %v4064 = vld [vmem:[%s4049 + $0x70] sm:$0xff]
        %v4065 = vld [vmem:[%s4049 + $0x78] sm:$0xff]
        %v4067 = vrot.slane %v3960, 2
        %4069 = vmatprep.subr.mxu0 0.0
        %4070 = vmatpush1.msra.mxu0 %v4050
        %4071 = vmatprep.subr.mxu0 0.0
        %4072 = vmatpush1.msra.mxu0 %v4051
        %4073 = vmatprep.subr.mxu0 0.0
        %4074 = vmatpush1.msra.mxu0 %v4052
        %4075 = vmatprep.subr.mxu0 0.0
        %4076 = vmatpush1.msra.mxu0 %v4053
        %4077 = vmatprep.subr.mxu0 0.0
        %4078 = vmatpush1.msra.mxu0 %v4054
        %4079 = vmatprep.subr.mxu0 0.0
        %4080 = vmatpush1.msra.mxu0 %v4055
        %4081 = vmatprep.subr.mxu0 0.0
        %4082 = vmatpush1.msra.mxu0 %v4056
        %4083 = vmatprep.subr.mxu0 0.0
        %4084 = vmatpush1.msra.mxu0 %v4057
        %4085 = vmatprep.subr.mxu0 0.0
        %4086 = vmatpush1.msra.mxu0 %v4058
        %4087 = vmatprep.subr.mxu0 0.0
        %4088 = vmatpush1.msra.mxu0 %v4059
        %4089 = vmatprep.subr.mxu0 0.0
        %4090 = vmatpush1.msra.mxu0 %v4060
        %4091 = vmatprep.subr.mxu0 0.0
        %4092 = vmatpush1.msra.mxu0 %v4061
        %4093 = vmatprep.subr.mxu0 0.0
        %4094 = vmatpush1.msra.mxu0 %v4062
        %4095 = vmatprep.subr.mxu0 0.0
        %4096 = vmatpush1.msra.mxu0 %v4063
        %4097 = vmatprep.subr.mxu0 0.0
        %4098 = vmatpush1.msra.mxu0 %v4064
        %4099 = vmatprep.subr.mxu0 0.0
        %4100 = vmatpush1.msra.mxu0 %v4065
        %4101 = vmatprep.subr.mxu0 0.0
        %4102 = vmatpush1.msra.mxu0 0.0
        %4103 = vmatprep.subr.mxu0 0.0
        %4104 = vmatpush1.msra.mxu0 0.0
        %4105 = vmatprep.subr.mxu0 0.0
        %4106 = vmatpush1.msra.mxu0 0.0
        %4107 = vmatprep.subr.mxu0 0.0
        %4108 = vmatpush1.msra.mxu0 0.0
        %4109 = vmatprep.subr.mxu0 0.0
        %4110 = vmatpush1.msra.mxu0 0.0
        %4111 = vmatprep.subr.mxu0 0.0
        %4112 = vmatpush1.msra.mxu0 0.0
        %4113 = vmatprep.subr.mxu0 0.0
        %4114 = vmatpush1.msra.mxu0 0.0
        %4115 = vmatprep.subr.mxu0 0.0
        %4116 = vmatpush1.msra.mxu0 0.0
        %4117 = vmatprep.subr.mxu0 0.0
        %4118 = vmatpush1.msra.mxu0 0.0
        %4119 = vmatprep.subr.mxu0 0.0
        %4120 = vmatpush1.msra.mxu0 0.0
        %4121 = vmatprep.subr.mxu0 0.0
        %4122 = vmatpush1.msra.mxu0 0.0
        %4123 = vmatprep.subr.mxu0 0.0
        %4124 = vmatpush1.msra.mxu0 0.0
        %4125 = vmatprep.subr.mxu0 0.0
        %4126 = vmatpush1.msra.mxu0 0.0
        %4127 = vmatprep.subr.mxu0 0.0
        %4128 = vmatpush1.msra.mxu0 0.0
        %4129 = vmatprep.subr.mxu0 0.0
        %4130 = vmatpush1.msra.mxu0 0.0
        %4131 = vmatprep.subr.mxu0 0.0
        %4132 = vmatpush1.msra.mxu0 0.0
        %4133 = vmatprep.mubr.f32.mxu0 0.0
        %4134 = vmatmul.mubr.f32.gmra.mrb[0].mxu0 %v4067
        %v4135 = vpop.f32.mrb[0].mxu0
        %v4136 = vadd.f32 0.0, %v4135
        %v4137 = vpop.f32.mrb[0].mxu0
        %4138 = vdwg.mxu0
        %v4139 = vadd.f32 %v4048, %v4136
        %s4140 = scalar_lea.vmem %s7, 256
        %v4141 = vld [vmem:[%s4140] sm:$0xff]
        %v4142 = vld [vmem:[%s4140 + $0x8] sm:$0xff]
        %v4143 = vld [vmem:[%s4140 + $0x10] sm:$0xff]
        %v4144 = vld [vmem:[%s4140 + $0x18] sm:$0xff]
        %v4145 = vld [vmem:[%s4140 + $0x20] sm:$0xff]
        %v4146 = vld [vmem:[%s4140 + $0x28] sm:$0xff]
        %v4147 = vld [vmem:[%s4140 + $0x30] sm:$0xff]
        %v4148 = vld [vmem:[%s4140 + $0x38] sm:$0xff]
        %v4149 = vld [vmem:[%s4140 + $0x40] sm:$0xff]
        %v4150 = vld [vmem:[%s4140 + $0x48] sm:$0xff]
        %v4151 = vld [vmem:[%s4140 + $0x50] sm:$0xff]
        %v4152 = vld [vmem:[%s4140 + $0x58] sm:$0xff]
        %v4153 = vld [vmem:[%s4140 + $0x60] sm:$0xff]
        %v4154 = vld [vmem:[%s4140 + $0x68] sm:$0xff]
        %v4155 = vld [vmem:[%s4140 + $0x70] sm:$0xff]
        %v4156 = vld [vmem:[%s4140 + $0x78] sm:$0xff]
        %v4157 = vrot.slane %v3960, 4
        %4159 = vmatprep.subr.mxu0 0.0
        %4160 = vmatpush1.msra.mxu0 %v4141
        %4161 = vmatprep.subr.mxu0 0.0
        %4162 = vmatpush1.msra.mxu0 %v4142
        %4163 = vmatprep.subr.mxu0 0.0
        %4164 = vmatpush1.msra.mxu0 %v4143
        %4165 = vmatprep.subr.mxu0 0.0
        %4166 = vmatpush1.msra.mxu0 %v4144
        %4167 = vmatprep.subr.mxu0 0.0
        %4168 = vmatpush1.msra.mxu0 %v4145
        %4169 = vmatprep.subr.mxu0 0.0
        %4170 = vmatpush1.msra.mxu0 %v4146
        %4171 = vmatprep.subr.mxu0 0.0
        %4172 = vmatpush1.msra.mxu0 %v4147
        %4173 = vmatprep.subr.mxu0 0.0
        %4174 = vmatpush1.msra.mxu0 %v4148
        %4175 = vmatprep.subr.mxu0 0.0
        %4176 = vmatpush1.msra.mxu0 %v4149
        %4177 = vmatprep.subr.mxu0 0.0
        %4178 = vmatpush1.msra.mxu0 %v4150
        %4179 = vmatprep.subr.mxu0 0.0
        %4180 = vmatpush1.msra.mxu0 %v4151
        %4181 = vmatprep.subr.mxu0 0.0
        %4182 = vmatpush1.msra.mxu0 %v4152
        %4183 = vmatprep.subr.mxu0 0.0
        %4184 = vmatpush1.msra.mxu0 %v4153
        %4185 = vmatprep.subr.mxu0 0.0
        %4186 = vmatpush1.msra.mxu0 %v4154
        %4187 = vmatprep.subr.mxu0 0.0
        %4188 = vmatpush1.msra.mxu0 %v4155
        %4189 = vmatprep.subr.mxu0 0.0
        %4190 = vmatpush1.msra.mxu0 %v4156
        %4191 = vmatprep.subr.mxu0 0.0
        %4192 = vmatpush1.msra.mxu0 0.0
        %4193 = vmatprep.subr.mxu0 0.0
        %4194 = vmatpush1.msra.mxu0 0.0
        %4195 = vmatprep.subr.mxu0 0.0
        %4196 = vmatpush1.msra.mxu0 0.0
        %4197 = vmatprep.subr.mxu0 0.0
        %4198 = vmatpush1.msra.mxu0 0.0
        %4199 = vmatprep.subr.mxu0 0.0
        %4200 = vmatpush1.msra.mxu0 0.0
        %4201 = vmatprep.subr.mxu0 0.0
        %4202 = vmatpush1.msra.mxu0 0.0
        %4203 = vmatprep.subr.mxu0 0.0
        %4204 = vmatpush1.msra.mxu0 0.0
        %4205 = vmatprep.subr.mxu0 0.0
        %4206 = vmatpush1.msra.mxu0 0.0
        %4207 = vmatprep.subr.mxu0 0.0
        %4208 = vmatpush1.msra.mxu0 0.0
        %4209 = vmatprep.subr.mxu0 0.0
        %4210 = vmatpush1.msra.mxu0 0.0
        %4211 = vmatprep.subr.mxu0 0.0
        %4212 = vmatpush1.msra.mxu0 0.0
        %4213 = vmatprep.subr.mxu0 0.0
        %4214 = vmatpush1.msra.mxu0 0.0
        %4215 = vmatprep.subr.mxu0 0.0
        %4216 = vmatpush1.msra.mxu0 0.0
        %4217 = vmatprep.subr.mxu0 0.0
        %4218 = vmatpush1.msra.mxu0 0.0
        %4219 = vmatprep.subr.mxu0 0.0
        %4220 = vmatpush1.msra.mxu0 0.0
        %4221 = vmatprep.subr.mxu0 0.0
        %4222 = vmatpush1.msra.mxu0 0.0
        %4223 = vmatprep.mubr.f32.mxu0 0.0
        %4224 = vmatmul.mubr.f32.gmra.mrb[0].mxu0 %v4157
        %v4225 = vpop.f32.mrb[0].mxu0
        %v4226 = vadd.f32 0.0, %v4225
        %v4227 = vpop.f32.mrb[0].mxu0
        %4228 = vdwg.mxu0
        %v4229 = vadd.f32 %v4139, %v4226
        %s4230 = scalar_lea.vmem %s7, 384
        %v4231 = vld [vmem:[%s4230] sm:$0xff]
        %v4232 = vld [vmem:[%s4230 + $0x8] sm:$0xff]
        %v4233 = vld [vmem:[%s4230 + $0x10] sm:$0xff]
        %v4234 = vld [vmem:[%s4230 + $0x18] sm:$0xff]
        %v4235 = vld [vmem:[%s4230 + $0x20] sm:$0xff]
        %v4236 = vld [vmem:[%s4230 + $0x28] sm:$0xff]
        %v4237 = vld [vmem:[%s4230 + $0x30] sm:$0xff]
        %v4238 = vld [vmem:[%s4230 + $0x38] sm:$0xff]
        %v4239 = vld [vmem:[%s4230 + $0x40] sm:$0xff]
        %v4240 = vld [vmem:[%s4230 + $0x48] sm:$0xff]
        %v4241 = vld [vmem:[%s4230 + $0x50] sm:$0xff]
        %v4242 = vld [vmem:[%s4230 + $0x58] sm:$0xff]
        %v4243 = vld [vmem:[%s4230 + $0x60] sm:$0xff]
        %v4244 = vld [vmem:[%s4230 + $0x68] sm:$0xff]
        %v4245 = vld [vmem:[%s4230 + $0x70] sm:$0xff]
        %v4246 = vld [vmem:[%s4230 + $0x78] sm:$0xff]
        %v4247 = vrot.slane %v3960, 6
        %4249 = vmatprep.subr.mxu0 0.0
        %4250 = vmatpush1.msra.mxu0 %v4231
        %4251 = vmatprep.subr.mxu0 0.0
        %4252 = vmatpush1.msra.mxu0 %v4232
        %4253 = vmatprep.subr.mxu0 0.0
        %4254 = vmatpush1.msra.mxu0 %v4233
        %4255 = vmatprep.subr.mxu0 0.0
        %4256 = vmatpush1.msra.mxu0 %v4234
        %4257 = vmatprep.subr.mxu0 0.0
        %4258 = vmatpush1.msra.mxu0 %v4235
        %4259 = vmatprep.subr.mxu0 0.0
        %4260 = vmatpush1.msra.mxu0 %v4236
        %4261 = vmatprep.subr.mxu0 0.0
        %4262 = vmatpush1.msra.mxu0 %v4237
        %4263 = vmatprep.subr.mxu0 0.0
        %4264 = vmatpush1.msra.mxu0 %v4238
        %4265 = vmatprep.subr.mxu0 0.0
        %4266 = vmatpush1.msra.mxu0 %v4239
        %4267 = vmatprep.subr.mxu0 0.0
        %4268 = vmatpush1.msra.mxu0 %v4240
        %4269 = vmatprep.subr.mxu0 0.0
        %4270 = vmatpush1.msra.mxu0 %v4241
        %4271 = vmatprep.subr.mxu0 0.0
        %4272 = vmatpush1.msra.mxu0 %v4242
        %4273 = vmatprep.subr.mxu0 0.0
        %4274 = vmatpush1.msra.mxu0 %v4243
        %4275 = vmatprep.subr.mxu0 0.0
        %4276 = vmatpush1.msra.mxu0 %v4244
        %4277 = vmatprep.subr.mxu0 0.0
        %4278 = vmatpush1.msra.mxu0 %v4245
        %4279 = vmatprep.subr.mxu0 0.0
        %4280 = vmatpush1.msra.mxu0 %v4246
        %4281 = vmatprep.subr.mxu0 0.0
        %4282 = vmatpush1.msra.mxu0 0.0
        %4283 = vmatprep.subr.mxu0 0.0
        %4284 = vmatpush1.msra.mxu0 0.0
        %4285 = vmatprep.subr.mxu0 0.0
        %4286 = vmatpush1.msra.mxu0 0.0
        %4287 = vmatprep.subr.mxu0 0.0
        %4288 = vmatpush1.msra.mxu0 0.0
        %4289 = vmatprep.subr.mxu0 0.0
        %4290 = vmatpush1.msra.mxu0 0.0
        %4291 = vmatprep.subr.mxu0 0.0
        %4292 = vmatpush1.msra.mxu0 0.0
        %4293 = vmatprep.subr.mxu0 0.0
        %4294 = vmatpush1.msra.mxu0 0.0
        %4295 = vmatprep.subr.mxu0 0.0
        %4296 = vmatpush1.msra.mxu0 0.0
        %4297 = vmatprep.subr.mxu0 0.0
        %4298 = vmatpush1.msra.mxu0 0.0
        %4299 = vmatprep.subr.mxu0 0.0
        %4300 = vmatpush1.msra.mxu0 0.0
        %4301 = vmatprep.subr.mxu0 0.0
        %4302 = vmatpush1.msra.mxu0 0.0
        %4303 = vmatprep.subr.mxu0 0.0
        %4304 = vmatpush1.msra.mxu0 0.0
        %4305 = vmatprep.subr.mxu0 0.0
        %4306 = vmatpush1.msra.mxu0 0.0
        %4307 = vmatprep.subr.mxu0 0.0
        %4308 = vmatpush1.msra.mxu0 0.0
        %4309 = vmatprep.subr.mxu0 0.0
        %4310 = vmatpush1.msra.mxu0 0.0
        %4311 = vmatprep.subr.mxu0 0.0
        %4312 = vmatpush1.msra.mxu0 0.0
        %4313 = vmatprep.mubr.f32.mxu0 0.0
        %4314 = vmatmul.mubr.f32.gmra.mrb[0].mxu0 %v4247
        %v4315 = vpop.f32.mrb[0].mxu0
        %v4316 = vadd.f32 0.0, %v4315
        %v4317 = vpop.f32.mrb[0].mxu0
        %4318 = vdwg.mxu0
        %v4319 = vadd.f32 %v4229, %v4316
        %v4320 = vmax.f32 %v4319, 0.0
        %v4321 = vld [vmem:[%s9] sm:$0xff]
        %v4322 = vld [vmem:[%s9 + $0x8] sm:$0xff]
        %v4323 = vld [vmem:[%s10] sm:$0x1]
        %v4325 = vsel %vm454, %v4320, 0
        %4327 = vmatprep.subr.mxu0 0.0
        %4328 = vmatpush1.msra.mxu0 %v4321
        %4329 = vmatprep.subr.mxu0 0.0
        %4330 = vmatpush1.msra.mxu0 %v4322
        %4331 = vmatprep.subr.mxu0 0.0
        %4332 = vmatpush1.msra.mxu0 0.0
        %4333 = vmatprep.subr.mxu0 0.0
        %4334 = vmatpush1.msra.mxu0 0.0
        %4335 = vmatprep.subr.mxu0 0.0
        %4336 = vmatpush1.msra.mxu0 0.0
        %4337 = vmatprep.subr.mxu0 0.0
        %4338 = vmatpush1.msra.mxu0 0.0
        %4339 = vmatprep.subr.mxu0 0.0
        %4340 = vmatpush1.msra.mxu0 0.0
        %4341 = vmatprep.subr.mxu0 0.0
        %4342 = vmatpush1.msra.mxu0 0.0
        %4343 = vmatprep.subr.mxu0 0.0
        %4344 = vmatpush1.msra.mxu0 0.0
        %4345 = vmatprep.subr.mxu0 0.0
        %4346 = vmatpush1.msra.mxu0 0.0
        %4347 = vmatprep.subr.mxu0 0.0
        %4348 = vmatpush1.msra.mxu0 0.0
        %4349 = vmatprep.subr.mxu0 0.0
        %4350 = vmatpush1.msra.mxu0 0.0
        %4351 = vmatprep.subr.mxu0 0.0
        %4352 = vmatpush1.msra.mxu0 0.0
        %4353 = vmatprep.subr.mxu0 0.0
        %4354 = vmatpush1.msra.mxu0 0.0
        %4355 = vmatprep.subr.mxu0 0.0
        %4356 = vmatpush1.msra.mxu0 0.0
        %4357 = vmatprep.subr.mxu0 0.0
        %4358 = vmatpush1.msra.mxu0 0.0
        %4359 = vmatprep.subr.mxu0 0.0
        %4360 = vmatpush1.msra.mxu0 0.0
        %4361 = vmatprep.subr.mxu0 0.0
        %4362 = vmatpush1.msra.mxu0 0.0
        %4363 = vmatprep.subr.mxu0 0.0
        %4364 = vmatpush1.msra.mxu0 0.0
        %4365 = vmatprep.subr.mxu0 0.0
        %4366 = vmatpush1.msra.mxu0 0.0
        %4367 = vmatprep.subr.mxu0 0.0
        %4368 = vmatpush1.msra.mxu0 0.0
        %4369 = vmatprep.subr.mxu0 0.0
        %4370 = vmatpush1.msra.mxu0 0.0
        %4371 = vmatprep.subr.mxu0 0.0
        %4372 = vmatpush1.msra.mxu0 0.0
        %4373 = vmatprep.subr.mxu0 0.0
        %4374 = vmatpush1.msra.mxu0 0.0
        %4375 = vmatprep.subr.mxu0 0.0
        %4376 = vmatpush1.msra.mxu0 0.0
        %4377 = vmatprep.subr.mxu0 0.0
        %4378 = vmatpush1.msra.mxu0 0.0
        %4379 = vmatprep.subr.mxu0 0.0
        %4380 = vmatpush1.msra.mxu0 0.0
        %4381 = vmatprep.subr.mxu0 0.0
        %4382 = vmatpush1.msra.mxu0 0.0
        %4383 = vmatprep.subr.mxu0 0.0
        %4384 = vmatpush1.msra.mxu0 0.0
        %4385 = vmatprep.subr.mxu0 0.0
        %4386 = vmatpush1.msra.mxu0 0.0
        %4387 = vmatprep.subr.mxu0 0.0
        %4388 = vmatpush1.msra.mxu0 0.0
        %4389 = vmatprep.subr.mxu0 0.0
        %4390 = vmatpush1.msra.mxu0 0.0
        %4391 = vmatprep.mubr.f32.mxu0 0.0
        %4392 = vmatmul.mubr.f32.gmra.mrb[0].mxu0 %v4325
        %v4393 = vpop.f32.mrb[0].mxu0
        %v4394 = vadd.f32 %v4323, %v4393
        %v4395 = vpop.f32.mrb[0].mxu0
        %4396 = vdwg.mxu0
        %vm4397 = vcmask 8192
        %v4398 = vsel %vm4397, %v4394, -inf
        %4399 = vmax.xlane.f32.xlu0 %v4398
        %v4400 = vpop.xlane.xlu0 %4399
        %v4401 = vsub.f32 %v4394, %v4400
        %v4402 = vmul.f32 %v4401, 1.442695
        %v4403 = vpow.pop %v4402
        %v4404 = vsel %vm4397, %v4403, 0.0
        %4405 = vadd.xlane.f32.xlu0 %v4404
        %v4406 = vpop.xlane.xlu0 %4405
        %v4407 = vlog2.pop %v4406
        %v4408 = vmul.f32 %v4407, 0.6931472
        %v4409 = vadd.f32 %v4400, %v4408
        %v4410 = vsub.f32 %v4394, %v4409
        %4411 = vst.msk [vmem:[%s408] sm:$0x1] %vm4397, %v4410
        %s4412 = sand.u32 %s271, 1
        %s4413 = scalar_lea.sflag [#allocation4], %s4412
        %s4414 = sand.u32 %s271, 1
        %s4415 = scalar_lea.vmem [#allocation7], %s4414
        // Predicated region
        $region73: #{net_forward.1} parent=63 // pred_check
          %p4416 = pneg %p281
        $region74: #{net_forward.1} parent=63 // pred_check_branch
          %4418 = sbr.rel (%p4416) target = $region76
        $region75: #{net_forward.1} parent=63 // pred_region
          %s4420 = ssub.s32 16, 16
          %4421 = vsyncadd %s4413, %s4420
          %s4422 = smul.addr %s27, 16
          %s4423 = scalar_lea.hbm %s11, %s4422
          %s4425 = sshll.u32 %s4415, 4
          %s4426 = int_to_ptr.vmem [resolvable:$true] %s4425
          %4428 = dma.vmem_to_hbm [thread:$0]  %s4426, 16, %s4423, %s4413
        $region76: #{net_forward.1} parent=63 // pred_fallthru
          _
      $region64: #{net_forward.1} parent=5 // pred_fallthru
        _
      %p4429 = scmp.le.s32.totalorder 2, %s22
      // Predicated region
      $region77: #{net_forward.1} parent=5 // pred_check
        %p4430 = pneg %p4429
      $region78: #{net_forward.1} parent=5 // pred_check_branch
        %4432 = sbr.rel (%p4430) target = $region80
      $region79: #{net_forward.1} parent=5 // pred_region
        %s4433 = ssub.s32 %s22, 2
        // Predicated region
        $region81: #{net_forward.1} parent=79 // pred_check
          %p4434 = pneg %p287
        $region82: #{net_forward.1} parent=79 // pred_check_branch
          %4436 = sbr.rel (%p4434) target = $region84
        $region83: #{net_forward.1} parent=79 // pred_region
          %s4437 = sand.u32 %s272, 1
          %s4438 = scalar_lea.sflag [#allocation4], %s4437
          %s4439 = sand.u32 %s272, 1
          %s4440 = scalar_lea.vmem [#allocation7], %s4439
          %4441 = dma.done %s4438, 16
        $region84: #{net_forward.1} parent=79 // pred_fallthru
          _
      $region80: #{net_forward.1} parent=5 // pred_fallthru
        _
    $region6: #{net_forward.1} parent=1 // loop_footer
      %s26 = sadd.s32 1, %s22
    $region7: #{net_forward.1} parent=1 // loop_footer_branch
      %21 = sbr.rel target = $region3
    $region8: #{net_forward.1} parent=1 // loop_exit
      _
    %4442 = vsyncpa [#allocation3], 1
    %s4443 = scalar_lea.sflag [#allocation3], 1
    %4444 = vsyncpa %s4443, 1
    %4445 = vsyncpa [#allocation6], 1
    %4446 = vsyncpa [#allocation4], 1
    %s4447 = scalar_lea.sflag [#allocation4], 1
    %4448 = vsyncpa %s4447, 1

</llo_original>
